<compile_context>
chip_gen: v6e
topology: v6e:2x2x1
jax: 0.10.0
libtpu: 0.0.40
codegen_flags: <defaults>
</compile_context>

<pallas_src>
import jax
import jax.numpy as jnp
from jax import lax
from jax.experimental import pallas as pl
from jax.experimental.pallas import tpu as pltpu


# ----------------------------------------------------------------------------
# Layout helpers: (B, C, 4, H, W)  <->  channels-last quaternion-flat (B, H, W, C*4)
# ----------------------------------------------------------------------------
def _to_flat_nhwc(x):
    B, C, Q, H, W = x.shape
    return jnp.transpose(x, (0, 3, 4, 1, 2)).reshape(B, H, W, C * Q)


def _from_flat_nhwc(y):
    B, H, W, C4 = y.shape
    return jnp.transpose(y.reshape(B, H, W, C4 // 4, 4), (0, 3, 4, 1, 2))


# ----------------------------------------------------------------------------
# Quaternion (Hamilton product w * x) conv weights expanded to a real weight of
# shape (K*K, Cin*4, Cout*4); flat channel index = c*4 + q.
# ----------------------------------------------------------------------------
def _hamilton_expand(wr, wi, wj, wk):
    Cout, Cin, K, _ = wr.shape
    rows = [
        [wr, -wi, -wj, -wk],
        [wi,  wr, -wk,  wj],
        [wj,  wk,  wr, -wi],
        [wk, -wj,  wi,  wr],
    ]
    big = jnp.stack([jnp.stack(r, axis=0) for r in rows], axis=0)  # (qo,qi,Cout,Cin,K,K)
    big = jnp.transpose(big, (4, 5, 3, 1, 2, 0))                   # (K,K,Cin,qi,Cout,qo)
    return big.reshape(K * K, Cin * 4, Cout * 4)


# ----------------------------------------------------------------------------
# Fused (optional IQBN affine + QSiLU + border masking) -> KxK quaternion conv
# (stride folded in) -> (optional residual add).  Row-tiled grid (B, H_out/TR).
# ----------------------------------------------------------------------------
def _qconv_pallas(x_flat, w_taps, *, ksize, stride=1, padding=0,
                  scale=None, bias=None, residual=None, block_rows=None):
    B, H, W, Cin4 = x_flat.shape
    K, P, S = ksize, padding, stride
    KK = K * K
    Cout4 = w_taps.shape[-1]
    H_out = (H + 2 * P - K) // S + 1
    W_out = (W + 2 * P - K) // S + 1
    Hp, Wp = H + 2 * P, W + 2 * P
    apply_act = scale is not None
    add_residual = residual is not None

    # Output-row tile size: largest divisor of H_out giving ~512 matmul rows per step.
    if block_rows is None:
        target = max(1, 512 // max(W_out, 1))
        block_rows = 1
        for d in range(1, H_out + 1):
            if H_out % d == 0 and d <= target:
                block_rows = d
    TR = max(1, min(int(block_rows), H_out))
    while H_out % TR != 0:          # keep TR a divisor of H_out (no ragged last tile)
        TR -= 1
    n_tiles = H_out // TR
    TR_in = S * (TR - 1) + K        # halo window height in padded coordinates
    row_span = S * (TR - 1) + 1
    col_span = S * (W_out - 1) + 1

    # Wrapper side: single spatial zero-pad (see TODO above); no margin pad, no mask
    # array, no residual pad, no output border compute/slice.
    xp = jnp.pad(x_flat, ((0, 0), (P, P), (P, P), (0, 0))) if P > 0 else x_flat
    w2d = w_taps.reshape(KK * Cin4, Cout4).astype(jnp.float32)

    inputs, in_specs = [], []
    if apply_act:
        inputs += [scale.reshape(1, 1, Cin4).astype(jnp.float32),
                   bias.reshape(1, 1, Cin4).astype(jnp.float32)]
        in_specs += [pl.BlockSpec((1, 1, Cin4), lambda b, t: (0, 0, 0)),
                     pl.BlockSpec((1, 1, Cin4), lambda b, t: (0, 0, 0))]
    inputs += [xp, w2d]
    # Padded image block is constant across the row-tile axis -> DMA'd once per image
    # and kept resident; weights likewise resident.
    in_specs += [pl.BlockSpec((None, Hp, Wp, Cin4), lambda b, t: (b, 0, 0, 0)),
                 pl.BlockSpec((KK * Cin4, Cout4), lambda b, t: (0, 0))]
    if add_residual:
        inputs.append(residual)
        in_specs.append(pl.BlockSpec((None, TR, W_out, Cout4), lambda b, t: (b, t, 0, 0)))

    def kernel(*refs):
        if apply_act:
            scale_ref, bias_ref, x_ref, w_ref = refs[:4]
            rest = refs[4:]
        else:
            x_ref, w_ref = refs[:2]
            rest = refs[2:]
        if add_residual:
            res_ref, o_ref = rest
        else:
            (o_ref,) = rest

        t = pl.program_id(1)
        row0 = pl.multiple_of(t * (S * TR), S * TR)    # first padded input row of tile

        x_win = x_ref[pl.ds(row0, TR_in), :, :].astype(jnp.float32)   # (TR_in, Wp, Cin4)

        if apply_act:
            act = x_win * scale_ref[...] + bias_ref[...]   # folded IQBN affine
            act = act * jax.nn.sigmoid(act)                # QSiLU (sigmoid routes to EUP)
            if P > 0:
                # conv zero-padding must remain zero *after* the affine + SiLU
                r = lax.broadcasted_iota(jnp.int32, (TR_in, Wp, 1), 0) + row0
                c = lax.broadcasted_iota(jnp.int32, (TR_in, Wp, 1), 1)
                valid = (r >= P) & (r < P + H) & (c >= P) & (c < P + W)
                act = jnp.where(valid, act, 0.0)
        else:
            act = x_win

        # im2col: concatenate the K*K taps along the contraction axis so the MXU sees
        # one (TR*W_out, K*K*Cin4) x (K*K*Cin4, Cout4) matmul instead of K*K
        # under-filled Cin4-wide matmuls.  Stride is folded into the gather.
        patches = []
        for dh in range(K):
            for dw in range(K):
                p = act[dh:dh + row_span:S, dw:dw + col_span:S, :]    # (TR, W_out, Cin4)
                patches.append(p.reshape(TR * W_out, Cin4))
        lhs = patches[0] if len(patches) == 1 else jnp.concatenate(patches, axis=-1)
        acc = jnp.dot(lhs, w_ref[...], preferred_element_type=jnp.float32)
        acc = acc.reshape(TR, W_out, Cout4)
        if add_residual:
            acc = acc + res_ref[...].astype(jnp.float32)
        o_ref[...] = acc.astype(o_ref.dtype)

    # VMEM budget (double-buffered blocks + traced values) -> scoped limit w/ headroom.
    itemsize = jnp.dtype(x_flat.dtype).itemsize
    vmem_est = (2 * Hp * Wp * Cin4 * itemsize
                + 2 * KK * Cin4 * Cout4 * 4
                + 4 * TR * W_out * Cout4 * itemsize
                + TR_in * Wp * Cin4 * 4
                + TR * W_out * KK * Cin4 * 4
                + TR * W_out * Cout4 * 4)
    try:
        vmem_cap = pltpu.get_tpu_info().vmem_capacity_bytes
    except Exception:
        vmem_cap = 64 * 1024 * 1024
    vmem_limit = int(min(int(0.9 * vmem_cap), max(32 * 1024 * 1024, 2 * vmem_est)))

    cost = pl.CostEstimate(
        flops=int(2 * B * H_out * W_out * KK * Cin4 * Cout4),
        transcendentals=int(B * n_tiles * TR_in * Wp * Cin4) if apply_act else 0,
        bytes_accessed=int(itemsize * (xp.size + B * H_out * W_out * Cout4
                                       + (residual.size if add_residual else 0))
                           + 4 * w2d.size),
    )

    return pl.pallas_call(
        kernel,
        out_shape=jax.ShapeDtypeStruct((B, H_out, W_out, Cout4), x_flat.dtype),
        grid_spec=pltpu.PrefetchScalarGridSpec(
            num_scalar_prefetch=0,
            grid=(B, n_tiles),
            in_specs=in_specs,
            out_specs=pl.BlockSpec((None, TR, W_out, Cout4), lambda b, t: (b, t, 0, 0)),
        ),
        compiler_params=pltpu.CompilerParams(
            dimension_semantics=("parallel", "parallel"),
            vmem_limit_bytes=vmem_limit,
        ),
        cost_estimate=cost,
    )(*inputs)


# ----------------------------------------------------------------------------
# QuaternionBasicBlock forward
# ----------------------------------------------------------------------------
def quaternion_basic_block(x, params, *, stride=1, block_rows=None):
    B, Cin, Q, H, W = x.shape
    assert Q == 4, "expected quaternion format with 4 components"
    x_flat = _to_flat_nhwc(x)

    if params["w_sc"] is not None:
        identity = _qconv_pallas(x_flat, params["w_sc"], ksize=1, stride=stride,
                                 padding=0, block_rows=block_rows)
    else:
        identity = x_flat

    h = _qconv_pallas(x_flat, params["w1"], ksize=3, stride=stride, padding=1,
                      scale=params["bn1_scale"], bias=params["bn1_bias"],
                      block_rows=block_rows)
    out = _qconv_pallas(h, params["w2"], ksize=3, stride=1, padding=1,
                        scale=params["bn2_scale"], bias=params["bn2_bias"],
                        residual=identity, block_rows=block_rows)
    return _from_flat_nhwc(out)


def init_block_params(key, in_channels, out_channels, stride=1):
    k_bn1, k_bn2, k_w1, k_w2, k_ws = jax.random.split(key, 5)

    def qconv_weight(k, cin, cout, ksize):
        std = (4 * cin * ksize * ksize) ** -0.5
        wq = jax.random.normal(k, (4, cout, cin, ksize, ksize), jnp.float32) * std
        return _hamilton_expand(wq[0], wq[1], wq[2], wq[3])

    def bn_affine(k, c):
        ka, kb = jax.random.split(k)
        scale = 1.0 + 0.1 * jax.random.normal(ka, (4 * c,), jnp.float32)
        bias = 0.1 * jax.random.normal(kb, (4 * c,), jnp.float32)
        return scale, bias

    bn1_scale, bn1_bias = bn_affine(k_bn1, in_channels)
    bn2_scale, bn2_bias = bn_affine(k_bn2, out_channels)
    return {
        "bn1_scale": bn1_scale, "bn1_bias": bn1_bias,
        "w1": qconv_weight(k_w1, in_channels, out_channels, 3),
        "bn2_scale": bn2_scale, "bn2_bias": bn2_bias,
        "w2": qconv_weight(k_w2, out_channels, out_channels, 3),
        "w_sc": (qconv_weight(k_ws, in_channels, out_channels, 1)
                 if (stride != 1 or in_channels != out_channels) else None),
    }


# ----------------------------------------------------------------------------
# Pure-JAX reference (same semantics, via lax.conv on the Hamilton-expanded weights)
# ----------------------------------------------------------------------------
def _block_reference(x, params, stride=1):
    x_flat = _to_flat_nhwc(x)
    silu = lambda v: v * jax.nn.sigmoid(v)

    def conv(v, w_taps, ksize, s, pad):
        w = w_taps.reshape(ksize, ksize, v.shape[-1], w_taps.shape[-1])
        return lax.conv_general_dilated(
            v, w, (s, s), [(pad, pad), (pad, pad)],
            dimension_numbers=("NHWC", "HWIO", "NHWC"))

    if params["w_sc"] is not None:
        identity = conv(x_flat, params["w_sc"], 1, stride, 0)
    else:
        identity = x_flat
    h = silu(x_flat * params["bn1_scale"] + params["bn1_bias"])
    h = conv(h, params["w1"], 3, stride, 1)
    h = silu(h * params["bn2_scale"] + params["bn2_bias"])
    h = conv(h, params["w2"], 3, 1, 1)
    return _from_flat_nhwc(h + identity)


if __name__ == "__main__":
    key = jax.random.PRNGKey(0)
    k_x, k_p1, k_p2 = jax.random.split(key, 3)

    B, C, H, W = 2, 4, 16, 16
    x = jax.random.normal(k_x, (B, C, 4, H, W), jnp.float32)

    fwd = jax.jit(quaternion_basic_block, static_argnames=("stride", "block_rows"))

    # 1) Standard block: stride=1, in==out -> Identity shortcut (2 row tiles per conv).
    params1 = init_block_params(k_p1, C, C, stride=1)
    out1 = fwd(x, params1, stride=1, block_rows=8)
    jax.block_until_ready(out1)
    ref1 = _block_reference(x, params1, stride=1)
    assert out1.shape == (B, C, 4, H, W), out1.shape
    assert jnp.allclose(out1, ref1, atol=1e-3, rtol=1e-3), \
        float(jnp.max(jnp.abs(out1 - ref1)))

    # 2) Downsampling block: stride=2, channel change -> 1x1 QConv shortcut,
    #    stride folded into the kernels (2 row tiles per conv).
    C_out = 8
    params2 = init_block_params(k_p2, C, C_out, stride=2)
    out2 = fwd(x, params2, stride=2, block_rows=4)
    jax.block_until_ready(out2)
    ref2 = _block_reference(x, params2, stride=2)
    assert out2.shape == (B, C_out, 4, H // 2, W // 2), out2.shape
    assert jnp.allclose(out2, ref2, atol=1e-3, rtol=1e-3), \
        float(jnp.max(jnp.abs(out2 - ref2)))

    print("KERNEL_OK")
</pallas_src>

<mosaic_0001>
module attributes {stable_mosaic.version = 11 : i64} {
  func.func @kernel(%arg0: i32, %arg1: i32, %arg2: memref<1x1x16xf32, #tpu.memory_space<vmem>>, %arg3: memref<1x1x16xf32, #tpu.memory_space<vmem>>, %arg4: memref<1x18x18x16xf32, #tpu.memory_space<vmem>>, %arg5: memref<144x16xf32, #tpu.memory_space<vmem>>, %arg6: memref<1x8x16x16xf32, #tpu.memory_space<vmem>>, %arg7: memref<1x8x16x16xf32, #tpu.memory_space<vmem>>) attributes {dimension_semantics = [#tpu.dimension_semantics<parallel>, #tpu.dimension_semantics<parallel>], iteration_bounds = array<i64: 2, 2>, scalar_prefetch = 0 : i64, scratch_operands = 0 : i64, tpu.core_type = #tpu.core_type<tc>, window_params = [{pipeline_mode = #tpu.pipeline_mode<synchronous>, transform_indices = @transform_0, window_bounds = array<i64: 1, 1, 16>}, {pipeline_mode = #tpu.pipeline_mode<synchronous>, transform_indices = @transform_1, window_bounds = array<i64: 1, 1, 16>}, {transform_indices = @transform_2, window_bounds = array<i64: 1, 18, 18, 16>}, {pipeline_mode = #tpu.pipeline_mode<synchronous>, transform_indices = @transform_3, window_bounds = array<i64: 144, 16>}, {transform_indices = @transform_4, window_bounds = array<i64: 1, 8, 16, 16>}, {transform_indices = @transform_5, window_bounds = array<i64: 1, 8, 16, 16>}]} {
    %c8_i32 = arith.constant 8 : i32
    %0 = arith.muli %arg1, %c8_i32 : i32
    %1 = tpu.assume_multiple %0, 8 : i32
    %c0 = arith.constant 0 : index
    %2 = arith.index_cast %1 : i32 to index
    %c0_0 = arith.constant 0 : index
    %c0_1 = arith.constant 0 : index
    %3 = vector.load %arg4[%c0, %2, %c0_0, %c0_1] : memref<1x18x18x16xf32, #tpu.memory_space<vmem>>, vector<1x10x18x16xf32>
    %4 = vector.shape_cast %3 : vector<1x10x18x16xf32> to vector<10x18x16xf32>
    %c0_2 = arith.constant 0 : index
    %c0_3 = arith.constant 0 : index
    %c0_4 = arith.constant 0 : index
    %5 = vector.load %arg2[%c0_2, %c0_3, %c0_4] : memref<1x1x16xf32, #tpu.memory_space<vmem>>, vector<1x1x16xf32>
    %6 = vector.broadcast %5 : vector<1x1x16xf32> to vector<10x18x16xf32>
    %7 = arith.mulf %4, %6 : vector<10x18x16xf32>
    %c0_5 = arith.constant 0 : index
    %c0_6 = arith.constant 0 : index
    %c0_7 = arith.constant 0 : index
    %8 = vector.load %arg3[%c0_5, %c0_6, %c0_7] : memref<1x1x16xf32, #tpu.memory_space<vmem>>, vector<1x1x16xf32>
    %9 = vector.broadcast %8 : vector<1x1x16xf32> to vector<10x18x16xf32>
    %10 = arith.addf %7, %9 : vector<10x18x16xf32>
    %11 = arith.negf %10 : vector<10x18x16xf32>
    %12 = math.exp %11 : vector<10x18x16xf32>
    %cst = arith.constant 1.000000e+00 : f32
    %13 = vector.broadcast %cst : f32 to vector<10x18x16xf32>
    %14 = arith.addf %13, %12 : vector<10x18x16xf32>
    %15 = arith.divf %13, %14 : vector<10x18x16xf32>
    %16 = arith.mulf %10, %15 : vector<10x18x16xf32>
    %17 = tpu.iota {dimensions = array<i32: 0>} : vector<10x18x1xi32>
    %18 = vector.broadcast %1 : i32 to vector<10x18x1xi32>
    %19 = arith.addi %17, %18 : vector<10x18x1xi32>
    %20 = tpu.iota {dimensions = array<i32: 1>} : vector<10x18x1xi32>
    %c1_i32 = arith.constant 1 : i32
    %21 = vector.broadcast %c1_i32 : i32 to vector<10x18x1xi32>
    %22 = arith.cmpi sge, %19, %21 : vector<10x18x1xi32>
    %c17_i32 = arith.constant 17 : i32
    %23 = vector.broadcast %c17_i32 : i32 to vector<10x18x1xi32>
    %24 = arith.cmpi slt, %19, %23 : vector<10x18x1xi32>
    %25 = arith.andi %22, %24 : vector<10x18x1xi1>
    %c1_i32_8 = arith.constant 1 : i32
    %26 = vector.broadcast %c1_i32_8 : i32 to vector<10x18x1xi32>
    %27 = arith.cmpi sge, %20, %26 : vector<10x18x1xi32>
    %28 = arith.andi %25, %27 : vector<10x18x1xi1>
    %c17_i32_9 = arith.constant 17 : i32
    %29 = vector.broadcast %c17_i32_9 : i32 to vector<10x18x1xi32>
    %30 = arith.cmpi slt, %20, %29 : vector<10x18x1xi32>
    %31 = arith.andi %28, %30 : vector<10x18x1xi1>
    %cst_10 = arith.constant 0.000000e+00 : f32
    %32 = vector.shape_cast %31 : vector<10x18x1xi1> to vector<10x18x1xi1>
    %33 = vector.broadcast %32 : vector<10x18x1xi1> to vector<10x18x16xi1>
    %34 = vector.broadcast %cst_10 : f32 to vector<10x18x16xf32>
    %35 = arith.select %33, %16, %34 : vector<10x18x16xi1>, vector<10x18x16xf32>
    %36 = vector.extract_strided_slice %35 {offsets = [0, 0, 0], sizes = [8, 16, 16], strides = [1, 1, 1]} : vector<10x18x16xf32> to vector<8x16x16xf32>
    %37 = vector.shape_cast %36 : vector<8x16x16xf32> to vector<128x16xf32>
    %38 = vector.extract_strided_slice %35 {offsets = [0, 1, 0], sizes = [8, 16, 16], strides = [1, 1, 1]} : vector<10x18x16xf32> to vector<8x16x16xf32>
    %39 = vector.shape_cast %38 : vector<8x16x16xf32> to vector<128x16xf32>
    %40 = vector.extract_strided_slice %35 {offsets = [0, 2, 0], sizes = [8, 16, 16], strides = [1, 1, 1]} : vector<10x18x16xf32> to vector<8x16x16xf32>
    %41 = vector.shape_cast %40 : vector<8x16x16xf32> to vector<128x16xf32>
    %42 = vector.extract_strided_slice %35 {offsets = [1, 0, 0], sizes = [8, 16, 16], strides = [1, 1, 1]} : vector<10x18x16xf32> to vector<8x16x16xf32>
    %43 = vector.shape_cast %42 : vector<8x16x16xf32> to vector<128x16xf32>
    %44 = vector.extract_strided_slice %35 {offsets = [1, 1, 0], sizes = [8, 16, 16], strides = [1, 1, 1]} : vector<10x18x16xf32> to vector<8x16x16xf32>
    %45 = vector.shape_cast %44 : vector<8x16x16xf32> to vector<128x16xf32>
    %46 = vector.extract_strided_slice %35 {offsets = [1, 2, 0], sizes = [8, 16, 16], strides = [1, 1, 1]} : vector<10x18x16xf32> to vector<8x16x16xf32>
    %47 = vector.shape_cast %46 : vector<8x16x16xf32> to vector<128x16xf32>
    %48 = vector.extract_strided_slice %35 {offsets = [2, 0, 0], sizes = [8, 16, 16], strides = [1, 1, 1]} : vector<10x18x16xf32> to vector<8x16x16xf32>
    %49 = vector.shape_cast %48 : vector<8x16x16xf32> to vector<128x16xf32>
    %50 = vector.extract_strided_slice %35 {offsets = [2, 1, 0], sizes = [8, 16, 16], strides = [1, 1, 1]} : vector<10x18x16xf32> to vector<8x16x16xf32>
    %51 = vector.shape_cast %50 : vector<8x16x16xf32> to vector<128x16xf32>
    %52 = vector.extract_strided_slice %35 {offsets = [2, 2, 0], sizes = [8, 16, 16], strides = [1, 1, 1]} : vector<10x18x16xf32> to vector<8x16x16xf32>
    %53 = vector.shape_cast %52 : vector<8x16x16xf32> to vector<128x16xf32>
    %54 = tpu.concatenate %37, %39, %41, %43, %45, %47, %49, %51, %53 in 1 : vector<128x16xf32>, vector<128x16xf32>, vector<128x16xf32>, vector<128x16xf32>, vector<128x16xf32>, vector<128x16xf32>, vector<128x16xf32>, vector<128x16xf32>, vector<128x16xf32> -> vector<128x144xf32>
    %c0_11 = arith.constant 0 : index
    %c0_12 = arith.constant 0 : index
    %55 = vector.load %arg5[%c0_11, %c0_12] : memref<144x16xf32, #tpu.memory_space<vmem>>, vector<144x16xf32>
    %cst_13 = arith.constant dense<0.000000e+00> : vector<128x16xf32>
    %56 = tpu.matmul %54, %55, %cst_13 {dimension_numbers = #tpu.dot_dimension_numbers<[1], [0], [0], [1], [0, 0, 1, 1], [], []>} : vector<128x144xf32>, vector<144x16xf32>, vector<128x16xf32> -> vector<128x16xf32>
    %57 = vector.shape_cast %56 : vector<128x16xf32> to vector<8x16x16xf32>
    %c0_14 = arith.constant 0 : index
    %c0_15 = arith.constant 0 : index
    %c0_16 = arith.constant 0 : index
    %c0_17 = arith.constant 0 : index
    %58 = vector.load %arg6[%c0_14, %c0_15, %c0_16, %c0_17] : memref<1x8x16x16xf32, #tpu.memory_space<vmem>>, vector<1x8x16x16xf32>
    %59 = vector.shape_cast %58 : vector<1x8x16x16xf32> to vector<8x16x16xf32>
    %60 = arith.addf %57, %59 : vector<8x16x16xf32>
    %c0_18 = arith.constant 0 : index
    %c0_19 = arith.constant 0 : index
    %c0_20 = arith.constant 0 : index
    %c0_21 = arith.constant 0 : index
    %61 = vector.load %arg7[%c0_18, %c0_19, %c0_20, %c0_21] : memref<1x8x16x16xf32, #tpu.memory_space<vmem>>, vector<1x8x16x16xf32>
    %62 = vector.shape_cast %61 : vector<1x8x16x16xf32> to vector<8x16x16xf32>
    %63 = vector.shape_cast %60 : vector<8x16x16xf32> to vector<1x8x16x16xf32>
    tpu.vector_store %arg7[%c0_18, %c0_19, %c0_20, %c0_21], %63 {strides = array<i32>} : memref<1x8x16x16xf32, #tpu.memory_space<vmem>>, vector<1x8x16x16xf32>,
    return
  }
  func.func @transform_0(%arg0: i32, %arg1: i32) -> (i32, i32, i32) {
    %c0_i32 = arith.constant 0 : i32
    %c0_i32_0 = arith.constant 0 : i32
    %c0_i32_1 = arith.constant 0 : i32
    %c0_i32_2 = arith.constant 0 : i32
    return %c0_i32, %c0_i32_0, %c0_i32_1 : i32, i32, i32
  }
  func.func @transform_1(%arg0: i32, %arg1: i32) -> (i32, i32, i32) {
    %c0_i32 = arith.constant 0 : i32
    %c0_i32_0 = arith.constant 0 : i32
    %c0_i32_1 = arith.constant 0 : i32
    %c0_i32_2 = arith.constant 0 : i32
    return %c0_i32, %c0_i32_0, %c0_i32_1 : i32, i32, i32
  }
  func.func @transform_2(%arg0: i32, %arg1: i32) -> (i32, i32, i32, i32) {
    %c0_i32 = arith.constant 0 : i32
    %c0_i32_0 = arith.constant 0 : i32
    %c0_i32_1 = arith.constant 0 : i32
    %c0_i32_2 = arith.constant 0 : i32
    return %arg0, %c0_i32, %c0_i32_0, %c0_i32_1 : i32, i32, i32, i32
  }
  func.func @transform_3(%arg0: i32, %arg1: i32) -> (i32, i32) {
    %c0_i32 = arith.constant 0 : i32
    %c0_i32_0 = arith.constant 0 : i32
    %c0_i32_1 = arith.constant 0 : i32
    return %c0_i32, %c0_i32_0 : i32, i32
  }
  func.func @transform_4(%arg0: i32, %arg1: i32) -> (i32, i32, i32, i32) {
    %c0_i32 = arith.constant 0 : i32
    %c0_i32_0 = arith.constant 0 : i32
    %c0_i32_1 = arith.constant 0 : i32
    return %arg0, %arg1, %c0_i32, %c0_i32_0 : i32, i32, i32, i32
  }
  func.func @transform_5(%arg0: i32, %arg1: i32) -> (i32, i32, i32, i32) {
    %c0_i32 = arith.constant 0 : i32
    %c0_i32_0 = arith.constant 0 : i32
    %c0_i32_1 = arith.constant 0 : i32
    return %arg0, %arg1, %c0_i32, %c0_i32_0 : i32, i32, i32, i32
  }
}

module attributes {stable_mosaic.version = 11 : i64} {
  func.func @kernel(%arg0: i32, %arg1: i32, %arg2: memref<1x1x16xf32, #tpu.memory_space<vmem>>, %arg3: memref<1x1x16xf32, #tpu.memory_space<vmem>>, %arg4: memref<1x18x18x16xf32, #tpu.memory_space<vmem>>, %arg5: memref<144x16xf32, #tpu.memory_space<vmem>>, %arg6: memref<1x8x16x16xf32, #tpu.memory_space<vmem>>) attributes {dimension_semantics = [#tpu.dimension_semantics<parallel>, #tpu.dimension_semantics<parallel>], iteration_bounds = array<i64: 2, 2>, scalar_prefetch = 0 : i64, scratch_operands = 0 : i64, tpu.core_type = #tpu.core_type<tc>, window_params = [{pipeline_mode = #tpu.pipeline_mode<synchronous>, transform_indices = @transform_0, window_bounds = array<i64: 1, 1, 16>}, {pipeline_mode = #tpu.pipeline_mode<synchronous>, transform_indices = @transform_1, window_bounds = array<i64: 1, 1, 16>}, {transform_indices = @transform_2, window_bounds = array<i64: 1, 18, 18, 16>}, {pipeline_mode = #tpu.pipeline_mode<synchronous>, transform_indices = @transform_3, window_bounds = array<i64: 144, 16>}, {transform_indices = @transform_4, window_bounds = array<i64: 1, 8, 16, 16>}]} {
    %c8_i32 = arith.constant 8 : i32
    %0 = arith.muli %arg1, %c8_i32 : i32
    %1 = tpu.assume_multiple %0, 8 : i32
    %c0 = arith.constant 0 : index
    %2 = arith.index_cast %1 : i32 to index
    %c0_0 = arith.constant 0 : index
    %c0_1 = arith.constant 0 : index
    %3 = vector.load %arg4[%c0, %2, %c0_0, %c0_1] : memref<1x18x18x16xf32, #tpu.memory_space<vmem>>, vector<1x10x18x16xf32>
    %4 = vector.shape_cast %3 : vector<1x10x18x16xf32> to vector<10x18x16xf32>
    %c0_2 = arith.constant 0 : index
    %c0_3 = arith.constant 0 : index
    %c0_4 = arith.constant 0 : index
    %5 = vector.load %arg2[%c0_2, %c0_3, %c0_4] : memref<1x1x16xf32, #tpu.memory_space<vmem>>, vector<1x1x16xf32>
    %6 = vector.broadcast %5 : vector<1x1x16xf32> to vector<10x18x16xf32>
    %7 = arith.mulf %4, %6 : vector<10x18x16xf32>
    %c0_5 = arith.constant 0 : index
    %c0_6 = arith.constant 0 : index
    %c0_7 = arith.constant 0 : index
    %8 = vector.load %arg3[%c0_5, %c0_6, %c0_7] : memref<1x1x16xf32, #tpu.memory_space<vmem>>, vector<1x1x16xf32>
    %9 = vector.broadcast %8 : vector<1x1x16xf32> to vector<10x18x16xf32>
    %10 = arith.addf %7, %9 : vector<10x18x16xf32>
    %11 = arith.negf %10 : vector<10x18x16xf32>
    %12 = math.exp %11 : vector<10x18x16xf32>
    %cst = arith.constant 1.000000e+00 : f32
    %13 = vector.broadcast %cst : f32 to vector<10x18x16xf32>
    %14 = arith.addf %13, %12 : vector<10x18x16xf32>
    %15 = arith.divf %13, %14 : vector<10x18x16xf32>
    %16 = arith.mulf %10, %15 : vector<10x18x16xf32>
    %17 = tpu.iota {dimensions = array<i32: 0>} : vector<10x18x1xi32>
    %18 = vector.broadcast %1 : i32 to vector<10x18x1xi32>
    %19 = arith.addi %17, %18 : vector<10x18x1xi32>
    %20 = tpu.iota {dimensions = array<i32: 1>} : vector<10x18x1xi32>
    %c1_i32 = arith.constant 1 : i32
    %21 = vector.broadcast %c1_i32 : i32 to vector<10x18x1xi32>
    %22 = arith.cmpi sge, %19, %21 : vector<10x18x1xi32>
    %c17_i32 = arith.constant 17 : i32
    %23 = vector.broadcast %c17_i32 : i32 to vector<10x18x1xi32>
    %24 = arith.cmpi slt, %19, %23 : vector<10x18x1xi32>
    %25 = arith.andi %22, %24 : vector<10x18x1xi1>
    %c1_i32_8 = arith.constant 1 : i32
    %26 = vector.broadcast %c1_i32_8 : i32 to vector<10x18x1xi32>
    %27 = arith.cmpi sge, %20, %26 : vector<10x18x1xi32>
    %28 = arith.andi %25, %27 : vector<10x18x1xi1>
    %c17_i32_9 = arith.constant 17 : i32
    %29 = vector.broadcast %c17_i32_9 : i32 to vector<10x18x1xi32>
    %30 = arith.cmpi slt, %20, %29 : vector<10x18x1xi32>
    %31 = arith.andi %28, %30 : vector<10x18x1xi1>
    %cst_10 = arith.constant 0.000000e+00 : f32
    %32 = vector.shape_cast %31 : vector<10x18x1xi1> to vector<10x18x1xi1>
    %33 = vector.broadcast %32 : vector<10x18x1xi1> to vector<10x18x16xi1>
    %34 = vector.broadcast %cst_10 : f32 to vector<10x18x16xf32>
    %35 = arith.select %33, %16, %34 : vector<10x18x16xi1>, vector<10x18x16xf32>
    %36 = vector.extract_strided_slice %35 {offsets = [0, 0, 0], sizes = [8, 16, 16], strides = [1, 1, 1]} : vector<10x18x16xf32> to vector<8x16x16xf32>
    %37 = vector.shape_cast %36 : vector<8x16x16xf32> to vector<128x16xf32>
    %38 = vector.extract_strided_slice %35 {offsets = [0, 1, 0], sizes = [8, 16, 16], strides = [1, 1, 1]} : vector<10x18x16xf32> to vector<8x16x16xf32>
    %39 = vector.shape_cast %38 : vector<8x16x16xf32> to vector<128x16xf32>
    %40 = vector.extract_strided_slice %35 {offsets = [0, 2, 0], sizes = [8, 16, 16], strides = [1, 1, 1]} : vector<10x18x16xf32> to vector<8x16x16xf32>
    %41 = vector.shape_cast %40 : vector<8x16x16xf32> to vector<128x16xf32>
    %42 = vector.extract_strided_slice %35 {offsets = [1, 0, 0], sizes = [8, 16, 16], strides = [1, 1, 1]} : vector<10x18x16xf32> to vector<8x16x16xf32>
    %43 = vector.shape_cast %42 : vector<8x16x16xf32> to vector<128x16xf32>
    %44 = vector.extract_strided_slice %35 {offsets = [1, 1, 0], sizes = [8, 16, 16], strides = [1, 1, 1]} : vector<10x18x16xf32> to vector<8x16x16xf32>
    %45 = vector.shape_cast %44 : vector<8x16x16xf32> to vector<128x16xf32>
    %46 = vector.extract_strided_slice %35 {offsets = [1, 2, 0], sizes = [8, 16, 16], strides = [1, 1, 1]} : vector<10x18x16xf32> to vector<8x16x16xf32>
    %47 = vector.shape_cast %46 : vector<8x16x16xf32> to vector<128x16xf32>
    %48 = vector.extract_strided_slice %35 {offsets = [2, 0, 0], sizes = [8, 16, 16], strides = [1, 1, 1]} : vector<10x18x16xf32> to vector<8x16x16xf32>
    %49 = vector.shape_cast %48 : vector<8x16x16xf32> to vector<128x16xf32>
    %50 = vector.extract_strided_slice %35 {offsets = [2, 1, 0], sizes = [8, 16, 16], strides = [1, 1, 1]} : vector<10x18x16xf32> to vector<8x16x16xf32>
    %51 = vector.shape_cast %50 : vector<8x16x16xf32> to vector<128x16xf32>
    %52 = vector.extract_strided_slice %35 {offsets = [2, 2, 0], sizes = [8, 16, 16], strides = [1, 1, 1]} : vector<10x18x16xf32> to vector<8x16x16xf32>
    %53 = vector.shape_cast %52 : vector<8x16x16xf32> to vector<128x16xf32>
    %54 = tpu.concatenate %37, %39, %41, %43, %45, %47, %49, %51, %53 in 1 : vector<128x16xf32>, vector<128x16xf32>, vector<128x16xf32>, vector<128x16xf32>, vector<128x16xf32>, vector<128x16xf32>, vector<128x16xf32>, vector<128x16xf32>, vector<128x16xf32> -> vector<128x144xf32>
    %c0_11 = arith.constant 0 : index
    %c0_12 = arith.constant 0 : index
    %55 = vector.load %arg5[%c0_11, %c0_12] : memref<144x16xf32, #tpu.memory_space<vmem>>, vector<144x16xf32>
    %cst_13 = arith.constant dense<0.000000e+00> : vector<128x16xf32>
    %56 = tpu.matmul %54, %55, %cst_13 {dimension_numbers = #tpu.dot_dimension_numbers<[1], [0], [0], [1], [0, 0, 1, 1], [], []>} : vector<128x144xf32>, vector<144x16xf32>, vector<128x16xf32> -> vector<128x16xf32>
    %57 = vector.shape_cast %56 : vector<128x16xf32> to vector<8x16x16xf32>
    %c0_14 = arith.constant 0 : index
    %c0_15 = arith.constant 0 : index
    %c0_16 = arith.constant 0 : index
    %c0_17 = arith.constant 0 : index
    %58 = vector.load %arg6[%c0_14, %c0_15, %c0_16, %c0_17] : memref<1x8x16x16xf32, #tpu.memory_space<vmem>>, vector<1x8x16x16xf32>
    %59 = vector.shape_cast %58 : vector<1x8x16x16xf32> to vector<8x16x16xf32>
    %60 = vector.shape_cast %57 : vector<8x16x16xf32> to vector<1x8x16x16xf32>
    tpu.vector_store %arg6[%c0_14, %c0_15, %c0_16, %c0_17], %60 {strides = array<i32>} : memref<1x8x16x16xf32, #tpu.memory_space<vmem>>, vector<1x8x16x16xf32>,
    return
  }
  func.func @transform_0(%arg0: i32, %arg1: i32) -> (i32, i32, i32) {
    %c0_i32 = arith.constant 0 : i32
    %c0_i32_0 = arith.constant 0 : i32
    %c0_i32_1 = arith.constant 0 : i32
    %c0_i32_2 = arith.constant 0 : i32
    return %c0_i32, %c0_i32_0, %c0_i32_1 : i32, i32, i32
  }
  func.func @transform_1(%arg0: i32, %arg1: i32) -> (i32, i32, i32) {
    %c0_i32 = arith.constant 0 : i32
    %c0_i32_0 = arith.constant 0 : i32
    %c0_i32_1 = arith.constant 0 : i32
    %c0_i32_2 = arith.constant 0 : i32
    return %c0_i32, %c0_i32_0, %c0_i32_1 : i32, i32, i32
  }
  func.func @transform_2(%arg0: i32, %arg1: i32) -> (i32, i32, i32, i32) {
    %c0_i32 = arith.constant 0 : i32
    %c0_i32_0 = arith.constant 0 : i32
    %c0_i32_1 = arith.constant 0 : i32
    %c0_i32_2 = arith.constant 0 : i32
    return %arg0, %c0_i32, %c0_i32_0, %c0_i32_1 : i32, i32, i32, i32
  }
  func.func @transform_3(%arg0: i32, %arg1: i32) -> (i32, i32) {
    %c0_i32 = arith.constant 0 : i32
    %c0_i32_0 = arith.constant 0 : i32
    %c0_i32_1 = arith.constant 0 : i32
    return %c0_i32, %c0_i32_0 : i32, i32
  }
  func.func @transform_4(%arg0: i32, %arg1: i32) -> (i32, i32, i32, i32) {
    %c0_i32 = arith.constant 0 : i32
    %c0_i32_0 = arith.constant 0 : i32
    %c0_i32_1 = arith.constant 0 : i32
    return %arg0, %arg1, %c0_i32, %c0_i32_0 : i32, i32, i32, i32
  }
}

</mosaic_0001>

<llo_original>
// kernel: quaternion_basic_block.2
$region0: #{quaternion_basic_block.2}
  #allocation0 [shape = 'u32[]', space=smem, size = 0x4, offset = 0x4, fixed_abs, tag = 'smem constant byte address 0x4 - core index']
  #allocation1 [shape = 'u32[144,128]{1,0:T(1,128)}', space=vmem, size = 0x12000, scoped, tag = 'internal scratch']
  %s0 = inlined_call_operand.vmem [shape: f32[1,1,16], index: 0, kind: input, shape index: {}]
  %s1 = inlined_call_operand.vmem [shape: f32[1,1,16], index: 1, kind: input, shape index: {}]
  %s2 = inlined_call_operand.vmem [shape: f32[2,18,18,16], index: 2, kind: input, shape index: {}]
  %s3 = inlined_call_operand.vmem [shape: f32[144,16], index: 3, kind: input, shape index: {}]
  %s4 = inlined_call_operand.vmem [shape: f32[2,16,16,16], index: 4, kind: output, shape index: {}]
  %s5 = sld [smem:[#allocation0]]
  $region49: #{quaternion_basic_block.2} parent=0
    _
  %s7 = ssub.s32 1, %s5
  %s8 = scalar_select 0, %s7, %s5
  loop: start=0, step=1, limit=6
  $region2: #{quaternion_basic_block.2} parent=0 // loop_pre_header
    _
  $region3: #{quaternion_basic_block.2} parent=0 // loop_header
    %s10 = sphi 0, %s14
    %p11 = scmp.ge.s32.totalorder %s10, 6
    %s17 = sphi 0, %s29
    %s18 = sphi 0, %s25
    %s19 = sphi 0, %s17
    %s20 = sphi 0, %s18
    %s21 = sphi 0, %s19
    %s22 = sphi 0, %s20
    %s30 = sphi 0, %s30
    %s32 = sphi 0, %s30
    %s33 = sphi 0, %s32
    %s47 = sphi 0, %s33
    %s51 = sphi 0, %s51
    %s53 = sphi 0, %s51
    %s54 = sphi 0, %s53
    %s68 = sphi 0, %s54
    %s74 = sphi 0, %s76
    %s77 = sphi 0, %s74
    %s78 = sphi 0, %s77
    %s94 = sphi 0, %s78
    %s98 = sphi 0, %s98
    %s100 = sphi 0, %s98
    %s101 = sphi 0, %s100
    %s115 = sphi 0, %s101
    %s123 = sphi 0, %s125
    %s126 = sphi 0, %s123
    %s127 = sphi 0, %s126
    %s143 = sphi 0, %s127
  $region4: #{quaternion_basic_block.2} parent=0 // loop_header_branch
    %13 = sbr.rel (%p11) target = $region8
  $region5: #{quaternion_basic_block.2} parent=0 // loop_body
    %s15 = ssub.s32 %s10, 1
    %s16 = ssub.s32 %s10, 2
    %s23 = sadd.s32 1, %s18
    %p24 = scmp.ge.s32.totalorder %s23, 2
    %s25 = scalar_select %p24, 0, %s23
    %s26 = sadd.s32 1, %s17
    %s27 = scalar_select %p24, %s26, %s17
    %p28 = scmp.ge.s32.totalorder %s27, 2
    %s29 = scalar_select %p28, 0, %s27
    %s31 = sadd.s32 %s30, 1
    %p34 = scmp.eq.s32.totalorder %s10, 3
    %p35 = scmp.ne.s32.totalorder %s30, %s32
    %p36 = scmp.eq.s32.totalorder %s10, 0
    %p37 = por %p35, %p36
    %p38 = scmp.ne.s32.totalorder %s30, %s32
    %p39 = scmp.eq.s32.totalorder %s15, 3
    %p40 = por %p38, %p39
    %p41 = scmp.ne.s32.totalorder %s32, %s33
    %p42 = scmp.eq.s32.totalorder %s15, 0
    %p43 = por %p41, %p42
    %p44 = scmp.ne.s32.totalorder %s32, %s33
    %p45 = scmp.eq.s32.totalorder %s16, 3
    %p46 = por %p44, %p45
    %p48 = scmp.ne.s32.totalorder %s33, %s47
    %p49 = scmp.eq.s32.totalorder %s16, 0
    %p50 = por %p48, %p49
    %s52 = sadd.s32 %s51, 1
    %p55 = scmp.eq.s32.totalorder %s10, 3
    %p56 = scmp.ne.s32.totalorder %s51, %s53
    %p57 = scmp.eq.s32.totalorder %s10, 0
    %p58 = por %p56, %p57
    %p59 = scmp.ne.s32.totalorder %s51, %s53
    %p60 = scmp.eq.s32.totalorder %s15, 3
    %p61 = por %p59, %p60
    %p62 = scmp.ne.s32.totalorder %s53, %s54
    %p63 = scmp.eq.s32.totalorder %s15, 0
    %p64 = por %p62, %p63
    %p65 = scmp.ne.s32.totalorder %s53, %s54
    %p66 = scmp.eq.s32.totalorder %s16, 3
    %p67 = por %p65, %p66
    %p69 = scmp.ne.s32.totalorder %s54, %s68
    %p70 = scmp.eq.s32.totalorder %s16, 0
    %p71 = por %p69, %p70
    %s72 = ssub.s32 %s17, %s29
    %p73 = scmp.eq.s32.totalorder %s72, 0
    %s75 = sadd.s32 %s74, 1
    %s76 = scalar_select %p73, %s74, %s75
    %p79 = pneg %p73
    %p80 = scmp.eq.s32.totalorder %s10, 3
    %p81 = por %p79, %p80
    %p82 = scmp.ne.s32.totalorder %s74, %s77
    %p83 = scmp.eq.s32.totalorder %s10, 0
    %p84 = por %p82, %p83
    %p85 = scmp.ne.s32.totalorder %s74, %s77
    %p86 = scmp.eq.s32.totalorder %s15, 3
    %p87 = por %p85, %p86
    %p88 = scmp.ne.s32.totalorder %s77, %s78
    %p89 = scmp.eq.s32.totalorder %s15, 0
    %p90 = por %p88, %p89
    %p91 = scmp.ne.s32.totalorder %s77, %s78
    %p92 = scmp.eq.s32.totalorder %s16, 3
    %p93 = por %p91, %p92
    %p95 = scmp.ne.s32.totalorder %s78, %s94
    %p96 = scmp.eq.s32.totalorder %s16, 0
    %p97 = por %p95, %p96
    %s99 = sadd.s32 %s98, 1
    %p102 = scmp.eq.s32.totalorder %s10, 3
    %p103 = scmp.ne.s32.totalorder %s98, %s100
    %p104 = scmp.eq.s32.totalorder %s10, 0
    %p105 = por %p103, %p104
    %p106 = scmp.ne.s32.totalorder %s98, %s100
    %p107 = scmp.eq.s32.totalorder %s15, 3
    %p108 = por %p106, %p107
    %p109 = scmp.ne.s32.totalorder %s100, %s101
    %p110 = scmp.eq.s32.totalorder %s15, 0
    %p111 = por %p109, %p110
    %p112 = scmp.ne.s32.totalorder %s100, %s101
    %p113 = scmp.eq.s32.totalorder %s16, 3
    %p114 = por %p112, %p113
    %p116 = scmp.ne.s32.totalorder %s101, %s115
    %p117 = scmp.eq.s32.totalorder %s16, 0
    %p118 = por %p116, %p117
    %s119 = ssub.s32 %s17, %s29
    %s120 = ssub.s32 %s18, %s25
    %s121 = sor.u32 %s119, %s120
    %p122 = scmp.eq.s32.totalorder %s121, 0
    %s124 = sadd.s32 %s123, 1
    %s125 = scalar_select %p122, %s123, %s124
    %p128 = pneg %p122
    %p129 = scmp.eq.s32.totalorder %s10, 3
    %p130 = por %p128, %p129
    %p131 = scmp.ne.s32.totalorder %s123, %s126
    %p132 = scmp.eq.s32.totalorder %s10, 0
    %p133 = por %p131, %p132
    %p134 = scmp.ne.s32.totalorder %s123, %s126
    %p135 = scmp.eq.s32.totalorder %s15, 3
    %p136 = por %p134, %p135
    %p137 = scmp.ne.s32.totalorder %s126, %s127
    %p138 = scmp.eq.s32.totalorder %s15, 0
    %p139 = por %p137, %p138
    %p140 = scmp.ne.s32.totalorder %s126, %s127
    %p141 = scmp.eq.s32.totalorder %s16, 3
    %p142 = por %p140, %p141
    %p144 = scmp.ne.s32.totalorder %s127, %s143
    %p145 = scmp.eq.s32.totalorder %s16, 0
    %p146 = por %p144, %p145
    %p147 = scmp.le.s32.totalorder 1, %s10
    %p148 = scmp.lt.s32.totalorder %s10, 5
    %p149 = pnand %p147, %p148
    %p150 = pneg %p149
    // Predicated region
    $region9: #{quaternion_basic_block.2} parent=5 // pred_check
      _
    $region10: #{quaternion_basic_block.2} parent=5 // pred_check_branch
      %152 = sbr.rel (%p149) target = $region12
    $region11: #{quaternion_basic_block.2} parent=5 // pred_region
      %s153 = ssub.s32 %s10, 1
      // Predicated region
      $region13: #{quaternion_basic_block.2} parent=11 // pred_check
        %p154 = pneg %p43
      $region14: #{quaternion_basic_block.2} parent=11 // pred_check_branch
        %156 = sbr.rel (%p154) target = $region16
      $region15: #{quaternion_basic_block.2} parent=11 // pred_region
        _
      $region16: #{quaternion_basic_block.2} parent=11 // pred_fallthru
        _
      // Predicated region
      $region17: #{quaternion_basic_block.2} parent=11 // pred_check
        %p157 = pneg %p64
      $region18: #{quaternion_basic_block.2} parent=11 // pred_check_branch
        %159 = sbr.rel (%p157) target = $region20
      $region19: #{quaternion_basic_block.2} parent=11 // pred_region
        _
      $region20: #{quaternion_basic_block.2} parent=11 // pred_fallthru
        _
      // Predicated region
      $region21: #{quaternion_basic_block.2} parent=11 // pred_check
        %p160 = pneg %p111
      $region22: #{quaternion_basic_block.2} parent=11 // pred_check_branch
        %162 = sbr.rel (%p160) target = $region24
      $region23: #{quaternion_basic_block.2} parent=11 // pred_region
        _
      $region24: #{quaternion_basic_block.2} parent=11 // pred_fallthru
        _
    $region12: #{quaternion_basic_block.2} parent=5 // pred_fallthru
      _
    %p163 = scmp.lt.s32.totalorder %s10, 4
    // Predicated region
    $region25: #{quaternion_basic_block.2} parent=5 // pred_check
      %p164 = pneg %p163
    $region26: #{quaternion_basic_block.2} parent=5 // pred_check_branch
      %166 = sbr.rel (%p164) target = $region28
    $region27: #{quaternion_basic_block.2} parent=5 // pred_region
      // Predicated region
      $region29: #{quaternion_basic_block.2} parent=27 // pred_check
        %p167 = pneg %p84
      $region30: #{quaternion_basic_block.2} parent=27 // pred_check_branch
        %169 = sbr.rel (%p167) target = $region32
      $region31: #{quaternion_basic_block.2} parent=27 // pred_region
        %p170 = scmp.lt.s32.totalorder %s17, 1
        %s171 = scalar_select %p170, %s17, 1
        %s172 = smul.addr %s171, 54
        %s173 = smul.addr %s172, 8
        %s174 = scalar_lea.vmem %s2, %s173
      $region32: #{quaternion_basic_block.2} parent=27 // pred_fallthru
        _
    $region28: #{quaternion_basic_block.2} parent=5 // pred_fallthru
      _
    %p175 = scmp.le.s32.totalorder 1, %s10
    %p176 = scmp.lt.s32.totalorder %s10, 5
    %p177 = pnand %p175, %p176
    %p178 = pneg %p177
    // Predicated region
    $region33: #{quaternion_basic_block.2} parent=5 // pred_check
      _
    $region34: #{quaternion_basic_block.2} parent=5 // pred_check_branch
      %180 = sbr.rel (%p177) target = $region36
    $region35: #{quaternion_basic_block.2} parent=5 // pred_region
      %s181 = ssub.s32 %s10, 1
      %p182 = pneg %p43
      %p183 = pneg %p40
      %p184 = pneg %p64
      %p185 = pneg %p61
      %p186 = scmp.lt.s32.totalorder %s19, 1
      %s187 = scalar_select %p186, %s19, 1
      %s188 = smul.addr %s187, 54
      %s189 = smul.addr %s188, 8
      %s190 = scalar_lea.vmem %s2, %s189
      %p191 = pneg %p90
      %p192 = pneg %p87
      %p193 = pneg %p111
      %p194 = pneg %p108
      %p195 = pneg %p139
      %p196 = pneg %p136
      %s197 = smul.u32 8, %s20
      %p198 = scmp.lt.s32.totalorder %s19, 1
      %s199 = scalar_select %p198, %s19, 1
      %p200 = scmp.lt.s32.totalorder %s197, 15
      %s201 = scalar_select %p200, %s197, 15
      %s202 = smul.addr %s201, 2
      %s203 = smul.addr %s199, 32
      %s204 = sadd.s32 %s202, %s203
      %s205 = smul.addr %s204, 8
      %s206 = scalar_lea.vmem %s4, %s205
      %p207 = scmp.lt.s32.totalorder %s19, 1
      %s208 = scalar_select %p207, %s19, 1
      %s209 = smul.addr %s208, 54
      %s210 = smul.addr %s209, 8
      %s211 = scalar_lea.vmem %s2, %s210
      %s212 = smul.u32 8, %s20
      %p213 = scmp.lt.s32.totalorder %s19, 1
      %s214 = scalar_select %p213, %s19, 1
      %p215 = scmp.lt.s32.totalorder %s212, 15
      %s216 = scalar_select %p215, %s212, 15
      %s217 = smul.addr %s216, 2
      %s218 = smul.addr %s214, 32
      %s219 = sadd.s32 %s217, %s218
      %s220 = smul.addr %s219, 8
      %s221 = scalar_lea.vmem %s4, %s220
      %s222 = smul.u32 8, %s20
      %s223 = smul.u32 %s20, 8
      %s224 = smul.u32 %s223, 24
      %s225 = scalar_lea.vmem %s211, %s224
      %v226 = vld [vmem:[%s225] sm:$0xff]
      %v227 = vld [vmem:[%s225 + $0x8] sm:$0xff]
      %v228 = vld [vmem:[%s225 + $0x10] sm:$0x3]
      %v229 = vld [vmem:[%s225 + $0x18] sm:$0xff]
      %v230 = vld [vmem:[%s225 + $0x20] sm:$0xff]
      %v231 = vld [vmem:[%s225 + $0x28] sm:$0x3]
      %v232 = vld [vmem:[%s225 + $0x30] sm:$0xff]
      %v233 = vld [vmem:[%s225 + $0x38] sm:$0xff]
      %v234 = vld [vmem:[%s225 + $0x40] sm:$0x3]
      %v235 = vld [vmem:[%s225 + $0x48] sm:$0xff]
      %v236 = vld [vmem:[%s225 + $0x50] sm:$0xff]
      %v237 = vld [vmem:[%s225 + $0x58] sm:$0x3]
      %v238 = vld [vmem:[%s225 + $0x60] sm:$0xff]
      %v239 = vld [vmem:[%s225 + $0x68] sm:$0xff]
      %v240 = vld [vmem:[%s225 + $0x70] sm:$0x3]
      %v241 = vld [vmem:[%s225 + $0x78] sm:$0xff]
      %v242 = vld [vmem:[%s225 + $0x80] sm:$0xff]
      %v243 = vld [vmem:[%s225 + $0x88] sm:$0x3]
      %v244 = vld [vmem:[%s225 + $0x90] sm:$0xff]
      %v245 = vld [vmem:[%s225 + $0x98] sm:$0xff]
      %v246 = vld [vmem:[%s225 + $0xa0] sm:$0x3]
      %v247 = vld [vmem:[%s225 + $0xa8] sm:$0xff]
      %v248 = vld [vmem:[%s225 + $0xb0] sm:$0xff]
      %v249 = vld [vmem:[%s225 + $0xb8] sm:$0x3]
      %v250 = vld [vmem:[%s225 + $0xc0] sm:$0xff]
      %v251 = vld [vmem:[%s225 + $0xc8] sm:$0xff]
      %v252 = vld [vmem:[%s225 + $0xd0] sm:$0x3]
      %v253 = vld [vmem:[%s225 + $0xd8] sm:$0xff]
      %v254 = vld [vmem:[%s225 + $0xe0] sm:$0xff]
      %v255 = vld [vmem:[%s225 + $0xe8] sm:$0x3]
      %v256 = vld [vmem:[%s0] sm:$0x1]
      %v258 = vlaneseq
      %v259 = vshrl.u32 %v258, 7
      %v260 = vsub.s32 0, %v259
      %v261 = vrot.slane %v256, %v260
      %v263 = vmul.f32 %v226, %v261
      %v264 = vmul.f32 %v227, %v261
      %v265 = vmul.f32 %v228, %v261
      %v266 = vmul.f32 %v229, %v261
      %v267 = vmul.f32 %v230, %v261
      %v268 = vmul.f32 %v231, %v261
      %v269 = vmul.f32 %v232, %v261
      %v270 = vmul.f32 %v233, %v261
      %v271 = vmul.f32 %v234, %v261
      %v272 = vmul.f32 %v235, %v261
      %v273 = vmul.f32 %v236, %v261
      %v274 = vmul.f32 %v237, %v261
      %v275 = vmul.f32 %v238, %v261
      %v276 = vmul.f32 %v239, %v261
      %v277 = vmul.f32 %v240, %v261
      %v278 = vmul.f32 %v241, %v261
      %v279 = vmul.f32 %v242, %v261
      %v280 = vmul.f32 %v243, %v261
      %v281 = vmul.f32 %v244, %v261
      %v282 = vmul.f32 %v245, %v261
      %v283 = vmul.f32 %v246, %v261
      %v284 = vmul.f32 %v247, %v261
      %v285 = vmul.f32 %v248, %v261
      %v286 = vmul.f32 %v249, %v261
      %v287 = vmul.f32 %v250, %v261
      %v288 = vmul.f32 %v251, %v261
      %v289 = vmul.f32 %v252, %v261
      %v290 = vmul.f32 %v253, %v261
      %v291 = vmul.f32 %v254, %v261
      %v292 = vmul.f32 %v255, %v261
      %v293 = vld [vmem:[%s1] sm:$0x1]
      %v295 = vlaneseq
      %v296 = vshrl.u32 %v295, 7
      %v297 = vsub.s32 0, %v296
      %v298 = vrot.slane %v293, %v297
      %v300 = vadd.f32 %v263, %v298
      %v301 = vadd.f32 %v264, %v298
      %v302 = vadd.f32 %v265, %v298
      %v303 = vadd.f32 %v266, %v298
      %v304 = vadd.f32 %v267, %v298
      %v305 = vadd.f32 %v268, %v298
      %v306 = vadd.f32 %v269, %v298
      %v307 = vadd.f32 %v270, %v298
      %v308 = vadd.f32 %v271, %v298
      %v309 = vadd.f32 %v272, %v298
      %v310 = vadd.f32 %v273, %v298
      %v311 = vadd.f32 %v274, %v298
      %v312 = vadd.f32 %v275, %v298
      %v313 = vadd.f32 %v276, %v298
      %v314 = vadd.f32 %v277, %v298
      %v315 = vadd.f32 %v278, %v298
      %v316 = vadd.f32 %v279, %v298
      %v317 = vadd.f32 %v280, %v298
      %v318 = vadd.f32 %v281, %v298
      %v319 = vadd.f32 %v282, %v298
      %v320 = vadd.f32 %v283, %v298
      %v321 = vadd.f32 %v284, %v298
      %v322 = vadd.f32 %v285, %v298
      %v323 = vadd.f32 %v286, %v298
      %v324 = vadd.f32 %v287, %v298
      %v325 = vadd.f32 %v288, %v298
      %v326 = vadd.f32 %v289, %v298
      %v327 = vadd.f32 %v290, %v298
      %v328 = vadd.f32 %v291, %v298
      %v329 = vadd.f32 %v292, %v298
      %v330 = vxor.u32 %v300, 2147483648
      %v331 = vxor.u32 %v301, 2147483648
      %v332 = vxor.u32 %v302, 2147483648
      %v333 = vxor.u32 %v303, 2147483648
      %v334 = vxor.u32 %v304, 2147483648
      %v335 = vxor.u32 %v305, 2147483648
      %v336 = vxor.u32 %v306, 2147483648
      %v337 = vxor.u32 %v307, 2147483648
      %v338 = vxor.u32 %v308, 2147483648
      %v339 = vxor.u32 %v309, 2147483648
      %v340 = vxor.u32 %v310, 2147483648
      %v341 = vxor.u32 %v311, 2147483648
      %v342 = vxor.u32 %v312, 2147483648
      %v343 = vxor.u32 %v313, 2147483648
      %v344 = vxor.u32 %v314, 2147483648
      %v345 = vxor.u32 %v315, 2147483648
      %v346 = vxor.u32 %v316, 2147483648
      %v347 = vxor.u32 %v317, 2147483648
      %v348 = vxor.u32 %v318, 2147483648
      %v349 = vxor.u32 %v319, 2147483648
      %v350 = vxor.u32 %v320, 2147483648
      %v351 = vxor.u32 %v321, 2147483648
      %v352 = vxor.u32 %v322, 2147483648
      %v353 = vxor.u32 %v323, 2147483648
      %v354 = vxor.u32 %v324, 2147483648
      %v355 = vxor.u32 %v325, 2147483648
      %v356 = vxor.u32 %v326, 2147483648
      %v357 = vxor.u32 %v327, 2147483648
      %v358 = vxor.u32 %v328, 2147483648
      %v359 = vxor.u32 %v329, 2147483648
      %v360 = vmul.f32 %v330, 1.442695
      %v361 = vpow.pop %v360
      %v362 = vmul.f32 %v331, 1.442695
      %v363 = vpow.pop %v362
      %v364 = vmul.f32 %v332, 1.442695
      %v365 = vpow.pop %v364
      %v366 = vmul.f32 %v333, 1.442695
      %v367 = vpow.pop %v366
      %v368 = vmul.f32 %v334, 1.442695
      %v369 = vpow.pop %v368
      %v370 = vmul.f32 %v335, 1.442695
      %v371 = vpow.pop %v370
      %v372 = vmul.f32 %v336, 1.442695
      %v373 = vpow.pop %v372
      %v374 = vmul.f32 %v337, 1.442695
      %v375 = vpow.pop %v374
      %v376 = vmul.f32 %v338, 1.442695
      %v377 = vpow.pop %v376
      %v378 = vmul.f32 %v339, 1.442695
      %v379 = vpow.pop %v378
      %v380 = vmul.f32 %v340, 1.442695
      %v381 = vpow.pop %v380
      %v382 = vmul.f32 %v341, 1.442695
      %v383 = vpow.pop %v382
      %v384 = vmul.f32 %v342, 1.442695
      %v385 = vpow.pop %v384
      %v386 = vmul.f32 %v343, 1.442695
      %v387 = vpow.pop %v386
      %v388 = vmul.f32 %v344, 1.442695
      %v389 = vpow.pop %v388
      %v390 = vmul.f32 %v345, 1.442695
      %v391 = vpow.pop %v390
      %v392 = vmul.f32 %v346, 1.442695
      %v393 = vpow.pop %v392
      %v394 = vmul.f32 %v347, 1.442695
      %v395 = vpow.pop %v394
      %v396 = vmul.f32 %v348, 1.442695
      %v397 = vpow.pop %v396
      %v398 = vmul.f32 %v349, 1.442695
      %v399 = vpow.pop %v398
      %v400 = vmul.f32 %v350, 1.442695
      %v401 = vpow.pop %v400
      %v402 = vmul.f32 %v351, 1.442695
      %v403 = vpow.pop %v402
      %v404 = vmul.f32 %v352, 1.442695
      %v405 = vpow.pop %v404
      %v406 = vmul.f32 %v353, 1.442695
      %v407 = vpow.pop %v406
      %v408 = vmul.f32 %v354, 1.442695
      %v409 = vpow.pop %v408
      %v410 = vmul.f32 %v355, 1.442695
      %v411 = vpow.pop %v410
      %v412 = vmul.f32 %v356, 1.442695
      %v413 = vpow.pop %v412
      %v414 = vmul.f32 %v357, 1.442695
      %v415 = vpow.pop %v414
      %v416 = vmul.f32 %v358, 1.442695
      %v417 = vpow.pop %v416
      %v418 = vmul.f32 %v359, 1.442695
      %v419 = vpow.pop %v418
      %v420 = vadd.f32 %v361, 1.0
      %v421 = vadd.f32 %v363, 1.0
      %v422 = vadd.f32 %v365, 1.0
      %v423 = vadd.f32 %v367, 1.0
      %v424 = vadd.f32 %v369, 1.0
      %v425 = vadd.f32 %v371, 1.0
      %v426 = vadd.f32 %v373, 1.0
      %v427 = vadd.f32 %v375, 1.0
      %v428 = vadd.f32 %v377, 1.0
      %v429 = vadd.f32 %v379, 1.0
      %v430 = vadd.f32 %v381, 1.0
      %v431 = vadd.f32 %v383, 1.0
      %v432 = vadd.f32 %v385, 1.0
      %v433 = vadd.f32 %v387, 1.0
      %v434 = vadd.f32 %v389, 1.0
      %v435 = vadd.f32 %v391, 1.0
      %v436 = vadd.f32 %v393, 1.0
      %v437 = vadd.f32 %v395, 1.0
      %v438 = vadd.f32 %v397, 1.0
      %v439 = vadd.f32 %v399, 1.0
      %v440 = vadd.f32 %v401, 1.0
      %v441 = vadd.f32 %v403, 1.0
      %v442 = vadd.f32 %v405, 1.0
      %v443 = vadd.f32 %v407, 1.0
      %v444 = vadd.f32 %v409, 1.0
      %v445 = vadd.f32 %v411, 1.0
      %v446 = vadd.f32 %v413, 1.0
      %v447 = vadd.f32 %v415, 1.0
      %v448 = vadd.f32 %v417, 1.0
      %v449 = vadd.f32 %v419, 1.0
      %v450 = vrcp.pop %v420
      %v451 = vmul.f32 1.0, %v450
      %v452 = vrcp.pop %v421
      %v453 = vmul.f32 1.0, %v452
      %v454 = vrcp.pop %v422
      %v455 = vmul.f32 1.0, %v454
      %v456 = vrcp.pop %v423
      %v457 = vmul.f32 1.0, %v456
      %v458 = vrcp.pop %v424
      %v459 = vmul.f32 1.0, %v458
      %v460 = vrcp.pop %v425
      %v461 = vmul.f32 1.0, %v460
      %v462 = vrcp.pop %v426
      %v463 = vmul.f32 1.0, %v462
      %v464 = vrcp.pop %v427
      %v465 = vmul.f32 1.0, %v464
      %v466 = vrcp.pop %v428
      %v467 = vmul.f32 1.0, %v466
      %v468 = vrcp.pop %v429
      %v469 = vmul.f32 1.0, %v468
      %v470 = vrcp.pop %v430
      %v471 = vmul.f32 1.0, %v470
      %v472 = vrcp.pop %v431
      %v473 = vmul.f32 1.0, %v472
      %v474 = vrcp.pop %v432
      %v475 = vmul.f32 1.0, %v474
      %v476 = vrcp.pop %v433
      %v477 = vmul.f32 1.0, %v476
      %v478 = vrcp.pop %v434
      %v479 = vmul.f32 1.0, %v478
      %v480 = vrcp.pop %v435
      %v481 = vmul.f32 1.0, %v480
      %v482 = vrcp.pop %v436
      %v483 = vmul.f32 1.0, %v482
      %v484 = vrcp.pop %v437
      %v485 = vmul.f32 1.0, %v484
      %v486 = vrcp.pop %v438
      %v487 = vmul.f32 1.0, %v486
      %v488 = vrcp.pop %v439
      %v489 = vmul.f32 1.0, %v488
      %v490 = vrcp.pop %v440
      %v491 = vmul.f32 1.0, %v490
      %v492 = vrcp.pop %v441
      %v493 = vmul.f32 1.0, %v492
      %v494 = vrcp.pop %v442
      %v495 = vmul.f32 1.0, %v494
      %v496 = vrcp.pop %v443
      %v497 = vmul.f32 1.0, %v496
      %v498 = vrcp.pop %v444
      %v499 = vmul.f32 1.0, %v498
      %v500 = vrcp.pop %v445
      %v501 = vmul.f32 1.0, %v500
      %v502 = vrcp.pop %v446
      %v503 = vmul.f32 1.0, %v502
      %v504 = vrcp.pop %v447
      %v505 = vmul.f32 1.0, %v504
      %v506 = vrcp.pop %v448
      %v507 = vmul.f32 1.0, %v506
      %v508 = vrcp.pop %v449
      %v509 = vmul.f32 1.0, %v508
      %v510 = vmul.f32 %v300, %v451
      %v511 = vmul.f32 %v301, %v453
      %v512 = vmul.f32 %v302, %v455
      %v513 = vmul.f32 %v303, %v457
      %v514 = vmul.f32 %v304, %v459
      %v515 = vmul.f32 %v305, %v461
      %v516 = vmul.f32 %v306, %v463
      %v517 = vmul.f32 %v307, %v465
      %v518 = vmul.f32 %v308, %v467
      %v519 = vmul.f32 %v309, %v469
      %v520 = vmul.f32 %v310, %v471
      %v521 = vmul.f32 %v311, %v473
      %v522 = vmul.f32 %v312, %v475
      %v523 = vmul.f32 %v313, %v477
      %v524 = vmul.f32 %v314, %v479
      %v525 = vmul.f32 %v315, %v481
      %v526 = vmul.f32 %v316, %v483
      %v527 = vmul.f32 %v317, %v485
      %v528 = vmul.f32 %v318, %v487
      %v529 = vmul.f32 %v319, %v489
      %v530 = vmul.f32 %v320, %v491
      %v531 = vmul.f32 %v321, %v493
      %v532 = vmul.f32 %v322, %v495
      %v533 = vmul.f32 %v323, %v497
      %v534 = vmul.f32 %v324, %v499
      %v535 = vmul.f32 %v325, %v501
      %v536 = vmul.f32 %v326, %v503
      %v537 = vmul.f32 %v327, %v505
      %v538 = vmul.f32 %v328, %v507
      %v539 = vmul.f32 %v329, %v509
      %v540 = vstv %s223
      %v541 = vadd.s32 %v540, 1
      %v542 = vadd.s32 %v540, 2
      %v543 = vadd.s32 %v540, 3
      %v544 = vadd.s32 %v540, 4
      %v545 = vadd.s32 %v540, 5
      %v546 = vadd.s32 %v540, 6
      %v547 = vadd.s32 %v540, 7
      %v548 = vadd.s32 %v540, 8
      %v549 = vadd.s32 %v540, 9
      %v550 = vlaneseq
      %v551 = vshrl.u32 %v550, 7
      %v552 = vadd.s32 %v551, 8
      %v553 = vadd.s32 %v551, 16
      %vm554 = vcmp.ge.s32.totalorder %v540, 1
      %vm555 = vcmp.ge.s32.totalorder %v541, 1
      %vm556 = vcmp.ge.s32.totalorder %v542, 1
      %vm557 = vcmp.ge.s32.totalorder %v543, 1
      %vm558 = vcmp.ge.s32.totalorder %v544, 1
      %vm559 = vcmp.ge.s32.totalorder %v545, 1
      %vm560 = vcmp.ge.s32.totalorder %v546, 1
      %vm561 = vcmp.ge.s32.totalorder %v547, 1
      %vm562 = vcmp.ge.s32.totalorder %v548, 1
      %vm563 = vcmp.ge.s32.totalorder %v549, 1
      %vm564 = vcmp.lt.s32.totalorder %v540, 17
      %vm565 = vcmp.lt.s32.totalorder %v541, 17
      %vm566 = vcmp.lt.s32.totalorder %v542, 17
      %vm567 = vcmp.lt.s32.totalorder %v543, 17
      %vm568 = vcmp.lt.s32.totalorder %v544, 17
      %vm569 = vcmp.lt.s32.totalorder %v545, 17
      %vm570 = vcmp.lt.s32.totalorder %v546, 17
      %vm571 = vcmp.lt.s32.totalorder %v547, 17
      %vm572 = vcmp.lt.s32.totalorder %v548, 17
      %vm573 = vcmp.lt.s32.totalorder %v549, 17
      %vm574 = vmand %vm554, %vm564
      %vm575 = vmand %vm555, %vm565
      %vm576 = vmand %vm556, %vm566
      %vm577 = vmand %vm557, %vm567
      %vm578 = vmand %vm558, %vm568
      %vm579 = vmand %vm559, %vm569
      %vm580 = vmand %vm560, %vm570
      %vm581 = vmand %vm561, %vm571
      %vm582 = vmand %vm562, %vm572
      %vm583 = vmand %vm563, %vm573
      %vm584 = vcmp.ge.s32.totalorder %v551, 1
      %vm585 = vcmp.ge.s32.totalorder %v552, 1
      %vm586 = vcmp.ge.s32.totalorder %v553, 1
      %vm587 = vmand %vm574, %vm584
      %vm588 = vmand %vm574, %vm585
      %vm589 = vmand %vm574, %vm586
      %vm590 = vmand %vm575, %vm584
      %vm591 = vmand %vm575, %vm585
      %vm592 = vmand %vm575, %vm586
      %vm593 = vmand %vm576, %vm584
      %vm594 = vmand %vm576, %vm585
      %vm595 = vmand %vm576, %vm586
      %vm596 = vmand %vm577, %vm584
      %vm597 = vmand %vm577, %vm585
      %vm598 = vmand %vm577, %vm586
      %vm599 = vmand %vm578, %vm584
      %vm600 = vmand %vm578, %vm585
      %vm601 = vmand %vm578, %vm586
      %vm602 = vmand %vm579, %vm584
      %vm603 = vmand %vm579, %vm585
      %vm604 = vmand %vm579, %vm586
      %vm605 = vmand %vm580, %vm584
      %vm606 = vmand %vm580, %vm585
      %vm607 = vmand %vm580, %vm586
      %vm608 = vmand %vm581, %vm584
      %vm609 = vmand %vm581, %vm585
      %vm610 = vmand %vm581, %vm586
      %vm611 = vmand %vm582, %vm584
      %vm612 = vmand %vm582, %vm585
      %vm613 = vmand %vm582, %vm586
      %vm614 = vmand %vm583, %vm584
      %vm615 = vmand %vm583, %vm585
      %vm616 = vmand %vm583, %vm586
      %vm617 = vcmp.lt.s32.totalorder %v551, 17
      %vm618 = vcmp.lt.s32.totalorder %v552, 17
      %vm619 = vcmp.lt.s32.totalorder %v553, 17
      %vm620 = vmand %vm587, %vm617
      %vm621 = vmand %vm588, %vm618
      %vm622 = vmand %vm589, %vm619
      %vm623 = vmand %vm590, %vm617
      %vm624 = vmand %vm591, %vm618
      %vm625 = vmand %vm592, %vm619
      %vm626 = vmand %vm593, %vm617
      %vm627 = vmand %vm594, %vm618
      %vm628 = vmand %vm595, %vm619
      %vm629 = vmand %vm596, %vm617
      %vm630 = vmand %vm597, %vm618
      %vm631 = vmand %vm598, %vm619
      %vm632 = vmand %vm599, %vm617
      %vm633 = vmand %vm600, %vm618
      %vm634 = vmand %vm601, %vm619
      %vm635 = vmand %vm602, %vm617
      %vm636 = vmand %vm603, %vm618
      %vm637 = vmand %vm604, %vm619
      %vm638 = vmand %vm605, %vm617
      %vm639 = vmand %vm606, %vm618
      %vm640 = vmand %vm607, %vm619
      %vm641 = vmand %vm608, %vm617
      %vm642 = vmand %vm609, %vm618
      %vm643 = vmand %vm610, %vm619
      %vm644 = vmand %vm611, %vm617
      %vm645 = vmand %vm612, %vm618
      %vm646 = vmand %vm613, %vm619
      %vm647 = vmand %vm614, %vm617
      %vm648 = vmand %vm615, %vm618
      %vm649 = vmand %vm616, %vm619
      %v650 = vsel %vm620, 1, 0
      %v651 = vsel %vm621, 1, 0
      %v652 = vsel %vm622, 1, 0
      %v653 = vsel %vm623, 1, 0
      %v654 = vsel %vm624, 1, 0
      %v655 = vsel %vm625, 1, 0
      %v656 = vsel %vm626, 1, 0
      %v657 = vsel %vm627, 1, 0
      %v658 = vsel %vm628, 1, 0
      %v659 = vsel %vm629, 1, 0
      %v660 = vsel %vm630, 1, 0
      %v661 = vsel %vm631, 1, 0
      %v662 = vsel %vm632, 1, 0
      %v663 = vsel %vm633, 1, 0
      %v664 = vsel %vm634, 1, 0
      %v665 = vsel %vm635, 1, 0
      %v666 = vsel %vm636, 1, 0
      %v667 = vsel %vm637, 1, 0
      %v668 = vsel %vm638, 1, 0
      %v669 = vsel %vm639, 1, 0
      %v670 = vsel %vm640, 1, 0
      %v671 = vsel %vm641, 1, 0
      %v672 = vsel %vm642, 1, 0
      %v673 = vsel %vm643, 1, 0
      %v674 = vsel %vm644, 1, 0
      %v675 = vsel %vm645, 1, 0
      %v676 = vsel %vm646, 1, 0
      %v677 = vsel %vm647, 1, 0
      %v678 = vsel %vm648, 1, 0
      %v679 = vsel %vm649, 1, 0
      %vm680 = vcmp.eq.s32.totalorder %v650, 1
      %vm681 = vcmp.eq.s32.totalorder %v651, 1
      %vm682 = vcmp.eq.s32.totalorder %v652, 1
      %vm683 = vcmp.eq.s32.totalorder %v653, 1
      %vm684 = vcmp.eq.s32.totalorder %v654, 1
      %vm685 = vcmp.eq.s32.totalorder %v655, 1
      %vm686 = vcmp.eq.s32.totalorder %v656, 1
      %vm687 = vcmp.eq.s32.totalorder %v657, 1
      %vm688 = vcmp.eq.s32.totalorder %v658, 1
      %vm689 = vcmp.eq.s32.totalorder %v659, 1
      %vm690 = vcmp.eq.s32.totalorder %v660, 1
      %vm691 = vcmp.eq.s32.totalorder %v661, 1
      %vm692 = vcmp.eq.s32.totalorder %v662, 1
      %vm693 = vcmp.eq.s32.totalorder %v663, 1
      %vm694 = vcmp.eq.s32.totalorder %v664, 1
      %vm695 = vcmp.eq.s32.totalorder %v665, 1
      %vm696 = vcmp.eq.s32.totalorder %v666, 1
      %vm697 = vcmp.eq.s32.totalorder %v667, 1
      %vm698 = vcmp.eq.s32.totalorder %v668, 1
      %vm699 = vcmp.eq.s32.totalorder %v669, 1
      %vm700 = vcmp.eq.s32.totalorder %v670, 1
      %vm701 = vcmp.eq.s32.totalorder %v671, 1
      %vm702 = vcmp.eq.s32.totalorder %v672, 1
      %vm703 = vcmp.eq.s32.totalorder %v673, 1
      %vm704 = vcmp.eq.s32.totalorder %v674, 1
      %vm705 = vcmp.eq.s32.totalorder %v675, 1
      %vm706 = vcmp.eq.s32.totalorder %v676, 1
      %vm707 = vcmp.eq.s32.totalorder %v677, 1
      %vm708 = vcmp.eq.s32.totalorder %v678, 1
      %vm709 = vcmp.eq.s32.totalorder %v679, 1
      %v710 = vsel %vm680, %v510, 0.0
      %v711 = vsel %vm681, %v511, 0.0
      %v712 = vsel %vm682, %v512, 0.0
      %v713 = vsel %vm683, %v513, 0.0
      %v714 = vsel %vm684, %v514, 0.0
      %v715 = vsel %vm685, %v515, 0.0
      %v716 = vsel %vm686, %v516, 0.0
      %v717 = vsel %vm687, %v517, 0.0
      %v718 = vsel %vm688, %v518, 0.0
      %v719 = vsel %vm689, %v519, 0.0
      %v720 = vsel %vm690, %v520, 0.0
      %v721 = vsel %vm691, %v521, 0.0
      %v722 = vsel %vm692, %v522, 0.0
      %v723 = vsel %vm693, %v523, 0.0
      %v724 = vsel %vm694, %v524, 0.0
      %v725 = vsel %vm695, %v525, 0.0
      %v726 = vsel %vm696, %v526, 0.0
      %v727 = vsel %vm697, %v527, 0.0
      %v728 = vsel %vm698, %v528, 0.0
      %v729 = vsel %vm699, %v529, 0.0
      %v730 = vsel %vm700, %v530, 0.0
      %v731 = vsel %vm701, %v531, 0.0
      %v732 = vsel %vm702, %v532, 0.0
      %v733 = vsel %vm703, %v533, 0.0
      %v734 = vsel %vm704, %v534, 0.0
      %v735 = vsel %vm705, %v535, 0.0
      %v736 = vsel %vm706, %v536, 0.0
      %v737 = vsel %vm707, %v537, 0.0
      %v738 = vsel %vm708, %v538, 0.0
      %v739 = vsel %vm709, %v539, 0.0
      %vm764 = vcmask 1046528
      %v765 = vrot.slane %v710, 1
      %v766 = vrot.slane %v711, 1
      %v767 = vsel %vm764, %v765, %v766
      %v768 = vrot.slane %v712, 1
      %v769 = vsel %vm764, %v766, %v768
      %v770 = vrot.slane %v713, 1
      %v771 = vrot.slane %v714, 1
      %v772 = vsel %vm764, %v770, %v771
      %v773 = vrot.slane %v715, 1
      %v774 = vsel %vm764, %v771, %v773
      %v775 = vrot.slane %v716, 1
      %v776 = vrot.slane %v717, 1
      %v777 = vsel %vm764, %v775, %v776
      %v778 = vrot.slane %v718, 1
      %v779 = vsel %vm764, %v776, %v778
      %v780 = vrot.slane %v719, 1
      %v781 = vrot.slane %v720, 1
      %v782 = vsel %vm764, %v780, %v781
      %v783 = vrot.slane %v721, 1
      %v784 = vsel %vm764, %v781, %v783
      %v785 = vrot.slane %v722, 1
      %v786 = vrot.slane %v723, 1
      %v787 = vsel %vm764, %v785, %v786
      %v788 = vrot.slane %v724, 1
      %v789 = vsel %vm764, %v786, %v788
      %v790 = vrot.slane %v725, 1
      %v791 = vrot.slane %v726, 1
      %v792 = vsel %vm764, %v790, %v791
      %v793 = vrot.slane %v727, 1
      %v794 = vsel %vm764, %v791, %v793
      %v795 = vrot.slane %v728, 1
      %v796 = vrot.slane %v729, 1
      %v797 = vsel %vm764, %v795, %v796
      %v798 = vrot.slane %v730, 1
      %v799 = vsel %vm764, %v796, %v798
      %v800 = vrot.slane %v731, 1
      %v801 = vrot.slane %v732, 1
      %v802 = vsel %vm764, %v800, %v801
      %v803 = vrot.slane %v733, 1
      %v804 = vsel %vm764, %v801, %v803
      %vm805 = vcmask 1045504
      %v806 = vrot.slane %v710, 2
      %v807 = vrot.slane %v711, 2
      %v808 = vsel %vm805, %v806, %v807
      %v809 = vrot.slane %v712, 2
      %v810 = vsel %vm805, %v807, %v809
      %v811 = vrot.slane %v713, 2
      %v812 = vrot.slane %v714, 2
      %v813 = vsel %vm805, %v811, %v812
      %v814 = vrot.slane %v715, 2
      %v815 = vsel %vm805, %v812, %v814
      %v816 = vrot.slane %v716, 2
      %v817 = vrot.slane %v717, 2
      %v818 = vsel %vm805, %v816, %v817
      %v819 = vrot.slane %v718, 2
      %v820 = vsel %vm805, %v817, %v819
      %v821 = vrot.slane %v719, 2
      %v822 = vrot.slane %v720, 2
      %v823 = vsel %vm805, %v821, %v822
      %v824 = vrot.slane %v721, 2
      %v825 = vsel %vm805, %v822, %v824
      %v826 = vrot.slane %v722, 2
      %v827 = vrot.slane %v723, 2
      %v828 = vsel %vm805, %v826, %v827
      %v829 = vrot.slane %v724, 2
      %v830 = vsel %vm805, %v827, %v829
      %v831 = vrot.slane %v725, 2
      %v832 = vrot.slane %v726, 2
      %v833 = vsel %vm805, %v831, %v832
      %v834 = vrot.slane %v727, 2
      %v835 = vsel %vm805, %v832, %v834
      %v836 = vrot.slane %v728, 2
      %v837 = vrot.slane %v729, 2
      %v838 = vsel %vm805, %v836, %v837
      %v839 = vrot.slane %v730, 2
      %v840 = vsel %vm805, %v837, %v839
      %v841 = vrot.slane %v731, 2
      %v842 = vrot.slane %v732, 2
      %v843 = vsel %vm805, %v841, %v842
      %v844 = vrot.slane %v733, 2
      %v845 = vsel %vm805, %v842, %v844
      %v849 = vrot.slane %v734, 1
      %v850 = vrot.slane %v735, 1
      %v851 = vsel %vm764, %v849, %v850
      %v852 = vrot.slane %v736, 1
      %v853 = vsel %vm764, %v850, %v852
      %v854 = vrot.slane %v734, 2
      %v855 = vrot.slane %v735, 2
      %v856 = vsel %vm805, %v854, %v855
      %v857 = vrot.slane %v736, 2
      %v858 = vsel %vm805, %v855, %v857
      %v862 = vrot.slane %v737, 1
      %v863 = vrot.slane %v738, 1
      %v864 = vsel %vm764, %v862, %v863
      %v865 = vrot.slane %v739, 1
      %v866 = vsel %vm764, %v863, %v865
      %v867 = vrot.slane %v737, 2
      %v868 = vrot.slane %v738, 2
      %v869 = vsel %vm805, %v867, %v868
      %v870 = vrot.slane %v739, 2
      %v871 = vsel %vm805, %v868, %v870
      %872 = vrot.lane.b32.xlu0 %v767, 16
      %v873 = vpop.permute.xlu0 %872
      %874 = vrot.lane.b32.xlu0 %v769, 16
      %v875 = vpop.permute.xlu0 %874
      %876 = vrot.lane.b32.xlu0 %v772, 16
      %v877 = vpop.permute.xlu0 %876
      %878 = vrot.lane.b32.xlu0 %v774, 16
      %v879 = vpop.permute.xlu0 %878
      %880 = vrot.lane.b32.xlu0 %v777, 16
      %v881 = vpop.permute.xlu0 %880
      %882 = vrot.lane.b32.xlu0 %v779, 16
      %v883 = vpop.permute.xlu0 %882
      %884 = vrot.lane.b32.xlu0 %v782, 16
      %v885 = vpop.permute.xlu0 %884
      %886 = vrot.lane.b32.xlu0 %v784, 16
      %v887 = vpop.permute.xlu0 %886
      %888 = vrot.lane.b32.xlu0 %v787, 16
      %v889 = vpop.permute.xlu0 %888
      %890 = vrot.lane.b32.xlu0 %v789, 16
      %v891 = vpop.permute.xlu0 %890
      %892 = vrot.lane.b32.xlu0 %v792, 16
      %v893 = vpop.permute.xlu0 %892
      %894 = vrot.lane.b32.xlu0 %v794, 16
      %v895 = vpop.permute.xlu0 %894
      %896 = vrot.lane.b32.xlu0 %v797, 16
      %v897 = vpop.permute.xlu0 %896
      %898 = vrot.lane.b32.xlu0 %v799, 16
      %v899 = vpop.permute.xlu0 %898
      %900 = vrot.lane.b32.xlu0 %v802, 16
      %v901 = vpop.permute.xlu0 %900
      %902 = vrot.lane.b32.xlu0 %v804, 16
      %v903 = vpop.permute.xlu0 %902
      %920 = vrot.lane.b32.xlu0 %v808, 32
      %v921 = vpop.permute.xlu0 %920
      %922 = vrot.lane.b32.xlu0 %v810, 32
      %v923 = vpop.permute.xlu0 %922
      %924 = vrot.lane.b32.xlu0 %v813, 32
      %v925 = vpop.permute.xlu0 %924
      %926 = vrot.lane.b32.xlu0 %v815, 32
      %v927 = vpop.permute.xlu0 %926
      %928 = vrot.lane.b32.xlu0 %v818, 32
      %v929 = vpop.permute.xlu0 %928
      %930 = vrot.lane.b32.xlu0 %v820, 32
      %v931 = vpop.permute.xlu0 %930
      %932 = vrot.lane.b32.xlu0 %v823, 32
      %v933 = vpop.permute.xlu0 %932
      %934 = vrot.lane.b32.xlu0 %v825, 32
      %v935 = vpop.permute.xlu0 %934
      %936 = vrot.lane.b32.xlu0 %v828, 32
      %v937 = vpop.permute.xlu0 %936
      %938 = vrot.lane.b32.xlu0 %v830, 32
      %v939 = vpop.permute.xlu0 %938
      %940 = vrot.lane.b32.xlu0 %v833, 32
      %v941 = vpop.permute.xlu0 %940
      %942 = vrot.lane.b32.xlu0 %v835, 32
      %v943 = vpop.permute.xlu0 %942
      %944 = vrot.lane.b32.xlu0 %v838, 32
      %v945 = vpop.permute.xlu0 %944
      %946 = vrot.lane.b32.xlu0 %v840, 32
      %v947 = vpop.permute.xlu0 %946
      %948 = vrot.lane.b32.xlu0 %v843, 32
      %v949 = vpop.permute.xlu0 %948
      %950 = vrot.lane.b32.xlu0 %v845, 32
      %v951 = vpop.permute.xlu0 %950
      %968 = vrot.lane.b32.xlu0 %v713, 48
      %v969 = vpop.permute.xlu0 %968
      %970 = vrot.lane.b32.xlu0 %v714, 48
      %v971 = vpop.permute.xlu0 %970
      %972 = vrot.lane.b32.xlu0 %v716, 48
      %v973 = vpop.permute.xlu0 %972
      %974 = vrot.lane.b32.xlu0 %v717, 48
      %v975 = vpop.permute.xlu0 %974
      %976 = vrot.lane.b32.xlu0 %v719, 48
      %v977 = vpop.permute.xlu0 %976
      %978 = vrot.lane.b32.xlu0 %v720, 48
      %v979 = vpop.permute.xlu0 %978
      %980 = vrot.lane.b32.xlu0 %v722, 48
      %v981 = vpop.permute.xlu0 %980
      %982 = vrot.lane.b32.xlu0 %v723, 48
      %v983 = vpop.permute.xlu0 %982
      %984 = vrot.lane.b32.xlu0 %v725, 48
      %v985 = vpop.permute.xlu0 %984
      %986 = vrot.lane.b32.xlu0 %v726, 48
      %v987 = vpop.permute.xlu0 %986
      %988 = vrot.lane.b32.xlu0 %v728, 48
      %v989 = vpop.permute.xlu0 %988
      %990 = vrot.lane.b32.xlu0 %v729, 48
      %v991 = vpop.permute.xlu0 %990
      %992 = vrot.lane.b32.xlu0 %v731, 48
      %v993 = vpop.permute.xlu0 %992
      %994 = vrot.lane.b32.xlu0 %v732, 48
      %v995 = vpop.permute.xlu0 %994
      %996 = vrot.lane.b32.xlu0 %v734, 48
      %v997 = vpop.permute.xlu0 %996
      %998 = vrot.lane.b32.xlu0 %v735, 48
      %v999 = vpop.permute.xlu0 %998
      %1016 = vrot.lane.b32.xlu0 %v772, 64
      %v1017 = vpop.permute.xlu0 %1016
      %1018 = vrot.lane.b32.xlu0 %v774, 64
      %v1019 = vpop.permute.xlu0 %1018
      %1020 = vrot.lane.b32.xlu0 %v777, 64
      %v1021 = vpop.permute.xlu0 %1020
      %1022 = vrot.lane.b32.xlu0 %v779, 64
      %v1023 = vpop.permute.xlu0 %1022
      %1024 = vrot.lane.b32.xlu0 %v782, 64
      %v1025 = vpop.permute.xlu0 %1024
      %1026 = vrot.lane.b32.xlu0 %v784, 64
      %v1027 = vpop.permute.xlu0 %1026
      %1028 = vrot.lane.b32.xlu0 %v787, 64
      %v1029 = vpop.permute.xlu0 %1028
      %1030 = vrot.lane.b32.xlu0 %v789, 64
      %v1031 = vpop.permute.xlu0 %1030
      %1032 = vrot.lane.b32.xlu0 %v792, 64
      %v1033 = vpop.permute.xlu0 %1032
      %1034 = vrot.lane.b32.xlu0 %v794, 64
      %v1035 = vpop.permute.xlu0 %1034
      %1036 = vrot.lane.b32.xlu0 %v797, 64
      %v1037 = vpop.permute.xlu0 %1036
      %1038 = vrot.lane.b32.xlu0 %v799, 64
      %v1039 = vpop.permute.xlu0 %1038
      %1040 = vrot.lane.b32.xlu0 %v802, 64
      %v1041 = vpop.permute.xlu0 %1040
      %1042 = vrot.lane.b32.xlu0 %v804, 64
      %v1043 = vpop.permute.xlu0 %1042
      %1044 = vrot.lane.b32.xlu0 %v851, 64
      %v1045 = vpop.permute.xlu0 %1044
      %1046 = vrot.lane.b32.xlu0 %v853, 64
      %v1047 = vpop.permute.xlu0 %1046
      %1064 = vrot.lane.b32.xlu0 %v813, 80
      %v1065 = vpop.permute.xlu0 %1064
      %1066 = vrot.lane.b32.xlu0 %v815, 80
      %v1067 = vpop.permute.xlu0 %1066
      %1068 = vrot.lane.b32.xlu0 %v818, 80
      %v1069 = vpop.permute.xlu0 %1068
      %1070 = vrot.lane.b32.xlu0 %v820, 80
      %v1071 = vpop.permute.xlu0 %1070
      %1072 = vrot.lane.b32.xlu0 %v823, 80
      %v1073 = vpop.permute.xlu0 %1072
      %1074 = vrot.lane.b32.xlu0 %v825, 80
      %v1075 = vpop.permute.xlu0 %1074
      %1076 = vrot.lane.b32.xlu0 %v828, 80
      %v1077 = vpop.permute.xlu0 %1076
      %1078 = vrot.lane.b32.xlu0 %v830, 80
      %v1079 = vpop.permute.xlu0 %1078
      %1080 = vrot.lane.b32.xlu0 %v833, 80
      %v1081 = vpop.permute.xlu0 %1080
      %1082 = vrot.lane.b32.xlu0 %v835, 80
      %v1083 = vpop.permute.xlu0 %1082
      %1084 = vrot.lane.b32.xlu0 %v838, 80
      %v1085 = vpop.permute.xlu0 %1084
      %1086 = vrot.lane.b32.xlu0 %v840, 80
      %v1087 = vpop.permute.xlu0 %1086
      %1088 = vrot.lane.b32.xlu0 %v843, 80
      %v1089 = vpop.permute.xlu0 %1088
      %1090 = vrot.lane.b32.xlu0 %v845, 80
      %v1091 = vpop.permute.xlu0 %1090
      %1092 = vrot.lane.b32.xlu0 %v856, 80
      %v1093 = vpop.permute.xlu0 %1092
      %1094 = vrot.lane.b32.xlu0 %v858, 80
      %v1095 = vpop.permute.xlu0 %1094
      %1112 = vrot.lane.b32.xlu0 %v716, 96
      %v1113 = vpop.permute.xlu0 %1112
      %1114 = vrot.lane.b32.xlu0 %v717, 96
      %v1115 = vpop.permute.xlu0 %1114
      %1116 = vrot.lane.b32.xlu0 %v719, 96
      %v1117 = vpop.permute.xlu0 %1116
      %1118 = vrot.lane.b32.xlu0 %v720, 96
      %v1119 = vpop.permute.xlu0 %1118
      %1120 = vrot.lane.b32.xlu0 %v722, 96
      %v1121 = vpop.permute.xlu0 %1120
      %1122 = vrot.lane.b32.xlu0 %v723, 96
      %v1123 = vpop.permute.xlu0 %1122
      %1124 = vrot.lane.b32.xlu0 %v725, 96
      %v1125 = vpop.permute.xlu0 %1124
      %1126 = vrot.lane.b32.xlu0 %v726, 96
      %v1127 = vpop.permute.xlu0 %1126
      %1128 = vrot.lane.b32.xlu0 %v728, 96
      %v1129 = vpop.permute.xlu0 %1128
      %1130 = vrot.lane.b32.xlu0 %v729, 96
      %v1131 = vpop.permute.xlu0 %1130
      %1132 = vrot.lane.b32.xlu0 %v731, 96
      %v1133 = vpop.permute.xlu0 %1132
      %1134 = vrot.lane.b32.xlu0 %v732, 96
      %v1135 = vpop.permute.xlu0 %1134
      %1136 = vrot.lane.b32.xlu0 %v734, 96
      %v1137 = vpop.permute.xlu0 %1136
      %1138 = vrot.lane.b32.xlu0 %v735, 96
      %v1139 = vpop.permute.xlu0 %1138
      %1140 = vrot.lane.b32.xlu0 %v737, 96
      %v1141 = vpop.permute.xlu0 %1140
      %1142 = vrot.lane.b32.xlu0 %v738, 96
      %v1143 = vpop.permute.xlu0 %1142
      %1160 = vrot.lane.b32.xlu0 %v777, 112
      %v1161 = vpop.permute.xlu0 %1160
      %1162 = vrot.lane.b32.xlu0 %v779, 112
      %v1163 = vpop.permute.xlu0 %1162
      %1164 = vrot.lane.b32.xlu0 %v782, 112
      %v1165 = vpop.permute.xlu0 %1164
      %1166 = vrot.lane.b32.xlu0 %v784, 112
      %v1167 = vpop.permute.xlu0 %1166
      %1168 = vrot.lane.b32.xlu0 %v787, 112
      %v1169 = vpop.permute.xlu0 %1168
      %1170 = vrot.lane.b32.xlu0 %v789, 112
      %v1171 = vpop.permute.xlu0 %1170
      %1172 = vrot.lane.b32.xlu0 %v792, 112
      %v1173 = vpop.permute.xlu0 %1172
      %1174 = vrot.lane.b32.xlu0 %v794, 112
      %v1175 = vpop.permute.xlu0 %1174
      %1176 = vrot.lane.b32.xlu0 %v797, 112
      %v1177 = vpop.permute.xlu0 %1176
      %1178 = vrot.lane.b32.xlu0 %v799, 112
      %v1179 = vpop.permute.xlu0 %1178
      %1180 = vrot.lane.b32.xlu0 %v802, 112
      %v1181 = vpop.permute.xlu0 %1180
      %1182 = vrot.lane.b32.xlu0 %v804, 112
      %v1183 = vpop.permute.xlu0 %1182
      %1184 = vrot.lane.b32.xlu0 %v851, 112
      %v1185 = vpop.permute.xlu0 %1184
      %1186 = vrot.lane.b32.xlu0 %v853, 112
      %v1187 = vpop.permute.xlu0 %1186
      %1188 = vrot.lane.b32.xlu0 %v864, 112
      %v1189 = vpop.permute.xlu0 %1188
      %1190 = vrot.lane.b32.xlu0 %v866, 112
      %v1191 = vpop.permute.xlu0 %1190
      %vm1208 = vcmask 130048
      %v1209 = vsel %vm1208, %v710, %v873
      %v1210 = vsel %vm1208, %v711, %v875
      %v1211 = vsel %vm1208, %v713, %v877
      %v1212 = vsel %vm1208, %v714, %v879
      %v1213 = vsel %vm1208, %v716, %v881
      %v1214 = vsel %vm1208, %v717, %v883
      %v1215 = vsel %vm1208, %v719, %v885
      %v1216 = vsel %vm1208, %v720, %v887
      %v1217 = vsel %vm1208, %v722, %v889
      %v1218 = vsel %vm1208, %v723, %v891
      %v1219 = vsel %vm1208, %v725, %v893
      %v1220 = vsel %vm1208, %v726, %v895
      %v1221 = vsel %vm1208, %v728, %v897
      %v1222 = vsel %vm1208, %v729, %v899
      %v1223 = vsel %vm1208, %v731, %v901
      %v1224 = vsel %vm1208, %v732, %v903
      %vm1225 = vcmask 261120
      %v1226 = vsel %vm1225, %v1209, %v921
      %v1227 = vsel %vm1225, %v1210, %v923
      %v1228 = vsel %vm1225, %v1211, %v925
      %v1229 = vsel %vm1225, %v1212, %v927
      %v1230 = vsel %vm1225, %v1213, %v929
      %v1231 = vsel %vm1225, %v1214, %v931
      %v1232 = vsel %vm1225, %v1215, %v933
      %v1233 = vsel %vm1225, %v1216, %v935
      %v1234 = vsel %vm1225, %v1217, %v937
      %v1235 = vsel %vm1225, %v1218, %v939
      %v1236 = vsel %vm1225, %v1219, %v941
      %v1237 = vsel %vm1225, %v1220, %v943
      %v1238 = vsel %vm1225, %v1221, %v945
      %v1239 = vsel %vm1225, %v1222, %v947
      %v1240 = vsel %vm1225, %v1223, %v949
      %v1241 = vsel %vm1225, %v1224, %v951
      %vm1242 = vcmask 392192
      %v1243 = vsel %vm1242, %v1226, %v969
      %v1244 = vsel %vm1242, %v1227, %v971
      %v1245 = vsel %vm1242, %v1228, %v973
      %v1246 = vsel %vm1242, %v1229, %v975
      %v1247 = vsel %vm1242, %v1230, %v977
      %v1248 = vsel %vm1242, %v1231, %v979
      %v1249 = vsel %vm1242, %v1232, %v981
      %v1250 = vsel %vm1242, %v1233, %v983
      %v1251 = vsel %vm1242, %v1234, %v985
      %v1252 = vsel %vm1242, %v1235, %v987
      %v1253 = vsel %vm1242, %v1236, %v989
      %v1254 = vsel %vm1242, %v1237, %v991
      %v1255 = vsel %vm1242, %v1238, %v993
      %v1256 = vsel %vm1242, %v1239, %v995
      %v1257 = vsel %vm1242, %v1240, %v997
      %v1258 = vsel %vm1242, %v1241, %v999
      %vm1259 = vcmask 523264
      %v1260 = vsel %vm1259, %v1243, %v1017
      %v1261 = vsel %vm1259, %v1244, %v1019
      %v1262 = vsel %vm1259, %v1245, %v1021
      %v1263 = vsel %vm1259, %v1246, %v1023
      %v1264 = vsel %vm1259, %v1247, %v1025
      %v1265 = vsel %vm1259, %v1248, %v1027
      %v1266 = vsel %vm1259, %v1249, %v1029
      %v1267 = vsel %vm1259, %v1250, %v1031
      %v1268 = vsel %vm1259, %v1251, %v1033
      %v1269 = vsel %vm1259, %v1252, %v1035
      %v1270 = vsel %vm1259, %v1253, %v1037
      %v1271 = vsel %vm1259, %v1254, %v1039
      %v1272 = vsel %vm1259, %v1255, %v1041
      %v1273 = vsel %vm1259, %v1256, %v1043
      %v1274 = vsel %vm1259, %v1257, %v1045
      %v1275 = vsel %vm1259, %v1258, %v1047
      %vm1276 = vcmask 654336
      %v1277 = vsel %vm1276, %v1260, %v1065
      %v1278 = vsel %vm1276, %v1261, %v1067
      %v1279 = vsel %vm1276, %v1262, %v1069
      %v1280 = vsel %vm1276, %v1263, %v1071
      %v1281 = vsel %vm1276, %v1264, %v1073
      %v1282 = vsel %vm1276, %v1265, %v1075
      %v1283 = vsel %vm1276, %v1266, %v1077
      %v1284 = vsel %vm1276, %v1267, %v1079
      %v1285 = vsel %vm1276, %v1268, %v1081
      %v1286 = vsel %vm1276, %v1269, %v1083
      %v1287 = vsel %vm1276, %v1270, %v1085
      %v1288 = vsel %vm1276, %v1271, %v1087
      %v1289 = vsel %vm1276, %v1272, %v1089
      %v1290 = vsel %vm1276, %v1273, %v1091
      %v1291 = vsel %vm1276, %v1274, %v1093
      %v1292 = vsel %vm1276, %v1275, %v1095
      %vm1293 = vcmask 785408
      %v1294 = vsel %vm1293, %v1277, %v1113
      %v1295 = vsel %vm1293, %v1278, %v1115
      %v1296 = vsel %vm1293, %v1279, %v1117
      %v1297 = vsel %vm1293, %v1280, %v1119
      %v1298 = vsel %vm1293, %v1281, %v1121
      %v1299 = vsel %vm1293, %v1282, %v1123
      %v1300 = vsel %vm1293, %v1283, %v1125
      %v1301 = vsel %vm1293, %v1284, %v1127
      %v1302 = vsel %vm1293, %v1285, %v1129
      %v1303 = vsel %vm1293, %v1286, %v1131
      %v1304 = vsel %vm1293, %v1287, %v1133
      %v1305 = vsel %vm1293, %v1288, %v1135
      %v1306 = vsel %vm1293, %v1289, %v1137
      %v1307 = vsel %vm1293, %v1290, %v1139
      %v1308 = vsel %vm1293, %v1291, %v1141
      %v1309 = vsel %vm1293, %v1292, %v1143
      %vm1310 = vcmask 916480
      %v1311 = vsel %vm1310, %v1294, %v1161
      %v1312 = vsel %vm1310, %v1295, %v1163
      %v1313 = vsel %vm1310, %v1296, %v1165
      %v1314 = vsel %vm1310, %v1297, %v1167
      %v1315 = vsel %vm1310, %v1298, %v1169
      %v1316 = vsel %vm1310, %v1299, %v1171
      %v1317 = vsel %vm1310, %v1300, %v1173
      %v1318 = vsel %vm1310, %v1301, %v1175
      %v1319 = vsel %vm1310, %v1302, %v1177
      %v1320 = vsel %vm1310, %v1303, %v1179
      %v1321 = vsel %vm1310, %v1304, %v1181
      %v1322 = vsel %vm1310, %v1305, %v1183
      %v1323 = vsel %vm1310, %v1306, %v1185
      %v1324 = vsel %vm1310, %v1307, %v1187
      %v1325 = vsel %vm1310, %v1308, %v1189
      %v1326 = vsel %vm1310, %v1309, %v1191
      %v1327 = vld [vmem:[%s3] sm:$0xff]
      %v1328 = vld [vmem:[%s3 + $0x8] sm:$0xff]
      %v1329 = vld [vmem:[%s3 + $0x10] sm:$0xff]
      %v1330 = vld [vmem:[%s3 + $0x18] sm:$0xff]
      %v1331 = vld [vmem:[%s3 + $0x20] sm:$0xff]
      %v1332 = vld [vmem:[%s3 + $0x28] sm:$0xff]
      %v1333 = vld [vmem:[%s3 + $0x30] sm:$0xff]
      %v1334 = vld [vmem:[%s3 + $0x38] sm:$0xff]
      %v1335 = vld [vmem:[%s3 + $0x40] sm:$0xff]
      %v1336 = vld [vmem:[%s3 + $0x48] sm:$0xff]
      %v1337 = vld [vmem:[%s3 + $0x50] sm:$0xff]
      %v1338 = vld [vmem:[%s3 + $0x58] sm:$0xff]
      %v1339 = vld [vmem:[%s3 + $0x60] sm:$0xff]
      %v1340 = vld [vmem:[%s3 + $0x68] sm:$0xff]
      %v1341 = vld [vmem:[%s3 + $0x70] sm:$0xff]
      %v1342 = vld [vmem:[%s3 + $0x78] sm:$0xff]
      %v1343 = vld [vmem:[%s3 + $0x80] sm:$0xff]
      %v1344 = vld [vmem:[%s3 + $0x88] sm:$0xff]
      %v1345 = vsel %vm1208, %v818, 0
      %v1347 = vsel %vm1208, %v820, 0
      %v1349 = vsel %vm1208, %v823, 0
      %v1351 = vsel %vm1208, %v825, 0
      %v1353 = vsel %vm1208, %v828, 0
      %v1355 = vsel %vm1208, %v830, 0
      %v1357 = vsel %vm1208, %v833, 0
      %v1359 = vsel %vm1208, %v835, 0
      %v1361 = vsel %vm1208, %v838, 0
      %v1363 = vsel %vm1208, %v840, 0
      %v1365 = vsel %vm1208, %v843, 0
      %v1367 = vsel %vm1208, %v845, 0
      %v1369 = vsel %vm1208, %v856, 0
      %v1371 = vsel %vm1208, %v858, 0
      %v1373 = vsel %vm1208, %v869, 0
      %v1375 = vsel %vm1208, %v871, 0
      %1377 = vmatprep.subr.mxu0 0.0
      %1378 = vmatpush1.msra.mxu0 %v1342
      %1379 = vmatprep.subr.mxu0 0.0
      %1380 = vmatpush1.msra.mxu0 %v1341
      %1381 = vmatprep.subr.mxu0 0.0
      %1382 = vmatpush1.msra.mxu0 %v1340
      %1383 = vmatprep.subr.mxu0 0.0
      %1384 = vmatpush1.msra.mxu0 %v1339
      %1385 = vmatprep.subr.mxu0 0.0
      %1386 = vmatpush1.msra.mxu0 %v1338
      %1387 = vmatprep.subr.mxu0 0.0
      %1388 = vmatpush1.msra.mxu0 %v1337
      %1389 = vmatprep.subr.mxu0 0.0
      %1390 = vmatpush1.msra.mxu0 %v1336
      %1391 = vmatprep.subr.mxu0 0.0
      %1392 = vmatpush1.msra.mxu0 %v1335
      %1393 = vmatprep.subr.mxu0 0.0
      %1394 = vmatpush1.msra.mxu0 %v1334
      %1395 = vmatprep.subr.mxu0 0.0
      %1396 = vmatpush1.msra.mxu0 %v1333
      %1397 = vmatprep.subr.mxu0 0.0
      %1398 = vmatpush1.msra.mxu0 %v1332
      %1399 = vmatprep.subr.mxu0 0.0
      %1400 = vmatpush1.msra.mxu0 %v1331
      %1401 = vmatprep.subr.mxu0 0.0
      %1402 = vmatpush1.msra.mxu0 %v1330
      %1403 = vmatprep.subr.mxu0 0.0
      %1404 = vmatpush1.msra.mxu0 %v1329
      %1405 = vmatprep.subr.mxu0 0.0
      %1406 = vmatpush1.msra.mxu0 %v1328
      %1407 = vmatprep.subr.mxu0 0.0
      %1408 = vmatpush1.msra.mxu0 %v1327
      %1409 = vmatprep.subr.mxu0 0.0
      %1410 = vmatpush2.msra.mxu0 0.0
      %1411 = vmatprep.subr.mxu0 0.0
      %1412 = vmatpush2.msra.mxu0 0.0
      %1413 = vmatprep.subr.mxu0 0.0
      %1414 = vmatpush2.msra.mxu0 0.0
      %1415 = vmatprep.subr.mxu0 0.0
      %1416 = vmatpush2.msra.mxu0 0.0
      %1417 = vmatprep.subr.mxu0 0.0
      %1418 = vmatpush2.msra.mxu0 0.0
      %1419 = vmatprep.subr.mxu0 0.0
      %1420 = vmatpush2.msra.mxu0 0.0
      %1421 = vmatprep.subr.mxu0 0.0
      %1422 = vmatpush2.msra.mxu0 0.0
      %1423 = vmatprep.subr.mxu0 0.0
      %1424 = vmatpush2.msra.mxu0 0.0
      %1425 = vmatprep.subr.mxu0 0.0
      %1426 = vmatpush2.msra.mxu0 0.0
      %1427 = vmatprep.subr.mxu0 0.0
      %1428 = vmatpush2.msra.mxu0 0.0
      %1429 = vmatprep.subr.mxu0 0.0
      %1430 = vmatpush2.msra.mxu0 0.0
      %1431 = vmatprep.subr.mxu0 0.0
      %1432 = vmatpush2.msra.mxu0 0.0
      %1433 = vmatprep.subr.mxu0 0.0
      %1434 = vmatpush2.msra.mxu0 0.0
      %1435 = vmatprep.subr.mxu0 0.0
      %1436 = vmatpush2.msra.mxu0 0.0
      %1437 = vmatprep.subr.mxu0 0.0
      %1438 = vmatpush2.msra.mxu0 %v1344
      %1439 = vmatprep.subr.mxu0 0.0
      %1440 = vmatpush2.msra.mxu0 %v1343
      %1441 = vmatprep.mubr.f32.mxu0 %v1345
      %1442 = vmatmul.mubr.f32.gmra.mxu0 %v1311
      %v1443 = vpop.f32.mrf.mxu0
      %v1444 = vadd.f32 0.0, %v1443
      %v1445 = vpop.f32.mrf.mxu0
      %1446 = vmatprep.mubr.f32.mxu0 %v1347
      %1447 = vmatmul.mubr.f32.gmra.mxu0 %v1312
      %v1448 = vpop.f32.mrf.mxu0
      %v1449 = vadd.f32 0.0, %v1448
      %v1450 = vpop.f32.mrf.mxu0
      %1451 = vmatprep.mubr.f32.mxu0 %v1349
      %1452 = vmatmul.mubr.f32.gmra.mxu0 %v1313
      %v1453 = vpop.f32.mrf.mxu0
      %v1454 = vadd.f32 0.0, %v1453
      %v1455 = vpop.f32.mrf.mxu0
      %1456 = vmatprep.mubr.f32.mxu0 %v1351
      %1457 = vmatmul.mubr.f32.gmra.mxu0 %v1314
      %v1458 = vpop.f32.mrf.mxu0
      %v1459 = vadd.f32 0.0, %v1458
      %v1460 = vpop.f32.mrf.mxu0
      %1461 = vmatprep.mubr.f32.mxu0 %v1353
      %1462 = vmatmul.mubr.f32.gmra.mxu0 %v1315
      %v1463 = vpop.f32.mrf.mxu0
      %v1464 = vadd.f32 0.0, %v1463
      %v1465 = vpop.f32.mrf.mxu0
      %1466 = vmatprep.mubr.f32.mxu0 %v1355
      %1467 = vmatmul.mubr.f32.gmra.mxu0 %v1316
      %v1468 = vpop.f32.mrf.mxu0
      %v1469 = vadd.f32 0.0, %v1468
      %v1470 = vpop.f32.mrf.mxu0
      %1471 = vmatprep.mubr.f32.mxu0 %v1357
      %1472 = vmatmul.mubr.f32.gmra.mxu0 %v1317
      %v1473 = vpop.f32.mrf.mxu0
      %v1474 = vadd.f32 0.0, %v1473
      %v1475 = vpop.f32.mrf.mxu0
      %1476 = vmatprep.mubr.f32.mxu0 %v1359
      %1477 = vmatmul.mubr.f32.gmra.mxu0 %v1318
      %v1478 = vpop.f32.mrf.mxu0
      %v1479 = vadd.f32 0.0, %v1478
      %v1480 = vpop.f32.mrf.mxu0
      %1481 = vmatprep.mubr.f32.mxu0 %v1361
      %1482 = vmatmul.mubr.f32.gmra.mxu0 %v1319
      %v1483 = vpop.f32.mrf.mxu0
      %v1484 = vadd.f32 0.0, %v1483
      %v1485 = vpop.f32.mrf.mxu0
      %1486 = vmatprep.mubr.f32.mxu0 %v1363
      %1487 = vmatmul.mubr.f32.gmra.mxu0 %v1320
      %v1488 = vpop.f32.mrf.mxu0
      %v1489 = vadd.f32 0.0, %v1488
      %v1490 = vpop.f32.mrf.mxu0
      %1491 = vmatprep.mubr.f32.mxu0 %v1365
      %1492 = vmatmul.mubr.f32.gmra.mxu0 %v1321
      %v1493 = vpop.f32.mrf.mxu0
      %v1494 = vadd.f32 0.0, %v1493
      %v1495 = vpop.f32.mrf.mxu0
      %1496 = vmatprep.mubr.f32.mxu0 %v1367
      %1497 = vmatmul.mubr.f32.gmra.mxu0 %v1322
      %v1498 = vpop.f32.mrf.mxu0
      %v1499 = vadd.f32 0.0, %v1498
      %v1500 = vpop.f32.mrf.mxu0
      %1501 = vmatprep.mubr.f32.mxu0 %v1369
      %1502 = vmatmul.mubr.f32.gmra.mxu0 %v1323
      %v1503 = vpop.f32.mrf.mxu0
      %v1504 = vadd.f32 0.0, %v1503
      %v1505 = vpop.f32.mrf.mxu0
      %1506 = vmatprep.mubr.f32.mxu0 %v1371
      %1507 = vmatmul.mubr.f32.gmra.mxu0 %v1324
      %v1508 = vpop.f32.mrf.mxu0
      %v1509 = vadd.f32 0.0, %v1508
      %v1510 = vpop.f32.mrf.mxu0
      %1511 = vmatprep.mubr.f32.mxu0 %v1373
      %1512 = vmatmul.mubr.f32.gmra.mxu0 %v1325
      %v1513 = vpop.f32.mrf.mxu0
      %v1514 = vadd.f32 0.0, %v1513
      %v1515 = vpop.f32.mrf.mxu0
      %1516 = vmatprep.mubr.f32.mxu0 %v1375
      %1517 = vmatmul.mubr.f32.gmra.mxu0 %v1326
      %v1518 = vpop.f32.mrf.mxu0
      %v1519 = vadd.f32 0.0, %v1518
      %v1520 = vpop.f32.mrf.mxu0
      %1521 = vdwg.mxu0
      %1522 = vst.msk [vmem:[%s221] sm:$0xff] %vm1208, %v1444
      %1523 = vst.msk [vmem:[%s221 + $0x8] sm:$0xff] %vm1208, %v1449
      %1524 = vst.msk [vmem:[%s221 + $0x10] sm:$0xff] %vm1208, %v1454
      %1525 = vst.msk [vmem:[%s221 + $0x18] sm:$0xff] %vm1208, %v1459
      %1526 = vst.msk [vmem:[%s221 + $0x20] sm:$0xff] %vm1208, %v1464
      %1527 = vst.msk [vmem:[%s221 + $0x28] sm:$0xff] %vm1208, %v1469
      %1528 = vst.msk [vmem:[%s221 + $0x30] sm:$0xff] %vm1208, %v1474
      %1529 = vst.msk [vmem:[%s221 + $0x38] sm:$0xff] %vm1208, %v1479
      %1530 = vst.msk [vmem:[%s221 + $0x40] sm:$0xff] %vm1208, %v1484
      %1531 = vst.msk [vmem:[%s221 + $0x48] sm:$0xff] %vm1208, %v1489
      %1532 = vst.msk [vmem:[%s221 + $0x50] sm:$0xff] %vm1208, %v1494
      %1533 = vst.msk [vmem:[%s221 + $0x58] sm:$0xff] %vm1208, %v1499
      %1534 = vst.msk [vmem:[%s221 + $0x60] sm:$0xff] %vm1208, %v1504
      %1535 = vst.msk [vmem:[%s221 + $0x68] sm:$0xff] %vm1208, %v1509
      %1536 = vst.msk [vmem:[%s221 + $0x70] sm:$0xff] %vm1208, %v1514
      %1537 = vst.msk [vmem:[%s221 + $0x78] sm:$0xff] %vm1208, %v1519
      %s1538 = smul.u32 8, %s20
      %p1539 = scmp.lt.s32.totalorder %s19, 1
      %s1540 = scalar_select %p1539, %s19, 1
      %p1541 = scmp.lt.s32.totalorder %s1538, 15
      %s1542 = scalar_select %p1541, %s1538, 15
      %s1543 = smul.addr %s1542, 2
      %s1544 = smul.addr %s1540, 32
      %s1545 = sadd.s32 %s1543, %s1544
      %s1546 = smul.addr %s1545, 8
      %s1547 = scalar_lea.vmem %s4, %s1546
      // Predicated region
      $region37: #{quaternion_basic_block.2} parent=35 // pred_check
        %p1548 = pneg %p136
      $region38: #{quaternion_basic_block.2} parent=35 // pred_check_branch
        %1550 = sbr.rel (%p1548) target = $region40
      $region39: #{quaternion_basic_block.2} parent=35 // pred_region
        %s1551 = smul.u32 8, %s20
      $region40: #{quaternion_basic_block.2} parent=35 // pred_fallthru
        _
    $region36: #{quaternion_basic_block.2} parent=5 // pred_fallthru
      _
    %p1552 = scmp.le.s32.totalorder 2, %s10
    // Predicated region
    $region41: #{quaternion_basic_block.2} parent=5 // pred_check
      %p1553 = pneg %p1552
    $region42: #{quaternion_basic_block.2} parent=5 // pred_check_branch
      %1555 = sbr.rel (%p1553) target = $region44
    $region43: #{quaternion_basic_block.2} parent=5 // pred_region
      %s1556 = ssub.s32 %s10, 2
      // Predicated region
      $region45: #{quaternion_basic_block.2} parent=43 // pred_check
        %p1557 = pneg %p142
      $region46: #{quaternion_basic_block.2} parent=43 // pred_check_branch
        %1559 = sbr.rel (%p1557) target = $region48
      $region47: #{quaternion_basic_block.2} parent=43 // pred_region
        %s1560 = smul.u32 8, %s22
        %p1561 = scmp.lt.s32.totalorder %s21, 1
        %s1562 = scalar_select %p1561, %s21, 1
        %p1563 = scmp.lt.s32.totalorder %s1560, 15
        %s1564 = scalar_select %p1563, %s1560, 15
        %s1565 = smul.addr %s1564, 2
        %s1566 = smul.addr %s1562, 32
        %s1567 = sadd.s32 %s1565, %s1566
        %s1568 = smul.addr %s1567, 8
        %s1569 = scalar_lea.vmem %s4, %s1568
      $region48: #{quaternion_basic_block.2} parent=43 // pred_fallthru
        _
    $region44: #{quaternion_basic_block.2} parent=5 // pred_fallthru
      _
  $region6: #{quaternion_basic_block.2} parent=0 // loop_footer
    %s14 = sadd.s32 1, %s10
  $region7: #{quaternion_basic_block.2} parent=0 // loop_footer_branch
    %9 = sbr.rel target = $region3
  $region8: #{quaternion_basic_block.2} parent=0 // loop_exit
    _

// kernel: quaternion_basic_block.3
$region0: #{quaternion_basic_block.3}
  #allocation0 [shape = 'u32[]', space=smem, size = 0x4, offset = 0x4, fixed_abs, tag = 'smem constant byte address 0x4 - core index']
  #allocation1 [shape = 'u32[144,128]{1,0:T(1,128)}', space=vmem, size = 0x12000, scoped, tag = 'internal scratch']
  %s0 = inlined_call_operand.vmem [shape: f32[1,1,16], index: 0, kind: input, shape index: {}]
  %s1 = inlined_call_operand.vmem [shape: f32[1,1,16], index: 1, kind: input, shape index: {}]
  %s2 = inlined_call_operand.vmem [shape: f32[2,18,18,16], index: 2, kind: input, shape index: {}]
  %s3 = inlined_call_operand.vmem [shape: f32[144,16], index: 3, kind: input, shape index: {}]
  %s4 = inlined_call_operand.vmem [shape: f32[2,16,16,16], index: 4, kind: input, shape index: {}]
  %s5 = inlined_call_operand.vmem [shape: f32[2,16,16,16], index: 5, kind: output, shape index: {}]
  %s6 = sld [smem:[#allocation0]]
  $region53: #{quaternion_basic_block.3} parent=0
    _
  %s8 = ssub.s32 1, %s6
  %s9 = scalar_select 0, %s8, %s6
  loop: start=0, step=1, limit=6
  $region2: #{quaternion_basic_block.3} parent=0 // loop_pre_header
    _
  $region3: #{quaternion_basic_block.3} parent=0 // loop_header
    %s11 = sphi 0, %s15
    %p12 = scmp.ge.s32.totalorder %s11, 6
    %s18 = sphi 0, %s30
    %s19 = sphi 0, %s26
    %s20 = sphi 0, %s18
    %s21 = sphi 0, %s19
    %s22 = sphi 0, %s20
    %s23 = sphi 0, %s21
    %s31 = sphi 0, %s31
    %s33 = sphi 0, %s31
    %s34 = sphi 0, %s33
    %s48 = sphi 0, %s34
    %s52 = sphi 0, %s52
    %s54 = sphi 0, %s52
    %s55 = sphi 0, %s54
    %s69 = sphi 0, %s55
    %s75 = sphi 0, %s77
    %s78 = sphi 0, %s75
    %s79 = sphi 0, %s78
    %s95 = sphi 0, %s79
    %s99 = sphi 0, %s99
    %s101 = sphi 0, %s99
    %s102 = sphi 0, %s101
    %s116 = sphi 0, %s102
    %s124 = sphi 0, %s126
    %s127 = sphi 0, %s124
    %s128 = sphi 0, %s127
    %s144 = sphi 0, %s128
    %s152 = sphi 0, %s154
    %s155 = sphi 0, %s152
    %s156 = sphi 0, %s155
    %s172 = sphi 0, %s156
  $region4: #{quaternion_basic_block.3} parent=0 // loop_header_branch
    %14 = sbr.rel (%p12) target = $region8
  $region5: #{quaternion_basic_block.3} parent=0 // loop_body
    %s16 = ssub.s32 %s11, 1
    %s17 = ssub.s32 %s11, 2
    %s24 = sadd.s32 1, %s19
    %p25 = scmp.ge.s32.totalorder %s24, 2
    %s26 = scalar_select %p25, 0, %s24
    %s27 = sadd.s32 1, %s18
    %s28 = scalar_select %p25, %s27, %s18
    %p29 = scmp.ge.s32.totalorder %s28, 2
    %s30 = scalar_select %p29, 0, %s28
    %s32 = sadd.s32 %s31, 1
    %p35 = scmp.eq.s32.totalorder %s11, 3
    %p36 = scmp.ne.s32.totalorder %s31, %s33
    %p37 = scmp.eq.s32.totalorder %s11, 0
    %p38 = por %p36, %p37
    %p39 = scmp.ne.s32.totalorder %s31, %s33
    %p40 = scmp.eq.s32.totalorder %s16, 3
    %p41 = por %p39, %p40
    %p42 = scmp.ne.s32.totalorder %s33, %s34
    %p43 = scmp.eq.s32.totalorder %s16, 0
    %p44 = por %p42, %p43
    %p45 = scmp.ne.s32.totalorder %s33, %s34
    %p46 = scmp.eq.s32.totalorder %s17, 3
    %p47 = por %p45, %p46
    %p49 = scmp.ne.s32.totalorder %s34, %s48
    %p50 = scmp.eq.s32.totalorder %s17, 0
    %p51 = por %p49, %p50
    %s53 = sadd.s32 %s52, 1
    %p56 = scmp.eq.s32.totalorder %s11, 3
    %p57 = scmp.ne.s32.totalorder %s52, %s54
    %p58 = scmp.eq.s32.totalorder %s11, 0
    %p59 = por %p57, %p58
    %p60 = scmp.ne.s32.totalorder %s52, %s54
    %p61 = scmp.eq.s32.totalorder %s16, 3
    %p62 = por %p60, %p61
    %p63 = scmp.ne.s32.totalorder %s54, %s55
    %p64 = scmp.eq.s32.totalorder %s16, 0
    %p65 = por %p63, %p64
    %p66 = scmp.ne.s32.totalorder %s54, %s55
    %p67 = scmp.eq.s32.totalorder %s17, 3
    %p68 = por %p66, %p67
    %p70 = scmp.ne.s32.totalorder %s55, %s69
    %p71 = scmp.eq.s32.totalorder %s17, 0
    %p72 = por %p70, %p71
    %s73 = ssub.s32 %s18, %s30
    %p74 = scmp.eq.s32.totalorder %s73, 0
    %s76 = sadd.s32 %s75, 1
    %s77 = scalar_select %p74, %s75, %s76
    %p80 = pneg %p74
    %p81 = scmp.eq.s32.totalorder %s11, 3
    %p82 = por %p80, %p81
    %p83 = scmp.ne.s32.totalorder %s75, %s78
    %p84 = scmp.eq.s32.totalorder %s11, 0
    %p85 = por %p83, %p84
    %p86 = scmp.ne.s32.totalorder %s75, %s78
    %p87 = scmp.eq.s32.totalorder %s16, 3
    %p88 = por %p86, %p87
    %p89 = scmp.ne.s32.totalorder %s78, %s79
    %p90 = scmp.eq.s32.totalorder %s16, 0
    %p91 = por %p89, %p90
    %p92 = scmp.ne.s32.totalorder %s78, %s79
    %p93 = scmp.eq.s32.totalorder %s17, 3
    %p94 = por %p92, %p93
    %p96 = scmp.ne.s32.totalorder %s79, %s95
    %p97 = scmp.eq.s32.totalorder %s17, 0
    %p98 = por %p96, %p97
    %s100 = sadd.s32 %s99, 1
    %p103 = scmp.eq.s32.totalorder %s11, 3
    %p104 = scmp.ne.s32.totalorder %s99, %s101
    %p105 = scmp.eq.s32.totalorder %s11, 0
    %p106 = por %p104, %p105
    %p107 = scmp.ne.s32.totalorder %s99, %s101
    %p108 = scmp.eq.s32.totalorder %s16, 3
    %p109 = por %p107, %p108
    %p110 = scmp.ne.s32.totalorder %s101, %s102
    %p111 = scmp.eq.s32.totalorder %s16, 0
    %p112 = por %p110, %p111
    %p113 = scmp.ne.s32.totalorder %s101, %s102
    %p114 = scmp.eq.s32.totalorder %s17, 3
    %p115 = por %p113, %p114
    %p117 = scmp.ne.s32.totalorder %s102, %s116
    %p118 = scmp.eq.s32.totalorder %s17, 0
    %p119 = por %p117, %p118
    %s120 = ssub.s32 %s18, %s30
    %s121 = ssub.s32 %s19, %s26
    %s122 = sor.u32 %s120, %s121
    %p123 = scmp.eq.s32.totalorder %s122, 0
    %s125 = sadd.s32 %s124, 1
    %s126 = scalar_select %p123, %s124, %s125
    %p129 = pneg %p123
    %p130 = scmp.eq.s32.totalorder %s11, 3
    %p131 = por %p129, %p130
    %p132 = scmp.ne.s32.totalorder %s124, %s127
    %p133 = scmp.eq.s32.totalorder %s11, 0
    %p134 = por %p132, %p133
    %p135 = scmp.ne.s32.totalorder %s124, %s127
    %p136 = scmp.eq.s32.totalorder %s16, 3
    %p137 = por %p135, %p136
    %p138 = scmp.ne.s32.totalorder %s127, %s128
    %p139 = scmp.eq.s32.totalorder %s16, 0
    %p140 = por %p138, %p139
    %p141 = scmp.ne.s32.totalorder %s127, %s128
    %p142 = scmp.eq.s32.totalorder %s17, 3
    %p143 = por %p141, %p142
    %p145 = scmp.ne.s32.totalorder %s128, %s144
    %p146 = scmp.eq.s32.totalorder %s17, 0
    %p147 = por %p145, %p146
    %s148 = ssub.s32 %s18, %s30
    %s149 = ssub.s32 %s19, %s26
    %s150 = sor.u32 %s148, %s149
    %p151 = scmp.eq.s32.totalorder %s150, 0
    %s153 = sadd.s32 %s152, 1
    %s154 = scalar_select %p151, %s152, %s153
    %p157 = pneg %p151
    %p158 = scmp.eq.s32.totalorder %s11, 3
    %p159 = por %p157, %p158
    %p160 = scmp.ne.s32.totalorder %s152, %s155
    %p161 = scmp.eq.s32.totalorder %s11, 0
    %p162 = por %p160, %p161
    %p163 = scmp.ne.s32.totalorder %s152, %s155
    %p164 = scmp.eq.s32.totalorder %s16, 3
    %p165 = por %p163, %p164
    %p166 = scmp.ne.s32.totalorder %s155, %s156
    %p167 = scmp.eq.s32.totalorder %s16, 0
    %p168 = por %p166, %p167
    %p169 = scmp.ne.s32.totalorder %s155, %s156
    %p170 = scmp.eq.s32.totalorder %s17, 3
    %p171 = por %p169, %p170
    %p173 = scmp.ne.s32.totalorder %s156, %s172
    %p174 = scmp.eq.s32.totalorder %s17, 0
    %p175 = por %p173, %p174
    %p176 = scmp.le.s32.totalorder 1, %s11
    %p177 = scmp.lt.s32.totalorder %s11, 5
    %p178 = pnand %p176, %p177
    %p179 = pneg %p178
    // Predicated region
    $region9: #{quaternion_basic_block.3} parent=5 // pred_check
      _
    $region10: #{quaternion_basic_block.3} parent=5 // pred_check_branch
      %181 = sbr.rel (%p178) target = $region12
    $region11: #{quaternion_basic_block.3} parent=5 // pred_region
      %s182 = ssub.s32 %s11, 1
      // Predicated region
      $region13: #{quaternion_basic_block.3} parent=11 // pred_check
        %p183 = pneg %p44
      $region14: #{quaternion_basic_block.3} parent=11 // pred_check_branch
        %185 = sbr.rel (%p183) target = $region16
      $region15: #{quaternion_basic_block.3} parent=11 // pred_region
        _
      $region16: #{quaternion_basic_block.3} parent=11 // pred_fallthru
        _
      // Predicated region
      $region17: #{quaternion_basic_block.3} parent=11 // pred_check
        %p186 = pneg %p65
      $region18: #{quaternion_basic_block.3} parent=11 // pred_check_branch
        %188 = sbr.rel (%p186) target = $region20
      $region19: #{quaternion_basic_block.3} parent=11 // pred_region
        _
      $region20: #{quaternion_basic_block.3} parent=11 // pred_fallthru
        _
      // Predicated region
      $region21: #{quaternion_basic_block.3} parent=11 // pred_check
        %p189 = pneg %p112
      $region22: #{quaternion_basic_block.3} parent=11 // pred_check_branch
        %191 = sbr.rel (%p189) target = $region24
      $region23: #{quaternion_basic_block.3} parent=11 // pred_region
        _
      $region24: #{quaternion_basic_block.3} parent=11 // pred_fallthru
        _
    $region12: #{quaternion_basic_block.3} parent=5 // pred_fallthru
      _
    %p192 = scmp.lt.s32.totalorder %s11, 4
    // Predicated region
    $region25: #{quaternion_basic_block.3} parent=5 // pred_check
      %p193 = pneg %p192
    $region26: #{quaternion_basic_block.3} parent=5 // pred_check_branch
      %195 = sbr.rel (%p193) target = $region28
    $region27: #{quaternion_basic_block.3} parent=5 // pred_region
      // Predicated region
      $region29: #{quaternion_basic_block.3} parent=27 // pred_check
        %p196 = pneg %p85
      $region30: #{quaternion_basic_block.3} parent=27 // pred_check_branch
        %198 = sbr.rel (%p196) target = $region32
      $region31: #{quaternion_basic_block.3} parent=27 // pred_region
        %p199 = scmp.lt.s32.totalorder %s18, 1
        %s200 = scalar_select %p199, %s18, 1
        %s201 = smul.addr %s200, 54
        %s202 = smul.addr %s201, 8
        %s203 = scalar_lea.vmem %s2, %s202
      $region32: #{quaternion_basic_block.3} parent=27 // pred_fallthru
        _
      // Predicated region
      $region33: #{quaternion_basic_block.3} parent=27 // pred_check
        %p204 = pneg %p134
      $region34: #{quaternion_basic_block.3} parent=27 // pred_check_branch
        %206 = sbr.rel (%p204) target = $region36
      $region35: #{quaternion_basic_block.3} parent=27 // pred_region
        %s207 = smul.u32 8, %s19
        %p208 = scmp.lt.s32.totalorder %s18, 1
        %s209 = scalar_select %p208, %s18, 1
        %p210 = scmp.lt.s32.totalorder %s207, 15
        %s211 = scalar_select %p210, %s207, 15
        %s212 = smul.addr %s211, 2
        %s213 = smul.addr %s209, 32
        %s214 = sadd.s32 %s212, %s213
        %s215 = smul.addr %s214, 8
        %s216 = scalar_lea.vmem %s4, %s215
        %s217 = smul.u32 8, %s19
      $region36: #{quaternion_basic_block.3} parent=27 // pred_fallthru
        _
    $region28: #{quaternion_basic_block.3} parent=5 // pred_fallthru
      _
    %p218 = scmp.le.s32.totalorder 1, %s11
    %p219 = scmp.lt.s32.totalorder %s11, 5
    %p220 = pnand %p218, %p219
    %p221 = pneg %p220
    // Predicated region
    $region37: #{quaternion_basic_block.3} parent=5 // pred_check
      _
    $region38: #{quaternion_basic_block.3} parent=5 // pred_check_branch
      %223 = sbr.rel (%p220) target = $region40
    $region39: #{quaternion_basic_block.3} parent=5 // pred_region
      %s224 = ssub.s32 %s11, 1
      %p225 = pneg %p44
      %p226 = pneg %p41
      %p227 = pneg %p65
      %p228 = pneg %p62
      %p229 = scmp.lt.s32.totalorder %s20, 1
      %s230 = scalar_select %p229, %s20, 1
      %s231 = smul.addr %s230, 54
      %s232 = smul.addr %s231, 8
      %s233 = scalar_lea.vmem %s2, %s232
      %p234 = pneg %p91
      %p235 = pneg %p88
      %p236 = pneg %p112
      %p237 = pneg %p109
      %s238 = smul.u32 8, %s21
      %p239 = scmp.lt.s32.totalorder %s20, 1
      %s240 = scalar_select %p239, %s20, 1
      %p241 = scmp.lt.s32.totalorder %s238, 15
      %s242 = scalar_select %p241, %s238, 15
      %s243 = smul.addr %s242, 2
      %s244 = smul.addr %s240, 32
      %s245 = sadd.s32 %s243, %s244
      %s246 = smul.addr %s245, 8
      %s247 = scalar_lea.vmem %s4, %s246
      %p248 = pneg %p140
      %p249 = pneg %p137
      %p250 = pneg %p168
      %p251 = pneg %p165
      %s252 = smul.u32 8, %s21
      %p253 = scmp.lt.s32.totalorder %s20, 1
      %s254 = scalar_select %p253, %s20, 1
      %p255 = scmp.lt.s32.totalorder %s252, 15
      %s256 = scalar_select %p255, %s252, 15
      %s257 = smul.addr %s256, 2
      %s258 = smul.addr %s254, 32
      %s259 = sadd.s32 %s257, %s258
      %s260 = smul.addr %s259, 8
      %s261 = scalar_lea.vmem %s5, %s260
      %p262 = scmp.lt.s32.totalorder %s20, 1
      %s263 = scalar_select %p262, %s20, 1
      %s264 = smul.addr %s263, 54
      %s265 = smul.addr %s264, 8
      %s266 = scalar_lea.vmem %s2, %s265
      %s267 = smul.u32 8, %s21
      %p268 = scmp.lt.s32.totalorder %s20, 1
      %s269 = scalar_select %p268, %s20, 1
      %p270 = scmp.lt.s32.totalorder %s267, 15
      %s271 = scalar_select %p270, %s267, 15
      %s272 = smul.addr %s271, 2
      %s273 = smul.addr %s269, 32
      %s274 = sadd.s32 %s272, %s273
      %s275 = smul.addr %s274, 8
      %s276 = scalar_lea.vmem %s4, %s275
      %s277 = smul.u32 8, %s21
      %s278 = smul.u32 8, %s21
      %p279 = scmp.lt.s32.totalorder %s20, 1
      %s280 = scalar_select %p279, %s20, 1
      %p281 = scmp.lt.s32.totalorder %s278, 15
      %s282 = scalar_select %p281, %s278, 15
      %s283 = smul.addr %s282, 2
      %s284 = smul.addr %s280, 32
      %s285 = sadd.s32 %s283, %s284
      %s286 = smul.addr %s285, 8
      %s287 = scalar_lea.vmem %s5, %s286
      %s288 = smul.u32 8, %s21
      %s289 = smul.u32 %s21, 8
      %s290 = smul.u32 %s289, 24
      %s291 = scalar_lea.vmem %s266, %s290
      %v292 = vld [vmem:[%s291] sm:$0xff]
      %v293 = vld [vmem:[%s291 + $0x8] sm:$0xff]
      %v294 = vld [vmem:[%s291 + $0x10] sm:$0x3]
      %v295 = vld [vmem:[%s291 + $0x18] sm:$0xff]
      %v296 = vld [vmem:[%s291 + $0x20] sm:$0xff]
      %v297 = vld [vmem:[%s291 + $0x28] sm:$0x3]
      %v298 = vld [vmem:[%s291 + $0x30] sm:$0xff]
      %v299 = vld [vmem:[%s291 + $0x38] sm:$0xff]
      %v300 = vld [vmem:[%s291 + $0x40] sm:$0x3]
      %v301 = vld [vmem:[%s291 + $0x48] sm:$0xff]
      %v302 = vld [vmem:[%s291 + $0x50] sm:$0xff]
      %v303 = vld [vmem:[%s291 + $0x58] sm:$0x3]
      %v304 = vld [vmem:[%s291 + $0x60] sm:$0xff]
      %v305 = vld [vmem:[%s291 + $0x68] sm:$0xff]
      %v306 = vld [vmem:[%s291 + $0x70] sm:$0x3]
      %v307 = vld [vmem:[%s291 + $0x78] sm:$0xff]
      %v308 = vld [vmem:[%s291 + $0x80] sm:$0xff]
      %v309 = vld [vmem:[%s291 + $0x88] sm:$0x3]
      %v310 = vld [vmem:[%s291 + $0x90] sm:$0xff]
      %v311 = vld [vmem:[%s291 + $0x98] sm:$0xff]
      %v312 = vld [vmem:[%s291 + $0xa0] sm:$0x3]
      %v313 = vld [vmem:[%s291 + $0xa8] sm:$0xff]
      %v314 = vld [vmem:[%s291 + $0xb0] sm:$0xff]
      %v315 = vld [vmem:[%s291 + $0xb8] sm:$0x3]
      %v316 = vld [vmem:[%s291 + $0xc0] sm:$0xff]
      %v317 = vld [vmem:[%s291 + $0xc8] sm:$0xff]
      %v318 = vld [vmem:[%s291 + $0xd0] sm:$0x3]
      %v319 = vld [vmem:[%s291 + $0xd8] sm:$0xff]
      %v320 = vld [vmem:[%s291 + $0xe0] sm:$0xff]
      %v321 = vld [vmem:[%s291 + $0xe8] sm:$0x3]
      %v322 = vld [vmem:[%s0] sm:$0x1]
      %v324 = vlaneseq
      %v325 = vshrl.u32 %v324, 7
      %v326 = vsub.s32 0, %v325
      %v327 = vrot.slane %v322, %v326
      %v329 = vmul.f32 %v292, %v327
      %v330 = vmul.f32 %v293, %v327
      %v331 = vmul.f32 %v294, %v327
      %v332 = vmul.f32 %v295, %v327
      %v333 = vmul.f32 %v296, %v327
      %v334 = vmul.f32 %v297, %v327
      %v335 = vmul.f32 %v298, %v327
      %v336 = vmul.f32 %v299, %v327
      %v337 = vmul.f32 %v300, %v327
      %v338 = vmul.f32 %v301, %v327
      %v339 = vmul.f32 %v302, %v327
      %v340 = vmul.f32 %v303, %v327
      %v341 = vmul.f32 %v304, %v327
      %v342 = vmul.f32 %v305, %v327
      %v343 = vmul.f32 %v306, %v327
      %v344 = vmul.f32 %v307, %v327
      %v345 = vmul.f32 %v308, %v327
      %v346 = vmul.f32 %v309, %v327
      %v347 = vmul.f32 %v310, %v327
      %v348 = vmul.f32 %v311, %v327
      %v349 = vmul.f32 %v312, %v327
      %v350 = vmul.f32 %v313, %v327
      %v351 = vmul.f32 %v314, %v327
      %v352 = vmul.f32 %v315, %v327
      %v353 = vmul.f32 %v316, %v327
      %v354 = vmul.f32 %v317, %v327
      %v355 = vmul.f32 %v318, %v327
      %v356 = vmul.f32 %v319, %v327
      %v357 = vmul.f32 %v320, %v327
      %v358 = vmul.f32 %v321, %v327
      %v359 = vld [vmem:[%s1] sm:$0x1]
      %v361 = vlaneseq
      %v362 = vshrl.u32 %v361, 7
      %v363 = vsub.s32 0, %v362
      %v364 = vrot.slane %v359, %v363
      %v366 = vadd.f32 %v329, %v364
      %v367 = vadd.f32 %v330, %v364
      %v368 = vadd.f32 %v331, %v364
      %v369 = vadd.f32 %v332, %v364
      %v370 = vadd.f32 %v333, %v364
      %v371 = vadd.f32 %v334, %v364
      %v372 = vadd.f32 %v335, %v364
      %v373 = vadd.f32 %v336, %v364
      %v374 = vadd.f32 %v337, %v364
      %v375 = vadd.f32 %v338, %v364
      %v376 = vadd.f32 %v339, %v364
      %v377 = vadd.f32 %v340, %v364
      %v378 = vadd.f32 %v341, %v364
      %v379 = vadd.f32 %v342, %v364
      %v380 = vadd.f32 %v343, %v364
      %v381 = vadd.f32 %v344, %v364
      %v382 = vadd.f32 %v345, %v364
      %v383 = vadd.f32 %v346, %v364
      %v384 = vadd.f32 %v347, %v364
      %v385 = vadd.f32 %v348, %v364
      %v386 = vadd.f32 %v349, %v364
      %v387 = vadd.f32 %v350, %v364
      %v388 = vadd.f32 %v351, %v364
      %v389 = vadd.f32 %v352, %v364
      %v390 = vadd.f32 %v353, %v364
      %v391 = vadd.f32 %v354, %v364
      %v392 = vadd.f32 %v355, %v364
      %v393 = vadd.f32 %v356, %v364
      %v394 = vadd.f32 %v357, %v364
      %v395 = vadd.f32 %v358, %v364
      %v396 = vxor.u32 %v366, 2147483648
      %v397 = vxor.u32 %v367, 2147483648
      %v398 = vxor.u32 %v368, 2147483648
      %v399 = vxor.u32 %v369, 2147483648
      %v400 = vxor.u32 %v370, 2147483648
      %v401 = vxor.u32 %v371, 2147483648
      %v402 = vxor.u32 %v372, 2147483648
      %v403 = vxor.u32 %v373, 2147483648
      %v404 = vxor.u32 %v374, 2147483648
      %v405 = vxor.u32 %v375, 2147483648
      %v406 = vxor.u32 %v376, 2147483648
      %v407 = vxor.u32 %v377, 2147483648
      %v408 = vxor.u32 %v378, 2147483648
      %v409 = vxor.u32 %v379, 2147483648
      %v410 = vxor.u32 %v380, 2147483648
      %v411 = vxor.u32 %v381, 2147483648
      %v412 = vxor.u32 %v382, 2147483648
      %v413 = vxor.u32 %v383, 2147483648
      %v414 = vxor.u32 %v384, 2147483648
      %v415 = vxor.u32 %v385, 2147483648
      %v416 = vxor.u32 %v386, 2147483648
      %v417 = vxor.u32 %v387, 2147483648
      %v418 = vxor.u32 %v388, 2147483648
      %v419 = vxor.u32 %v389, 2147483648
      %v420 = vxor.u32 %v390, 2147483648
      %v421 = vxor.u32 %v391, 2147483648
      %v422 = vxor.u32 %v392, 2147483648
      %v423 = vxor.u32 %v393, 2147483648
      %v424 = vxor.u32 %v394, 2147483648
      %v425 = vxor.u32 %v395, 2147483648
      %v426 = vmul.f32 %v396, 1.442695
      %v427 = vpow.pop %v426
      %v428 = vmul.f32 %v397, 1.442695
      %v429 = vpow.pop %v428
      %v430 = vmul.f32 %v398, 1.442695
      %v431 = vpow.pop %v430
      %v432 = vmul.f32 %v399, 1.442695
      %v433 = vpow.pop %v432
      %v434 = vmul.f32 %v400, 1.442695
      %v435 = vpow.pop %v434
      %v436 = vmul.f32 %v401, 1.442695
      %v437 = vpow.pop %v436
      %v438 = vmul.f32 %v402, 1.442695
      %v439 = vpow.pop %v438
      %v440 = vmul.f32 %v403, 1.442695
      %v441 = vpow.pop %v440
      %v442 = vmul.f32 %v404, 1.442695
      %v443 = vpow.pop %v442
      %v444 = vmul.f32 %v405, 1.442695
      %v445 = vpow.pop %v444
      %v446 = vmul.f32 %v406, 1.442695
      %v447 = vpow.pop %v446
      %v448 = vmul.f32 %v407, 1.442695
      %v449 = vpow.pop %v448
      %v450 = vmul.f32 %v408, 1.442695
      %v451 = vpow.pop %v450
      %v452 = vmul.f32 %v409, 1.442695
      %v453 = vpow.pop %v452
      %v454 = vmul.f32 %v410, 1.442695
      %v455 = vpow.pop %v454
      %v456 = vmul.f32 %v411, 1.442695
      %v457 = vpow.pop %v456
      %v458 = vmul.f32 %v412, 1.442695
      %v459 = vpow.pop %v458
      %v460 = vmul.f32 %v413, 1.442695
      %v461 = vpow.pop %v460
      %v462 = vmul.f32 %v414, 1.442695
      %v463 = vpow.pop %v462
      %v464 = vmul.f32 %v415, 1.442695
      %v465 = vpow.pop %v464
      %v466 = vmul.f32 %v416, 1.442695
      %v467 = vpow.pop %v466
      %v468 = vmul.f32 %v417, 1.442695
      %v469 = vpow.pop %v468
      %v470 = vmul.f32 %v418, 1.442695
      %v471 = vpow.pop %v470
      %v472 = vmul.f32 %v419, 1.442695
      %v473 = vpow.pop %v472
      %v474 = vmul.f32 %v420, 1.442695
      %v475 = vpow.pop %v474
      %v476 = vmul.f32 %v421, 1.442695
      %v477 = vpow.pop %v476
      %v478 = vmul.f32 %v422, 1.442695
      %v479 = vpow.pop %v478
      %v480 = vmul.f32 %v423, 1.442695
      %v481 = vpow.pop %v480
      %v482 = vmul.f32 %v424, 1.442695
      %v483 = vpow.pop %v482
      %v484 = vmul.f32 %v425, 1.442695
      %v485 = vpow.pop %v484
      %v486 = vadd.f32 %v427, 1.0
      %v487 = vadd.f32 %v429, 1.0
      %v488 = vadd.f32 %v431, 1.0
      %v489 = vadd.f32 %v433, 1.0
      %v490 = vadd.f32 %v435, 1.0
      %v491 = vadd.f32 %v437, 1.0
      %v492 = vadd.f32 %v439, 1.0
      %v493 = vadd.f32 %v441, 1.0
      %v494 = vadd.f32 %v443, 1.0
      %v495 = vadd.f32 %v445, 1.0
      %v496 = vadd.f32 %v447, 1.0
      %v497 = vadd.f32 %v449, 1.0
      %v498 = vadd.f32 %v451, 1.0
      %v499 = vadd.f32 %v453, 1.0
      %v500 = vadd.f32 %v455, 1.0
      %v501 = vadd.f32 %v457, 1.0
      %v502 = vadd.f32 %v459, 1.0
      %v503 = vadd.f32 %v461, 1.0
      %v504 = vadd.f32 %v463, 1.0
      %v505 = vadd.f32 %v465, 1.0
      %v506 = vadd.f32 %v467, 1.0
      %v507 = vadd.f32 %v469, 1.0
      %v508 = vadd.f32 %v471, 1.0
      %v509 = vadd.f32 %v473, 1.0
      %v510 = vadd.f32 %v475, 1.0
      %v511 = vadd.f32 %v477, 1.0
      %v512 = vadd.f32 %v479, 1.0
      %v513 = vadd.f32 %v481, 1.0
      %v514 = vadd.f32 %v483, 1.0
      %v515 = vadd.f32 %v485, 1.0
      %v516 = vrcp.pop %v486
      %v517 = vmul.f32 1.0, %v516
      %v518 = vrcp.pop %v487
      %v519 = vmul.f32 1.0, %v518
      %v520 = vrcp.pop %v488
      %v521 = vmul.f32 1.0, %v520
      %v522 = vrcp.pop %v489
      %v523 = vmul.f32 1.0, %v522
      %v524 = vrcp.pop %v490
      %v525 = vmul.f32 1.0, %v524
      %v526 = vrcp.pop %v491
      %v527 = vmul.f32 1.0, %v526
      %v528 = vrcp.pop %v492
      %v529 = vmul.f32 1.0, %v528
      %v530 = vrcp.pop %v493
      %v531 = vmul.f32 1.0, %v530
      %v532 = vrcp.pop %v494
      %v533 = vmul.f32 1.0, %v532
      %v534 = vrcp.pop %v495
      %v535 = vmul.f32 1.0, %v534
      %v536 = vrcp.pop %v496
      %v537 = vmul.f32 1.0, %v536
      %v538 = vrcp.pop %v497
      %v539 = vmul.f32 1.0, %v538
      %v540 = vrcp.pop %v498
      %v541 = vmul.f32 1.0, %v540
      %v542 = vrcp.pop %v499
      %v543 = vmul.f32 1.0, %v542
      %v544 = vrcp.pop %v500
      %v545 = vmul.f32 1.0, %v544
      %v546 = vrcp.pop %v501
      %v547 = vmul.f32 1.0, %v546
      %v548 = vrcp.pop %v502
      %v549 = vmul.f32 1.0, %v548
      %v550 = vrcp.pop %v503
      %v551 = vmul.f32 1.0, %v550
      %v552 = vrcp.pop %v504
      %v553 = vmul.f32 1.0, %v552
      %v554 = vrcp.pop %v505
      %v555 = vmul.f32 1.0, %v554
      %v556 = vrcp.pop %v506
      %v557 = vmul.f32 1.0, %v556
      %v558 = vrcp.pop %v507
      %v559 = vmul.f32 1.0, %v558
      %v560 = vrcp.pop %v508
      %v561 = vmul.f32 1.0, %v560
      %v562 = vrcp.pop %v509
      %v563 = vmul.f32 1.0, %v562
      %v564 = vrcp.pop %v510
      %v565 = vmul.f32 1.0, %v564
      %v566 = vrcp.pop %v511
      %v567 = vmul.f32 1.0, %v566
      %v568 = vrcp.pop %v512
      %v569 = vmul.f32 1.0, %v568
      %v570 = vrcp.pop %v513
      %v571 = vmul.f32 1.0, %v570
      %v572 = vrcp.pop %v514
      %v573 = vmul.f32 1.0, %v572
      %v574 = vrcp.pop %v515
      %v575 = vmul.f32 1.0, %v574
      %v576 = vmul.f32 %v366, %v517
      %v577 = vmul.f32 %v367, %v519
      %v578 = vmul.f32 %v368, %v521
      %v579 = vmul.f32 %v369, %v523
      %v580 = vmul.f32 %v370, %v525
      %v581 = vmul.f32 %v371, %v527
      %v582 = vmul.f32 %v372, %v529
      %v583 = vmul.f32 %v373, %v531
      %v584 = vmul.f32 %v374, %v533
      %v585 = vmul.f32 %v375, %v535
      %v586 = vmul.f32 %v376, %v537
      %v587 = vmul.f32 %v377, %v539
      %v588 = vmul.f32 %v378, %v541
      %v589 = vmul.f32 %v379, %v543
      %v590 = vmul.f32 %v380, %v545
      %v591 = vmul.f32 %v381, %v547
      %v592 = vmul.f32 %v382, %v549
      %v593 = vmul.f32 %v383, %v551
      %v594 = vmul.f32 %v384, %v553
      %v595 = vmul.f32 %v385, %v555
      %v596 = vmul.f32 %v386, %v557
      %v597 = vmul.f32 %v387, %v559
      %v598 = vmul.f32 %v388, %v561
      %v599 = vmul.f32 %v389, %v563
      %v600 = vmul.f32 %v390, %v565
      %v601 = vmul.f32 %v391, %v567
      %v602 = vmul.f32 %v392, %v569
      %v603 = vmul.f32 %v393, %v571
      %v604 = vmul.f32 %v394, %v573
      %v605 = vmul.f32 %v395, %v575
      %v606 = vstv %s289
      %v607 = vadd.s32 %v606, 1
      %v608 = vadd.s32 %v606, 2
      %v609 = vadd.s32 %v606, 3
      %v610 = vadd.s32 %v606, 4
      %v611 = vadd.s32 %v606, 5
      %v612 = vadd.s32 %v606, 6
      %v613 = vadd.s32 %v606, 7
      %v614 = vadd.s32 %v606, 8
      %v615 = vadd.s32 %v606, 9
      %v616 = vlaneseq
      %v617 = vshrl.u32 %v616, 7
      %v618 = vadd.s32 %v617, 8
      %v619 = vadd.s32 %v617, 16
      %vm620 = vcmp.ge.s32.totalorder %v606, 1
      %vm621 = vcmp.ge.s32.totalorder %v607, 1
      %vm622 = vcmp.ge.s32.totalorder %v608, 1
      %vm623 = vcmp.ge.s32.totalorder %v609, 1
      %vm624 = vcmp.ge.s32.totalorder %v610, 1
      %vm625 = vcmp.ge.s32.totalorder %v611, 1
      %vm626 = vcmp.ge.s32.totalorder %v612, 1
      %vm627 = vcmp.ge.s32.totalorder %v613, 1
      %vm628 = vcmp.ge.s32.totalorder %v614, 1
      %vm629 = vcmp.ge.s32.totalorder %v615, 1
      %vm630 = vcmp.lt.s32.totalorder %v606, 17
      %vm631 = vcmp.lt.s32.totalorder %v607, 17
      %vm632 = vcmp.lt.s32.totalorder %v608, 17
      %vm633 = vcmp.lt.s32.totalorder %v609, 17
      %vm634 = vcmp.lt.s32.totalorder %v610, 17
      %vm635 = vcmp.lt.s32.totalorder %v611, 17
      %vm636 = vcmp.lt.s32.totalorder %v612, 17
      %vm637 = vcmp.lt.s32.totalorder %v613, 17
      %vm638 = vcmp.lt.s32.totalorder %v614, 17
      %vm639 = vcmp.lt.s32.totalorder %v615, 17
      %vm640 = vmand %vm620, %vm630
      %vm641 = vmand %vm621, %vm631
      %vm642 = vmand %vm622, %vm632
      %vm643 = vmand %vm623, %vm633
      %vm644 = vmand %vm624, %vm634
      %vm645 = vmand %vm625, %vm635
      %vm646 = vmand %vm626, %vm636
      %vm647 = vmand %vm627, %vm637
      %vm648 = vmand %vm628, %vm638
      %vm649 = vmand %vm629, %vm639
      %vm650 = vcmp.ge.s32.totalorder %v617, 1
      %vm651 = vcmp.ge.s32.totalorder %v618, 1
      %vm652 = vcmp.ge.s32.totalorder %v619, 1
      %vm653 = vmand %vm640, %vm650
      %vm654 = vmand %vm640, %vm651
      %vm655 = vmand %vm640, %vm652
      %vm656 = vmand %vm641, %vm650
      %vm657 = vmand %vm641, %vm651
      %vm658 = vmand %vm641, %vm652
      %vm659 = vmand %vm642, %vm650
      %vm660 = vmand %vm642, %vm651
      %vm661 = vmand %vm642, %vm652
      %vm662 = vmand %vm643, %vm650
      %vm663 = vmand %vm643, %vm651
      %vm664 = vmand %vm643, %vm652
      %vm665 = vmand %vm644, %vm650
      %vm666 = vmand %vm644, %vm651
      %vm667 = vmand %vm644, %vm652
      %vm668 = vmand %vm645, %vm650
      %vm669 = vmand %vm645, %vm651
      %vm670 = vmand %vm645, %vm652
      %vm671 = vmand %vm646, %vm650
      %vm672 = vmand %vm646, %vm651
      %vm673 = vmand %vm646, %vm652
      %vm674 = vmand %vm647, %vm650
      %vm675 = vmand %vm647, %vm651
      %vm676 = vmand %vm647, %vm652
      %vm677 = vmand %vm648, %vm650
      %vm678 = vmand %vm648, %vm651
      %vm679 = vmand %vm648, %vm652
      %vm680 = vmand %vm649, %vm650
      %vm681 = vmand %vm649, %vm651
      %vm682 = vmand %vm649, %vm652
      %vm683 = vcmp.lt.s32.totalorder %v617, 17
      %vm684 = vcmp.lt.s32.totalorder %v618, 17
      %vm685 = vcmp.lt.s32.totalorder %v619, 17
      %vm686 = vmand %vm653, %vm683
      %vm687 = vmand %vm654, %vm684
      %vm688 = vmand %vm655, %vm685
      %vm689 = vmand %vm656, %vm683
      %vm690 = vmand %vm657, %vm684
      %vm691 = vmand %vm658, %vm685
      %vm692 = vmand %vm659, %vm683
      %vm693 = vmand %vm660, %vm684
      %vm694 = vmand %vm661, %vm685
      %vm695 = vmand %vm662, %vm683
      %vm696 = vmand %vm663, %vm684
      %vm697 = vmand %vm664, %vm685
      %vm698 = vmand %vm665, %vm683
      %vm699 = vmand %vm666, %vm684
      %vm700 = vmand %vm667, %vm685
      %vm701 = vmand %vm668, %vm683
      %vm702 = vmand %vm669, %vm684
      %vm703 = vmand %vm670, %vm685
      %vm704 = vmand %vm671, %vm683
      %vm705 = vmand %vm672, %vm684
      %vm706 = vmand %vm673, %vm685
      %vm707 = vmand %vm674, %vm683
      %vm708 = vmand %vm675, %vm684
      %vm709 = vmand %vm676, %vm685
      %vm710 = vmand %vm677, %vm683
      %vm711 = vmand %vm678, %vm684
      %vm712 = vmand %vm679, %vm685
      %vm713 = vmand %vm680, %vm683
      %vm714 = vmand %vm681, %vm684
      %vm715 = vmand %vm682, %vm685
      %v716 = vsel %vm686, 1, 0
      %v717 = vsel %vm687, 1, 0
      %v718 = vsel %vm688, 1, 0
      %v719 = vsel %vm689, 1, 0
      %v720 = vsel %vm690, 1, 0
      %v721 = vsel %vm691, 1, 0
      %v722 = vsel %vm692, 1, 0
      %v723 = vsel %vm693, 1, 0
      %v724 = vsel %vm694, 1, 0
      %v725 = vsel %vm695, 1, 0
      %v726 = vsel %vm696, 1, 0
      %v727 = vsel %vm697, 1, 0
      %v728 = vsel %vm698, 1, 0
      %v729 = vsel %vm699, 1, 0
      %v730 = vsel %vm700, 1, 0
      %v731 = vsel %vm701, 1, 0
      %v732 = vsel %vm702, 1, 0
      %v733 = vsel %vm703, 1, 0
      %v734 = vsel %vm704, 1, 0
      %v735 = vsel %vm705, 1, 0
      %v736 = vsel %vm706, 1, 0
      %v737 = vsel %vm707, 1, 0
      %v738 = vsel %vm708, 1, 0
      %v739 = vsel %vm709, 1, 0
      %v740 = vsel %vm710, 1, 0
      %v741 = vsel %vm711, 1, 0
      %v742 = vsel %vm712, 1, 0
      %v743 = vsel %vm713, 1, 0
      %v744 = vsel %vm714, 1, 0
      %v745 = vsel %vm715, 1, 0
      %vm746 = vcmp.eq.s32.totalorder %v716, 1
      %vm747 = vcmp.eq.s32.totalorder %v717, 1
      %vm748 = vcmp.eq.s32.totalorder %v718, 1
      %vm749 = vcmp.eq.s32.totalorder %v719, 1
      %vm750 = vcmp.eq.s32.totalorder %v720, 1
      %vm751 = vcmp.eq.s32.totalorder %v721, 1
      %vm752 = vcmp.eq.s32.totalorder %v722, 1
      %vm753 = vcmp.eq.s32.totalorder %v723, 1
      %vm754 = vcmp.eq.s32.totalorder %v724, 1
      %vm755 = vcmp.eq.s32.totalorder %v725, 1
      %vm756 = vcmp.eq.s32.totalorder %v726, 1
      %vm757 = vcmp.eq.s32.totalorder %v727, 1
      %vm758 = vcmp.eq.s32.totalorder %v728, 1
      %vm759 = vcmp.eq.s32.totalorder %v729, 1
      %vm760 = vcmp.eq.s32.totalorder %v730, 1
      %vm761 = vcmp.eq.s32.totalorder %v731, 1
      %vm762 = vcmp.eq.s32.totalorder %v732, 1
      %vm763 = vcmp.eq.s32.totalorder %v733, 1
      %vm764 = vcmp.eq.s32.totalorder %v734, 1
      %vm765 = vcmp.eq.s32.totalorder %v735, 1
      %vm766 = vcmp.eq.s32.totalorder %v736, 1
      %vm767 = vcmp.eq.s32.totalorder %v737, 1
      %vm768 = vcmp.eq.s32.totalorder %v738, 1
      %vm769 = vcmp.eq.s32.totalorder %v739, 1
      %vm770 = vcmp.eq.s32.totalorder %v740, 1
      %vm771 = vcmp.eq.s32.totalorder %v741, 1
      %vm772 = vcmp.eq.s32.totalorder %v742, 1
      %vm773 = vcmp.eq.s32.totalorder %v743, 1
      %vm774 = vcmp.eq.s32.totalorder %v744, 1
      %vm775 = vcmp.eq.s32.totalorder %v745, 1
      %v776 = vsel %vm746, %v576, 0.0
      %v777 = vsel %vm747, %v577, 0.0
      %v778 = vsel %vm748, %v578, 0.0
      %v779 = vsel %vm749, %v579, 0.0
      %v780 = vsel %vm750, %v580, 0.0
      %v781 = vsel %vm751, %v581, 0.0
      %v782 = vsel %vm752, %v582, 0.0
      %v783 = vsel %vm753, %v583, 0.0
      %v784 = vsel %vm754, %v584, 0.0
      %v785 = vsel %vm755, %v585, 0.0
      %v786 = vsel %vm756, %v586, 0.0
      %v787 = vsel %vm757, %v587, 0.0
      %v788 = vsel %vm758, %v588, 0.0
      %v789 = vsel %vm759, %v589, 0.0
      %v790 = vsel %vm760, %v590, 0.0
      %v791 = vsel %vm761, %v591, 0.0
      %v792 = vsel %vm762, %v592, 0.0
      %v793 = vsel %vm763, %v593, 0.0
      %v794 = vsel %vm764, %v594, 0.0
      %v795 = vsel %vm765, %v595, 0.0
      %v796 = vsel %vm766, %v596, 0.0
      %v797 = vsel %vm767, %v597, 0.0
      %v798 = vsel %vm768, %v598, 0.0
      %v799 = vsel %vm769, %v599, 0.0
      %v800 = vsel %vm770, %v600, 0.0
      %v801 = vsel %vm771, %v601, 0.0
      %v802 = vsel %vm772, %v602, 0.0
      %v803 = vsel %vm773, %v603, 0.0
      %v804 = vsel %vm774, %v604, 0.0
      %v805 = vsel %vm775, %v605, 0.0
      %vm830 = vcmask 1046528
      %v831 = vrot.slane %v776, 1
      %v832 = vrot.slane %v777, 1
      %v833 = vsel %vm830, %v831, %v832
      %v834 = vrot.slane %v778, 1
      %v835 = vsel %vm830, %v832, %v834
      %v836 = vrot.slane %v779, 1
      %v837 = vrot.slane %v780, 1
      %v838 = vsel %vm830, %v836, %v837
      %v839 = vrot.slane %v781, 1
      %v840 = vsel %vm830, %v837, %v839
      %v841 = vrot.slane %v782, 1
      %v842 = vrot.slane %v783, 1
      %v843 = vsel %vm830, %v841, %v842
      %v844 = vrot.slane %v784, 1
      %v845 = vsel %vm830, %v842, %v844
      %v846 = vrot.slane %v785, 1
      %v847 = vrot.slane %v786, 1
      %v848 = vsel %vm830, %v846, %v847
      %v849 = vrot.slane %v787, 1
      %v850 = vsel %vm830, %v847, %v849
      %v851 = vrot.slane %v788, 1
      %v852 = vrot.slane %v789, 1
      %v853 = vsel %vm830, %v851, %v852
      %v854 = vrot.slane %v790, 1
      %v855 = vsel %vm830, %v852, %v854
      %v856 = vrot.slane %v791, 1
      %v857 = vrot.slane %v792, 1
      %v858 = vsel %vm830, %v856, %v857
      %v859 = vrot.slane %v793, 1
      %v860 = vsel %vm830, %v857, %v859
      %v861 = vrot.slane %v794, 1
      %v862 = vrot.slane %v795, 1
      %v863 = vsel %vm830, %v861, %v862
      %v864 = vrot.slane %v796, 1
      %v865 = vsel %vm830, %v862, %v864
      %v866 = vrot.slane %v797, 1
      %v867 = vrot.slane %v798, 1
      %v868 = vsel %vm830, %v866, %v867
      %v869 = vrot.slane %v799, 1
      %v870 = vsel %vm830, %v867, %v869
      %vm871 = vcmask 1045504
      %v872 = vrot.slane %v776, 2
      %v873 = vrot.slane %v777, 2
      %v874 = vsel %vm871, %v872, %v873
      %v875 = vrot.slane %v778, 2
      %v876 = vsel %vm871, %v873, %v875
      %v877 = vrot.slane %v779, 2
      %v878 = vrot.slane %v780, 2
      %v879 = vsel %vm871, %v877, %v878
      %v880 = vrot.slane %v781, 2
      %v881 = vsel %vm871, %v878, %v880
      %v882 = vrot.slane %v782, 2
      %v883 = vrot.slane %v783, 2
      %v884 = vsel %vm871, %v882, %v883
      %v885 = vrot.slane %v784, 2
      %v886 = vsel %vm871, %v883, %v885
      %v887 = vrot.slane %v785, 2
      %v888 = vrot.slane %v786, 2
      %v889 = vsel %vm871, %v887, %v888
      %v890 = vrot.slane %v787, 2
      %v891 = vsel %vm871, %v888, %v890
      %v892 = vrot.slane %v788, 2
      %v893 = vrot.slane %v789, 2
      %v894 = vsel %vm871, %v892, %v893
      %v895 = vrot.slane %v790, 2
      %v896 = vsel %vm871, %v893, %v895
      %v897 = vrot.slane %v791, 2
      %v898 = vrot.slane %v792, 2
      %v899 = vsel %vm871, %v897, %v898
      %v900 = vrot.slane %v793, 2
      %v901 = vsel %vm871, %v898, %v900
      %v902 = vrot.slane %v794, 2
      %v903 = vrot.slane %v795, 2
      %v904 = vsel %vm871, %v902, %v903
      %v905 = vrot.slane %v796, 2
      %v906 = vsel %vm871, %v903, %v905
      %v907 = vrot.slane %v797, 2
      %v908 = vrot.slane %v798, 2
      %v909 = vsel %vm871, %v907, %v908
      %v910 = vrot.slane %v799, 2
      %v911 = vsel %vm871, %v908, %v910
      %v915 = vrot.slane %v800, 1
      %v916 = vrot.slane %v801, 1
      %v917 = vsel %vm830, %v915, %v916
      %v918 = vrot.slane %v802, 1
      %v919 = vsel %vm830, %v916, %v918
      %v920 = vrot.slane %v800, 2
      %v921 = vrot.slane %v801, 2
      %v922 = vsel %vm871, %v920, %v921
      %v923 = vrot.slane %v802, 2
      %v924 = vsel %vm871, %v921, %v923
      %v928 = vrot.slane %v803, 1
      %v929 = vrot.slane %v804, 1
      %v930 = vsel %vm830, %v928, %v929
      %v931 = vrot.slane %v805, 1
      %v932 = vsel %vm830, %v929, %v931
      %v933 = vrot.slane %v803, 2
      %v934 = vrot.slane %v804, 2
      %v935 = vsel %vm871, %v933, %v934
      %v936 = vrot.slane %v805, 2
      %v937 = vsel %vm871, %v934, %v936
      %938 = vrot.lane.b32.xlu0 %v833, 16
      %v939 = vpop.permute.xlu0 %938
      %940 = vrot.lane.b32.xlu0 %v835, 16
      %v941 = vpop.permute.xlu0 %940
      %942 = vrot.lane.b32.xlu0 %v838, 16
      %v943 = vpop.permute.xlu0 %942
      %944 = vrot.lane.b32.xlu0 %v840, 16
      %v945 = vpop.permute.xlu0 %944
      %946 = vrot.lane.b32.xlu0 %v843, 16
      %v947 = vpop.permute.xlu0 %946
      %948 = vrot.lane.b32.xlu0 %v845, 16
      %v949 = vpop.permute.xlu0 %948
      %950 = vrot.lane.b32.xlu0 %v848, 16
      %v951 = vpop.permute.xlu0 %950
      %952 = vrot.lane.b32.xlu0 %v850, 16
      %v953 = vpop.permute.xlu0 %952
      %954 = vrot.lane.b32.xlu0 %v853, 16
      %v955 = vpop.permute.xlu0 %954
      %956 = vrot.lane.b32.xlu0 %v855, 16
      %v957 = vpop.permute.xlu0 %956
      %958 = vrot.lane.b32.xlu0 %v858, 16
      %v959 = vpop.permute.xlu0 %958
      %960 = vrot.lane.b32.xlu0 %v860, 16
      %v961 = vpop.permute.xlu0 %960
      %962 = vrot.lane.b32.xlu0 %v863, 16
      %v963 = vpop.permute.xlu0 %962
      %964 = vrot.lane.b32.xlu0 %v865, 16
      %v965 = vpop.permute.xlu0 %964
      %966 = vrot.lane.b32.xlu0 %v868, 16
      %v967 = vpop.permute.xlu0 %966
      %968 = vrot.lane.b32.xlu0 %v870, 16
      %v969 = vpop.permute.xlu0 %968
      %986 = vrot.lane.b32.xlu0 %v874, 32
      %v987 = vpop.permute.xlu0 %986
      %988 = vrot.lane.b32.xlu0 %v876, 32
      %v989 = vpop.permute.xlu0 %988
      %990 = vrot.lane.b32.xlu0 %v879, 32
      %v991 = vpop.permute.xlu0 %990
      %992 = vrot.lane.b32.xlu0 %v881, 32
      %v993 = vpop.permute.xlu0 %992
      %994 = vrot.lane.b32.xlu0 %v884, 32
      %v995 = vpop.permute.xlu0 %994
      %996 = vrot.lane.b32.xlu0 %v886, 32
      %v997 = vpop.permute.xlu0 %996
      %998 = vrot.lane.b32.xlu0 %v889, 32
      %v999 = vpop.permute.xlu0 %998
      %1000 = vrot.lane.b32.xlu0 %v891, 32
      %v1001 = vpop.permute.xlu0 %1000
      %1002 = vrot.lane.b32.xlu0 %v894, 32
      %v1003 = vpop.permute.xlu0 %1002
      %1004 = vrot.lane.b32.xlu0 %v896, 32
      %v1005 = vpop.permute.xlu0 %1004
      %1006 = vrot.lane.b32.xlu0 %v899, 32
      %v1007 = vpop.permute.xlu0 %1006
      %1008 = vrot.lane.b32.xlu0 %v901, 32
      %v1009 = vpop.permute.xlu0 %1008
      %1010 = vrot.lane.b32.xlu0 %v904, 32
      %v1011 = vpop.permute.xlu0 %1010
      %1012 = vrot.lane.b32.xlu0 %v906, 32
      %v1013 = vpop.permute.xlu0 %1012
      %1014 = vrot.lane.b32.xlu0 %v909, 32
      %v1015 = vpop.permute.xlu0 %1014
      %1016 = vrot.lane.b32.xlu0 %v911, 32
      %v1017 = vpop.permute.xlu0 %1016
      %1034 = vrot.lane.b32.xlu0 %v779, 48
      %v1035 = vpop.permute.xlu0 %1034
      %1036 = vrot.lane.b32.xlu0 %v780, 48
      %v1037 = vpop.permute.xlu0 %1036
      %1038 = vrot.lane.b32.xlu0 %v782, 48
      %v1039 = vpop.permute.xlu0 %1038
      %1040 = vrot.lane.b32.xlu0 %v783, 48
      %v1041 = vpop.permute.xlu0 %1040
      %1042 = vrot.lane.b32.xlu0 %v785, 48
      %v1043 = vpop.permute.xlu0 %1042
      %1044 = vrot.lane.b32.xlu0 %v786, 48
      %v1045 = vpop.permute.xlu0 %1044
      %1046 = vrot.lane.b32.xlu0 %v788, 48
      %v1047 = vpop.permute.xlu0 %1046
      %1048 = vrot.lane.b32.xlu0 %v789, 48
      %v1049 = vpop.permute.xlu0 %1048
      %1050 = vrot.lane.b32.xlu0 %v791, 48
      %v1051 = vpop.permute.xlu0 %1050
      %1052 = vrot.lane.b32.xlu0 %v792, 48
      %v1053 = vpop.permute.xlu0 %1052
      %1054 = vrot.lane.b32.xlu0 %v794, 48
      %v1055 = vpop.permute.xlu0 %1054
      %1056 = vrot.lane.b32.xlu0 %v795, 48
      %v1057 = vpop.permute.xlu0 %1056
      %1058 = vrot.lane.b32.xlu0 %v797, 48
      %v1059 = vpop.permute.xlu0 %1058
      %1060 = vrot.lane.b32.xlu0 %v798, 48
      %v1061 = vpop.permute.xlu0 %1060
      %1062 = vrot.lane.b32.xlu0 %v800, 48
      %v1063 = vpop.permute.xlu0 %1062
      %1064 = vrot.lane.b32.xlu0 %v801, 48
      %v1065 = vpop.permute.xlu0 %1064
      %1082 = vrot.lane.b32.xlu0 %v838, 64
      %v1083 = vpop.permute.xlu0 %1082
      %1084 = vrot.lane.b32.xlu0 %v840, 64
      %v1085 = vpop.permute.xlu0 %1084
      %1086 = vrot.lane.b32.xlu0 %v843, 64
      %v1087 = vpop.permute.xlu0 %1086
      %1088 = vrot.lane.b32.xlu0 %v845, 64
      %v1089 = vpop.permute.xlu0 %1088
      %1090 = vrot.lane.b32.xlu0 %v848, 64
      %v1091 = vpop.permute.xlu0 %1090
      %1092 = vrot.lane.b32.xlu0 %v850, 64
      %v1093 = vpop.permute.xlu0 %1092
      %1094 = vrot.lane.b32.xlu0 %v853, 64
      %v1095 = vpop.permute.xlu0 %1094
      %1096 = vrot.lane.b32.xlu0 %v855, 64
      %v1097 = vpop.permute.xlu0 %1096
      %1098 = vrot.lane.b32.xlu0 %v858, 64
      %v1099 = vpop.permute.xlu0 %1098
      %1100 = vrot.lane.b32.xlu0 %v860, 64
      %v1101 = vpop.permute.xlu0 %1100
      %1102 = vrot.lane.b32.xlu0 %v863, 64
      %v1103 = vpop.permute.xlu0 %1102
      %1104 = vrot.lane.b32.xlu0 %v865, 64
      %v1105 = vpop.permute.xlu0 %1104
      %1106 = vrot.lane.b32.xlu0 %v868, 64
      %v1107 = vpop.permute.xlu0 %1106
      %1108 = vrot.lane.b32.xlu0 %v870, 64
      %v1109 = vpop.permute.xlu0 %1108
      %1110 = vrot.lane.b32.xlu0 %v917, 64
      %v1111 = vpop.permute.xlu0 %1110
      %1112 = vrot.lane.b32.xlu0 %v919, 64
      %v1113 = vpop.permute.xlu0 %1112
      %1130 = vrot.lane.b32.xlu0 %v879, 80
      %v1131 = vpop.permute.xlu0 %1130
      %1132 = vrot.lane.b32.xlu0 %v881, 80
      %v1133 = vpop.permute.xlu0 %1132
      %1134 = vrot.lane.b32.xlu0 %v884, 80
      %v1135 = vpop.permute.xlu0 %1134
      %1136 = vrot.lane.b32.xlu0 %v886, 80
      %v1137 = vpop.permute.xlu0 %1136
      %1138 = vrot.lane.b32.xlu0 %v889, 80
      %v1139 = vpop.permute.xlu0 %1138
      %1140 = vrot.lane.b32.xlu0 %v891, 80
      %v1141 = vpop.permute.xlu0 %1140
      %1142 = vrot.lane.b32.xlu0 %v894, 80
      %v1143 = vpop.permute.xlu0 %1142
      %1144 = vrot.lane.b32.xlu0 %v896, 80
      %v1145 = vpop.permute.xlu0 %1144
      %1146 = vrot.lane.b32.xlu0 %v899, 80
      %v1147 = vpop.permute.xlu0 %1146
      %1148 = vrot.lane.b32.xlu0 %v901, 80
      %v1149 = vpop.permute.xlu0 %1148
      %1150 = vrot.lane.b32.xlu0 %v904, 80
      %v1151 = vpop.permute.xlu0 %1150
      %1152 = vrot.lane.b32.xlu0 %v906, 80
      %v1153 = vpop.permute.xlu0 %1152
      %1154 = vrot.lane.b32.xlu0 %v909, 80
      %v1155 = vpop.permute.xlu0 %1154
      %1156 = vrot.lane.b32.xlu0 %v911, 80
      %v1157 = vpop.permute.xlu0 %1156
      %1158 = vrot.lane.b32.xlu0 %v922, 80
      %v1159 = vpop.permute.xlu0 %1158
      %1160 = vrot.lane.b32.xlu0 %v924, 80
      %v1161 = vpop.permute.xlu0 %1160
      %1178 = vrot.lane.b32.xlu0 %v782, 96
      %v1179 = vpop.permute.xlu0 %1178
      %1180 = vrot.lane.b32.xlu0 %v783, 96
      %v1181 = vpop.permute.xlu0 %1180
      %1182 = vrot.lane.b32.xlu0 %v785, 96
      %v1183 = vpop.permute.xlu0 %1182
      %1184 = vrot.lane.b32.xlu0 %v786, 96
      %v1185 = vpop.permute.xlu0 %1184
      %1186 = vrot.lane.b32.xlu0 %v788, 96
      %v1187 = vpop.permute.xlu0 %1186
      %1188 = vrot.lane.b32.xlu0 %v789, 96
      %v1189 = vpop.permute.xlu0 %1188
      %1190 = vrot.lane.b32.xlu0 %v791, 96
      %v1191 = vpop.permute.xlu0 %1190
      %1192 = vrot.lane.b32.xlu0 %v792, 96
      %v1193 = vpop.permute.xlu0 %1192
      %1194 = vrot.lane.b32.xlu0 %v794, 96
      %v1195 = vpop.permute.xlu0 %1194
      %1196 = vrot.lane.b32.xlu0 %v795, 96
      %v1197 = vpop.permute.xlu0 %1196
      %1198 = vrot.lane.b32.xlu0 %v797, 96
      %v1199 = vpop.permute.xlu0 %1198
      %1200 = vrot.lane.b32.xlu0 %v798, 96
      %v1201 = vpop.permute.xlu0 %1200
      %1202 = vrot.lane.b32.xlu0 %v800, 96
      %v1203 = vpop.permute.xlu0 %1202
      %1204 = vrot.lane.b32.xlu0 %v801, 96
      %v1205 = vpop.permute.xlu0 %1204
      %1206 = vrot.lane.b32.xlu0 %v803, 96
      %v1207 = vpop.permute.xlu0 %1206
      %1208 = vrot.lane.b32.xlu0 %v804, 96
      %v1209 = vpop.permute.xlu0 %1208
      %1226 = vrot.lane.b32.xlu0 %v843, 112
      %v1227 = vpop.permute.xlu0 %1226
      %1228 = vrot.lane.b32.xlu0 %v845, 112
      %v1229 = vpop.permute.xlu0 %1228
      %1230 = vrot.lane.b32.xlu0 %v848, 112
      %v1231 = vpop.permute.xlu0 %1230
      %1232 = vrot.lane.b32.xlu0 %v850, 112
      %v1233 = vpop.permute.xlu0 %1232
      %1234 = vrot.lane.b32.xlu0 %v853, 112
      %v1235 = vpop.permute.xlu0 %1234
      %1236 = vrot.lane.b32.xlu0 %v855, 112
      %v1237 = vpop.permute.xlu0 %1236
      %1238 = vrot.lane.b32.xlu0 %v858, 112
      %v1239 = vpop.permute.xlu0 %1238
      %1240 = vrot.lane.b32.xlu0 %v860, 112
      %v1241 = vpop.permute.xlu0 %1240
      %1242 = vrot.lane.b32.xlu0 %v863, 112
      %v1243 = vpop.permute.xlu0 %1242
      %1244 = vrot.lane.b32.xlu0 %v865, 112
      %v1245 = vpop.permute.xlu0 %1244
      %1246 = vrot.lane.b32.xlu0 %v868, 112
      %v1247 = vpop.permute.xlu0 %1246
      %1248 = vrot.lane.b32.xlu0 %v870, 112
      %v1249 = vpop.permute.xlu0 %1248
      %1250 = vrot.lane.b32.xlu0 %v917, 112
      %v1251 = vpop.permute.xlu0 %1250
      %1252 = vrot.lane.b32.xlu0 %v919, 112
      %v1253 = vpop.permute.xlu0 %1252
      %1254 = vrot.lane.b32.xlu0 %v930, 112
      %v1255 = vpop.permute.xlu0 %1254
      %1256 = vrot.lane.b32.xlu0 %v932, 112
      %v1257 = vpop.permute.xlu0 %1256
      %vm1274 = vcmask 130048
      %v1275 = vsel %vm1274, %v776, %v939
      %v1276 = vsel %vm1274, %v777, %v941
      %v1277 = vsel %vm1274, %v779, %v943
      %v1278 = vsel %vm1274, %v780, %v945
      %v1279 = vsel %vm1274, %v782, %v947
      %v1280 = vsel %vm1274, %v783, %v949
      %v1281 = vsel %vm1274, %v785, %v951
      %v1282 = vsel %vm1274, %v786, %v953
      %v1283 = vsel %vm1274, %v788, %v955
      %v1284 = vsel %vm1274, %v789, %v957
      %v1285 = vsel %vm1274, %v791, %v959
      %v1286 = vsel %vm1274, %v792, %v961
      %v1287 = vsel %vm1274, %v794, %v963
      %v1288 = vsel %vm1274, %v795, %v965
      %v1289 = vsel %vm1274, %v797, %v967
      %v1290 = vsel %vm1274, %v798, %v969
      %vm1291 = vcmask 261120
      %v1292 = vsel %vm1291, %v1275, %v987
      %v1293 = vsel %vm1291, %v1276, %v989
      %v1294 = vsel %vm1291, %v1277, %v991
      %v1295 = vsel %vm1291, %v1278, %v993
      %v1296 = vsel %vm1291, %v1279, %v995
      %v1297 = vsel %vm1291, %v1280, %v997
      %v1298 = vsel %vm1291, %v1281, %v999
      %v1299 = vsel %vm1291, %v1282, %v1001
      %v1300 = vsel %vm1291, %v1283, %v1003
      %v1301 = vsel %vm1291, %v1284, %v1005
      %v1302 = vsel %vm1291, %v1285, %v1007
      %v1303 = vsel %vm1291, %v1286, %v1009
      %v1304 = vsel %vm1291, %v1287, %v1011
      %v1305 = vsel %vm1291, %v1288, %v1013
      %v1306 = vsel %vm1291, %v1289, %v1015
      %v1307 = vsel %vm1291, %v1290, %v1017
      %vm1308 = vcmask 392192
      %v1309 = vsel %vm1308, %v1292, %v1035
      %v1310 = vsel %vm1308, %v1293, %v1037
      %v1311 = vsel %vm1308, %v1294, %v1039
      %v1312 = vsel %vm1308, %v1295, %v1041
      %v1313 = vsel %vm1308, %v1296, %v1043
      %v1314 = vsel %vm1308, %v1297, %v1045
      %v1315 = vsel %vm1308, %v1298, %v1047
      %v1316 = vsel %vm1308, %v1299, %v1049
      %v1317 = vsel %vm1308, %v1300, %v1051
      %v1318 = vsel %vm1308, %v1301, %v1053
      %v1319 = vsel %vm1308, %v1302, %v1055
      %v1320 = vsel %vm1308, %v1303, %v1057
      %v1321 = vsel %vm1308, %v1304, %v1059
      %v1322 = vsel %vm1308, %v1305, %v1061
      %v1323 = vsel %vm1308, %v1306, %v1063
      %v1324 = vsel %vm1308, %v1307, %v1065
      %vm1325 = vcmask 523264
      %v1326 = vsel %vm1325, %v1309, %v1083
      %v1327 = vsel %vm1325, %v1310, %v1085
      %v1328 = vsel %vm1325, %v1311, %v1087
      %v1329 = vsel %vm1325, %v1312, %v1089
      %v1330 = vsel %vm1325, %v1313, %v1091
      %v1331 = vsel %vm1325, %v1314, %v1093
      %v1332 = vsel %vm1325, %v1315, %v1095
      %v1333 = vsel %vm1325, %v1316, %v1097
      %v1334 = vsel %vm1325, %v1317, %v1099
      %v1335 = vsel %vm1325, %v1318, %v1101
      %v1336 = vsel %vm1325, %v1319, %v1103
      %v1337 = vsel %vm1325, %v1320, %v1105
      %v1338 = vsel %vm1325, %v1321, %v1107
      %v1339 = vsel %vm1325, %v1322, %v1109
      %v1340 = vsel %vm1325, %v1323, %v1111
      %v1341 = vsel %vm1325, %v1324, %v1113
      %vm1342 = vcmask 654336
      %v1343 = vsel %vm1342, %v1326, %v1131
      %v1344 = vsel %vm1342, %v1327, %v1133
      %v1345 = vsel %vm1342, %v1328, %v1135
      %v1346 = vsel %vm1342, %v1329, %v1137
      %v1347 = vsel %vm1342, %v1330, %v1139
      %v1348 = vsel %vm1342, %v1331, %v1141
      %v1349 = vsel %vm1342, %v1332, %v1143
      %v1350 = vsel %vm1342, %v1333, %v1145
      %v1351 = vsel %vm1342, %v1334, %v1147
      %v1352 = vsel %vm1342, %v1335, %v1149
      %v1353 = vsel %vm1342, %v1336, %v1151
      %v1354 = vsel %vm1342, %v1337, %v1153
      %v1355 = vsel %vm1342, %v1338, %v1155
      %v1356 = vsel %vm1342, %v1339, %v1157
      %v1357 = vsel %vm1342, %v1340, %v1159
      %v1358 = vsel %vm1342, %v1341, %v1161
      %vm1359 = vcmask 785408
      %v1360 = vsel %vm1359, %v1343, %v1179
      %v1361 = vsel %vm1359, %v1344, %v1181
      %v1362 = vsel %vm1359, %v1345, %v1183
      %v1363 = vsel %vm1359, %v1346, %v1185
      %v1364 = vsel %vm1359, %v1347, %v1187
      %v1365 = vsel %vm1359, %v1348, %v1189
      %v1366 = vsel %vm1359, %v1349, %v1191
      %v1367 = vsel %vm1359, %v1350, %v1193
      %v1368 = vsel %vm1359, %v1351, %v1195
      %v1369 = vsel %vm1359, %v1352, %v1197
      %v1370 = vsel %vm1359, %v1353, %v1199
      %v1371 = vsel %vm1359, %v1354, %v1201
      %v1372 = vsel %vm1359, %v1355, %v1203
      %v1373 = vsel %vm1359, %v1356, %v1205
      %v1374 = vsel %vm1359, %v1357, %v1207
      %v1375 = vsel %vm1359, %v1358, %v1209
      %vm1376 = vcmask 916480
      %v1377 = vsel %vm1376, %v1360, %v1227
      %v1378 = vsel %vm1376, %v1361, %v1229
      %v1379 = vsel %vm1376, %v1362, %v1231
      %v1380 = vsel %vm1376, %v1363, %v1233
      %v1381 = vsel %vm1376, %v1364, %v1235
      %v1382 = vsel %vm1376, %v1365, %v1237
      %v1383 = vsel %vm1376, %v1366, %v1239
      %v1384 = vsel %vm1376, %v1367, %v1241
      %v1385 = vsel %vm1376, %v1368, %v1243
      %v1386 = vsel %vm1376, %v1369, %v1245
      %v1387 = vsel %vm1376, %v1370, %v1247
      %v1388 = vsel %vm1376, %v1371, %v1249
      %v1389 = vsel %vm1376, %v1372, %v1251
      %v1390 = vsel %vm1376, %v1373, %v1253
      %v1391 = vsel %vm1376, %v1374, %v1255
      %v1392 = vsel %vm1376, %v1375, %v1257
      %v1393 = vld [vmem:[%s3] sm:$0xff]
      %v1394 = vld [vmem:[%s3 + $0x8] sm:$0xff]
      %v1395 = vld [vmem:[%s3 + $0x10] sm:$0xff]
      %v1396 = vld [vmem:[%s3 + $0x18] sm:$0xff]
      %v1397 = vld [vmem:[%s3 + $0x20] sm:$0xff]
      %v1398 = vld [vmem:[%s3 + $0x28] sm:$0xff]
      %v1399 = vld [vmem:[%s3 + $0x30] sm:$0xff]
      %v1400 = vld [vmem:[%s3 + $0x38] sm:$0xff]
      %v1401 = vld [vmem:[%s3 + $0x40] sm:$0xff]
      %v1402 = vld [vmem:[%s3 + $0x48] sm:$0xff]
      %v1403 = vld [vmem:[%s3 + $0x50] sm:$0xff]
      %v1404 = vld [vmem:[%s3 + $0x58] sm:$0xff]
      %v1405 = vld [vmem:[%s3 + $0x60] sm:$0xff]
      %v1406 = vld [vmem:[%s3 + $0x68] sm:$0xff]
      %v1407 = vld [vmem:[%s3 + $0x70] sm:$0xff]
      %v1408 = vld [vmem:[%s3 + $0x78] sm:$0xff]
      %v1409 = vld [vmem:[%s3 + $0x80] sm:$0xff]
      %v1410 = vld [vmem:[%s3 + $0x88] sm:$0xff]
      %v1411 = vsel %vm1274, %v884, 0
      %v1413 = vsel %vm1274, %v886, 0
      %v1415 = vsel %vm1274, %v889, 0
      %v1417 = vsel %vm1274, %v891, 0
      %v1419 = vsel %vm1274, %v894, 0
      %v1421 = vsel %vm1274, %v896, 0
      %v1423 = vsel %vm1274, %v899, 0
      %v1425 = vsel %vm1274, %v901, 0
      %v1427 = vsel %vm1274, %v904, 0
      %v1429 = vsel %vm1274, %v906, 0
      %v1431 = vsel %vm1274, %v909, 0
      %v1433 = vsel %vm1274, %v911, 0
      %v1435 = vsel %vm1274, %v922, 0
      %v1437 = vsel %vm1274, %v924, 0
      %v1439 = vsel %vm1274, %v935, 0
      %v1441 = vsel %vm1274, %v937, 0
      %1443 = vmatprep.subr.mxu0 0.0
      %1444 = vmatpush1.msra.mxu0 %v1408
      %1445 = vmatprep.subr.mxu0 0.0
      %1446 = vmatpush1.msra.mxu0 %v1407
      %1447 = vmatprep.subr.mxu0 0.0
      %1448 = vmatpush1.msra.mxu0 %v1406
      %1449 = vmatprep.subr.mxu0 0.0
      %1450 = vmatpush1.msra.mxu0 %v1405
      %1451 = vmatprep.subr.mxu0 0.0
      %1452 = vmatpush1.msra.mxu0 %v1404
      %1453 = vmatprep.subr.mxu0 0.0
      %1454 = vmatpush1.msra.mxu0 %v1403
      %1455 = vmatprep.subr.mxu0 0.0
      %1456 = vmatpush1.msra.mxu0 %v1402
      %1457 = vmatprep.subr.mxu0 0.0
      %1458 = vmatpush1.msra.mxu0 %v1401
      %1459 = vmatprep.subr.mxu0 0.0
      %1460 = vmatpush1.msra.mxu0 %v1400
      %1461 = vmatprep.subr.mxu0 0.0
      %1462 = vmatpush1.msra.mxu0 %v1399
      %1463 = vmatprep.subr.mxu0 0.0
      %1464 = vmatpush1.msra.mxu0 %v1398
      %1465 = vmatprep.subr.mxu0 0.0
      %1466 = vmatpush1.msra.mxu0 %v1397
      %1467 = vmatprep.subr.mxu0 0.0
      %1468 = vmatpush1.msra.mxu0 %v1396
      %1469 = vmatprep.subr.mxu0 0.0
      %1470 = vmatpush1.msra.mxu0 %v1395
      %1471 = vmatprep.subr.mxu0 0.0
      %1472 = vmatpush1.msra.mxu0 %v1394
      %1473 = vmatprep.subr.mxu0 0.0
      %1474 = vmatpush1.msra.mxu0 %v1393
      %1475 = vmatprep.subr.mxu0 0.0
      %1476 = vmatpush2.msra.mxu0 0.0
      %1477 = vmatprep.subr.mxu0 0.0
      %1478 = vmatpush2.msra.mxu0 0.0
      %1479 = vmatprep.subr.mxu0 0.0
      %1480 = vmatpush2.msra.mxu0 0.0
      %1481 = vmatprep.subr.mxu0 0.0
      %1482 = vmatpush2.msra.mxu0 0.0
      %1483 = vmatprep.subr.mxu0 0.0
      %1484 = vmatpush2.msra.mxu0 0.0
      %1485 = vmatprep.subr.mxu0 0.0
      %1486 = vmatpush2.msra.mxu0 0.0
      %1487 = vmatprep.subr.mxu0 0.0
      %1488 = vmatpush2.msra.mxu0 0.0
      %1489 = vmatprep.subr.mxu0 0.0
      %1490 = vmatpush2.msra.mxu0 0.0
      %1491 = vmatprep.subr.mxu0 0.0
      %1492 = vmatpush2.msra.mxu0 0.0
      %1493 = vmatprep.subr.mxu0 0.0
      %1494 = vmatpush2.msra.mxu0 0.0
      %1495 = vmatprep.subr.mxu0 0.0
      %1496 = vmatpush2.msra.mxu0 0.0
      %1497 = vmatprep.subr.mxu0 0.0
      %1498 = vmatpush2.msra.mxu0 0.0
      %1499 = vmatprep.subr.mxu0 0.0
      %1500 = vmatpush2.msra.mxu0 0.0
      %1501 = vmatprep.subr.mxu0 0.0
      %1502 = vmatpush2.msra.mxu0 0.0
      %1503 = vmatprep.subr.mxu0 0.0
      %1504 = vmatpush2.msra.mxu0 %v1410
      %1505 = vmatprep.subr.mxu0 0.0
      %1506 = vmatpush2.msra.mxu0 %v1409
      %1507 = vmatprep.mubr.f32.mxu0 %v1411
      %1508 = vmatmul.mubr.f32.gmra.mxu0 %v1377
      %v1509 = vpop.f32.mrf.mxu0
      %v1510 = vadd.f32 0.0, %v1509
      %v1511 = vpop.f32.mrf.mxu0
      %1512 = vmatprep.mubr.f32.mxu0 %v1413
      %1513 = vmatmul.mubr.f32.gmra.mxu0 %v1378
      %v1514 = vpop.f32.mrf.mxu0
      %v1515 = vadd.f32 0.0, %v1514
      %v1516 = vpop.f32.mrf.mxu0
      %1517 = vmatprep.mubr.f32.mxu0 %v1415
      %1518 = vmatmul.mubr.f32.gmra.mxu0 %v1379
      %v1519 = vpop.f32.mrf.mxu0
      %v1520 = vadd.f32 0.0, %v1519
      %v1521 = vpop.f32.mrf.mxu0
      %1522 = vmatprep.mubr.f32.mxu0 %v1417
      %1523 = vmatmul.mubr.f32.gmra.mxu0 %v1380
      %v1524 = vpop.f32.mrf.mxu0
      %v1525 = vadd.f32 0.0, %v1524
      %v1526 = vpop.f32.mrf.mxu0
      %1527 = vmatprep.mubr.f32.mxu0 %v1419
      %1528 = vmatmul.mubr.f32.gmra.mxu0 %v1381
      %v1529 = vpop.f32.mrf.mxu0
      %v1530 = vadd.f32 0.0, %v1529
      %v1531 = vpop.f32.mrf.mxu0
      %1532 = vmatprep.mubr.f32.mxu0 %v1421
      %1533 = vmatmul.mubr.f32.gmra.mxu0 %v1382
      %v1534 = vpop.f32.mrf.mxu0
      %v1535 = vadd.f32 0.0, %v1534
      %v1536 = vpop.f32.mrf.mxu0
      %1537 = vmatprep.mubr.f32.mxu0 %v1423
      %1538 = vmatmul.mubr.f32.gmra.mxu0 %v1383
      %v1539 = vpop.f32.mrf.mxu0
      %v1540 = vadd.f32 0.0, %v1539
      %v1541 = vpop.f32.mrf.mxu0
      %1542 = vmatprep.mubr.f32.mxu0 %v1425
      %1543 = vmatmul.mubr.f32.gmra.mxu0 %v1384
      %v1544 = vpop.f32.mrf.mxu0
      %v1545 = vadd.f32 0.0, %v1544
      %v1546 = vpop.f32.mrf.mxu0
      %1547 = vmatprep.mubr.f32.mxu0 %v1427
      %1548 = vmatmul.mubr.f32.gmra.mxu0 %v1385
      %v1549 = vpop.f32.mrf.mxu0
      %v1550 = vadd.f32 0.0, %v1549
      %v1551 = vpop.f32.mrf.mxu0
      %1552 = vmatprep.mubr.f32.mxu0 %v1429
      %1553 = vmatmul.mubr.f32.gmra.mxu0 %v1386
      %v1554 = vpop.f32.mrf.mxu0
      %v1555 = vadd.f32 0.0, %v1554
      %v1556 = vpop.f32.mrf.mxu0
      %1557 = vmatprep.mubr.f32.mxu0 %v1431
      %1558 = vmatmul.mubr.f32.gmra.mxu0 %v1387
      %v1559 = vpop.f32.mrf.mxu0
      %v1560 = vadd.f32 0.0, %v1559
      %v1561 = vpop.f32.mrf.mxu0
      %1562 = vmatprep.mubr.f32.mxu0 %v1433
      %1563 = vmatmul.mubr.f32.gmra.mxu0 %v1388
      %v1564 = vpop.f32.mrf.mxu0
      %v1565 = vadd.f32 0.0, %v1564
      %v1566 = vpop.f32.mrf.mxu0
      %1567 = vmatprep.mubr.f32.mxu0 %v1435
      %1568 = vmatmul.mubr.f32.gmra.mxu0 %v1389
      %v1569 = vpop.f32.mrf.mxu0
      %v1570 = vadd.f32 0.0, %v1569
      %v1571 = vpop.f32.mrf.mxu0
      %1572 = vmatprep.mubr.f32.mxu0 %v1437
      %1573 = vmatmul.mubr.f32.gmra.mxu0 %v1390
      %v1574 = vpop.f32.mrf.mxu0
      %v1575 = vadd.f32 0.0, %v1574
      %v1576 = vpop.f32.mrf.mxu0
      %1577 = vmatprep.mubr.f32.mxu0 %v1439
      %1578 = vmatmul.mubr.f32.gmra.mxu0 %v1391
      %v1579 = vpop.f32.mrf.mxu0
      %v1580 = vadd.f32 0.0, %v1579
      %v1581 = vpop.f32.mrf.mxu0
      %1582 = vmatprep.mubr.f32.mxu0 %v1441
      %1583 = vmatmul.mubr.f32.gmra.mxu0 %v1392
      %v1584 = vpop.f32.mrf.mxu0
      %v1585 = vadd.f32 0.0, %v1584
      %v1586 = vpop.f32.mrf.mxu0
      %1587 = vdwg.mxu0
      %v1588 = vld [vmem:[%s276] sm:$0xff]
      %v1589 = vld [vmem:[%s276 + $0x8] sm:$0xff]
      %v1590 = vld [vmem:[%s276 + $0x10] sm:$0xff]
      %v1591 = vld [vmem:[%s276 + $0x18] sm:$0xff]
      %v1592 = vld [vmem:[%s276 + $0x20] sm:$0xff]
      %v1593 = vld [vmem:[%s276 + $0x28] sm:$0xff]
      %v1594 = vld [vmem:[%s276 + $0x30] sm:$0xff]
      %v1595 = vld [vmem:[%s276 + $0x38] sm:$0xff]
      %v1596 = vld [vmem:[%s276 + $0x40] sm:$0xff]
      %v1597 = vld [vmem:[%s276 + $0x48] sm:$0xff]
      %v1598 = vld [vmem:[%s276 + $0x50] sm:$0xff]
      %v1599 = vld [vmem:[%s276 + $0x58] sm:$0xff]
      %v1600 = vld [vmem:[%s276 + $0x60] sm:$0xff]
      %v1601 = vld [vmem:[%s276 + $0x68] sm:$0xff]
      %v1602 = vld [vmem:[%s276 + $0x70] sm:$0xff]
      %v1603 = vld [vmem:[%s276 + $0x78] sm:$0xff]
      %v1604 = vadd.f32 %v1510, %v1588
      %v1605 = vadd.f32 %v1515, %v1589
      %v1606 = vadd.f32 %v1520, %v1590
      %v1607 = vadd.f32 %v1525, %v1591
      %v1608 = vadd.f32 %v1530, %v1592
      %v1609 = vadd.f32 %v1535, %v1593
      %v1610 = vadd.f32 %v1540, %v1594
      %v1611 = vadd.f32 %v1545, %v1595
      %v1612 = vadd.f32 %v1550, %v1596
      %v1613 = vadd.f32 %v1555, %v1597
      %v1614 = vadd.f32 %v1560, %v1598
      %v1615 = vadd.f32 %v1565, %v1599
      %v1616 = vadd.f32 %v1570, %v1600
      %v1617 = vadd.f32 %v1575, %v1601
      %v1618 = vadd.f32 %v1580, %v1602
      %v1619 = vadd.f32 %v1585, %v1603
      %1620 = vst.msk [vmem:[%s287] sm:$0xff] %vm1274, %v1604
      %1621 = vst.msk [vmem:[%s287 + $0x8] sm:$0xff] %vm1274, %v1605
      %1622 = vst.msk [vmem:[%s287 + $0x10] sm:$0xff] %vm1274, %v1606
      %1623 = vst.msk [vmem:[%s287 + $0x18] sm:$0xff] %vm1274, %v1607
      %1624 = vst.msk [vmem:[%s287 + $0x20] sm:$0xff] %vm1274, %v1608
      %1625 = vst.msk [vmem:[%s287 + $0x28] sm:$0xff] %vm1274, %v1609
      %1626 = vst.msk [vmem:[%s287 + $0x30] sm:$0xff] %vm1274, %v1610
      %1627 = vst.msk [vmem:[%s287 + $0x38] sm:$0xff] %vm1274, %v1611
      %1628 = vst.msk [vmem:[%s287 + $0x40] sm:$0xff] %vm1274, %v1612
      %1629 = vst.msk [vmem:[%s287 + $0x48] sm:$0xff] %vm1274, %v1613
      %1630 = vst.msk [vmem:[%s287 + $0x50] sm:$0xff] %vm1274, %v1614
      %1631 = vst.msk [vmem:[%s287 + $0x58] sm:$0xff] %vm1274, %v1615
      %1632 = vst.msk [vmem:[%s287 + $0x60] sm:$0xff] %vm1274, %v1616
      %1633 = vst.msk [vmem:[%s287 + $0x68] sm:$0xff] %vm1274, %v1617
      %1634 = vst.msk [vmem:[%s287 + $0x70] sm:$0xff] %vm1274, %v1618
      %1635 = vst.msk [vmem:[%s287 + $0x78] sm:$0xff] %vm1274, %v1619
      %s1636 = smul.u32 8, %s21
      %p1637 = scmp.lt.s32.totalorder %s20, 1
      %s1638 = scalar_select %p1637, %s20, 1
      %p1639 = scmp.lt.s32.totalorder %s1636, 15
      %s1640 = scalar_select %p1639, %s1636, 15
      %s1641 = smul.addr %s1640, 2
      %s1642 = smul.addr %s1638, 32
      %s1643 = sadd.s32 %s1641, %s1642
      %s1644 = smul.addr %s1643, 8
      %s1645 = scalar_lea.vmem %s5, %s1644
      // Predicated region
      $region41: #{quaternion_basic_block.3} parent=39 // pred_check
        %p1646 = pneg %p165
      $region42: #{quaternion_basic_block.3} parent=39 // pred_check_branch
        %1648 = sbr.rel (%p1646) target = $region44
      $region43: #{quaternion_basic_block.3} parent=39 // pred_region
        %s1649 = smul.u32 8, %s21
      $region44: #{quaternion_basic_block.3} parent=39 // pred_fallthru
        _
    $region40: #{quaternion_basic_block.3} parent=5 // pred_fallthru
      _
    %p1650 = scmp.le.s32.totalorder 2, %s11
    // Predicated region
    $region45: #{quaternion_basic_block.3} parent=5 // pred_check
      %p1651 = pneg %p1650
    $region46: #{quaternion_basic_block.3} parent=5 // pred_check_branch
      %1653 = sbr.rel (%p1651) target = $region48
    $region47: #{quaternion_basic_block.3} parent=5 // pred_region
      %s1654 = ssub.s32 %s11, 2
      // Predicated region
      $region49: #{quaternion_basic_block.3} parent=47 // pred_check
        %p1655 = pneg %p171
      $region50: #{quaternion_basic_block.3} parent=47 // pred_check_branch
        %1657 = sbr.rel (%p1655) target = $region52
      $region51: #{quaternion_basic_block.3} parent=47 // pred_region
        %s1658 = smul.u32 8, %s23
        %p1659 = scmp.lt.s32.totalorder %s22, 1
        %s1660 = scalar_select %p1659, %s22, 1
        %p1661 = scmp.lt.s32.totalorder %s1658, 15
        %s1662 = scalar_select %p1661, %s1658, 15
        %s1663 = smul.addr %s1662, 2
        %s1664 = smul.addr %s1660, 32
        %s1665 = sadd.s32 %s1663, %s1664
        %s1666 = smul.addr %s1665, 8
        %s1667 = scalar_lea.vmem %s5, %s1666
      $region52: #{quaternion_basic_block.3} parent=47 // pred_fallthru
        _
    $region48: #{quaternion_basic_block.3} parent=5 // pred_fallthru
      _
  $region6: #{quaternion_basic_block.3} parent=0 // loop_footer
    %s15 = sadd.s32 1, %s11
  $region7: #{quaternion_basic_block.3} parent=0 // loop_footer_branch
    %10 = sbr.rel target = $region3
  $region8: #{quaternion_basic_block.3} parent=0 // loop_exit
    _

</llo_original>
